<compile_context>
chip_gen: v7x
topology: tpu7x:2x2x1
jax: 0.10.0
libtpu: 0.0.40
codegen_flags: <defaults>
</compile_context>

<pallas_src>
import functools
import math

import jax
import jax.numpy as jnp
from jax.experimental import pallas as pl
from jax.experimental.pallas import tpu as pltpu

D_REAL = 100          # original feature dim
DP = 128              # padded feature dim (lane-dense)
BP = 8                # padded batch (f32 sublane tile)
CONV_K_REAL = 27      # 3 channels x 3x3 patch
CONV_C_REAL = 16      # conv-stem channels (ResNet50 stand-in)
N_NODES = 6


# --------------------------------------------------------------------------
# Single fused kernel: image stem -> 2-layer LSTM -> graph/audio/attn -> fusion
# --------------------------------------------------------------------------
def _mm_kernel(patches_ref, xtm_ref, gflat_ref, audio_ref,
               pool_ref, gpool_ref, w3_ref, lstm_w_ref, bias_ref,
               o_ref, *, BPk, T, H):
    f32 = jnp.float32
    bf16 = jnp.bfloat16

    def mm(a, b):
        # bf16 x bf16 MXU matmul with f32 accumulation
        return jnp.dot(a.astype(bf16), b.astype(bf16), preferred_element_type=f32)

    # ---------------- image stem: im2col-matmul -> ReLU -> GAP -> projection ----
    conv = mm(patches_ref[...], w3_ref[0]) + bias_ref[2:3, 0:H]      # (R, H)
    conv = jnp.maximum(conv, 0.0)
    gap = mm(pool_ref[...], conv)                                    # (BP, H)
    img = mm(gap, w3_ref[1]) + bias_ref[3:4, 0:H]                    # (BP, H)

    # ---------------- fused 2-layer LSTM (batch_first, last step of layer 2) ----
    wih1 = lstm_w_ref[0 * H:1 * H, :]          # (H, 4H)   gates packed [i|f|o|g]
    whh1 = lstm_w_ref[1 * H:2 * H, :]          # (H, 4H)
    w2 = lstm_w_ref[2 * H:4 * H, :]            # (2H, 4H)  = [wih2 ; whh2]
    b1 = bias_ref[0:1, :]                      # (1, 4H)
    b2 = jnp.broadcast_to(bias_ref[1:2, :], (BPk, 4 * H))   # hoisted broadcast

    # layer-1 input projection hoisted over all timesteps (one big GEMM)
    xp = mm(xtm_ref[...], wih1) + b1                                  # (T*BP, 4H)

    def act(g, c_prev):
        # [i|f|o|g]: one contiguous sigmoid over 3H lanes, one tanh over H lanes
        sig = jax.nn.sigmoid(g[:, 0:3 * H])
        gg = jnp.tanh(g[:, 3 * H:4 * H])
        i_g = sig[:, 0:H]
        f_g = sig[:, H:2 * H]
        o_g = sig[:, 2 * H:3 * H]
        c_new = f_g * c_prev + i_g * gg
        h_new = o_g * jnp.tanh(c_new)
        return h_new, c_new

    h1 = jnp.zeros((BPk, H), f32)
    c1 = jnp.zeros((BPk, H), f32)
    h2 = jnp.zeros((BPk, H), f32)
    c2 = jnp.zeros((BPk, H), f32)
    for t in range(T):                      # static T -> fully unrolled, 8-aligned slices
        g1 = xp[t * BPk:(t + 1) * BPk, :] + mm(h1, whh1)
        h1, c1 = act(g1, c1)
        g2 = mm(jnp.concatenate([h1, h2], axis=-1), w2) + b2          # fused layer-2 GEMM
        h2, c2 = act(g2, c2)
    txt = h2                                                          # (BP, H)

    # ---------------- graph conv (mean-node-pooled) / audio / degenerate MHA ----
    gp = mm(gpool_ref[...], gflat_ref[...])                           # (BP, H)
    graph = mm(gp, w3_ref[2]) + bias_ref[4:5, 0:H]
    audio = jnp.tanh(mm(audio_ref[...], w3_ref[3]) + bias_ref[5:6, 0:H])
    # length-1 q/k/v => softmax is exactly 1 => out_proj(value_proj(v)), folded to Wvo/bvo
    attn = mm(graph, w3_ref[4]) + bias_ref[6:7, 0:H]

    # ---------------- fusion Linear(500->100) as 5 accumulated 128x128 matmuls ----
    acc = mm(img, w3_ref[5])
    acc = acc + mm(txt, w3_ref[6])
    acc = acc + mm(graph, w3_ref[7])
    acc = acc + mm(audio, w3_ref[8])
    acc = acc + mm(attn, w3_ref[9])
    o_ref[...] = (acc + bias_ref[7:8, 0:H]).astype(o_ref.dtype)


def _full_spec(shape):
    zeros = (0,) * len(shape)
    return pl.BlockSpec(shape, lambda i, z=zeros: z)


def pallas_multimodal(patches, x_tm, gflat, audio_p, pool, gpool, w3, lstm_w, bias, *, T):
    return pl.pallas_call(
        functools.partial(_mm_kernel, BPk=BP, T=T, H=DP),
        out_shape=jax.ShapeDtypeStruct((BP, DP), jnp.float32),
        grid=(1,),
        in_specs=[
            _full_spec(patches.shape),
            _full_spec(x_tm.shape),
            _full_spec(gflat.shape),
            _full_spec(audio_p.shape),
            _full_spec(pool.shape),
            _full_spec(gpool.shape),
            _full_spec(w3.shape),
            _full_spec(lstm_w.shape),
            _full_spec(bias.shape),
        ],
        out_specs=_full_spec((BP, DP)),
        compiler_params=pltpu.CompilerParams(dimension_semantics=("arbitrary",)),
    )(patches, x_tm, gflat, audio_p, pool, gpool, w3, lstm_w, bias)


# --------------------------------------------------------------------------
# Parameters (deterministic, synthetic), padded + packed at init.
# --------------------------------------------------------------------------
def _check_padded_lanes(p):
    # Padded lanes of weights/biases must be exactly zero so that the first 100
    # output features equal the unpadded model (up to bf16 rounding).
    w3 = jnp.asarray(p["w3"], jnp.float32)
    lw = jnp.asarray(p["lstm_w"], jnp.float32).reshape(4, DP, 4, DP)
    bias = p["bias"]
    ok = jnp.all(w3[:, D_REAL:, :] == 0) & jnp.all(w3[:, :, D_REAL:] == 0)
    ok &= jnp.all(lw[:, D_REAL:, :, :] == 0) & jnp.all(lw[:, :, :, D_REAL:] == 0)
    ok &= jnp.all(bias[:2].reshape(2, 4, DP)[:, :, D_REAL:] == 0)
    ok &= jnp.all(bias[2:, D_REAL:] == 0)
    assert bool(ok), "padded lanes of weights/biases must be exactly zero"


def init_params(key, *, B=2, hw=16, n_nodes=N_NODES):
    D = D_REAL
    ks = jax.random.split(key, 20)

    def w(k, shape, fan_in):
        return ((1.0 / math.sqrt(fan_in)) * jax.random.normal(k, shape)).astype(jnp.float32)

    def bvec(k, n, fan_in):
        return ((1.0 / math.sqrt(fan_in)) * jax.random.normal(k, (n,))).astype(jnp.float32)

    def pad2(x, shape):
        return jnp.pad(x, [(0, s - d) for d, s in zip(x.shape, shape)])

    def pad_bias(v):
        return jnp.zeros((DP,), jnp.float32).at[:v.shape[0]].set(v)

    # image stem (ResNet50 stand-in): 3x3 conv (im2col) + ReLU + GAP + Linear
    conv_w = pad2(w(ks[0], (CONV_K_REAL, CONV_C_REAL), CONV_K_REAL), (DP, DP))
    conv_b = pad_bias(bvec(ks[1], CONV_C_REAL, CONV_K_REAL))
    proj_w = pad2(w(ks[2], (CONV_C_REAL, D), CONV_C_REAL), (DP, DP))
    proj_b = pad_bias(bvec(ks[3], D, CONV_C_REAL))

    # 2-layer LSTM(100->100): gates packed [i|f|o|g], each 128-wide block zero-padded
    def packed_gates(k, in_dim):
        kk = jax.random.split(k, 4)
        return jnp.concatenate(
            [pad2(w(kk[g], (in_dim, D), in_dim), (DP, DP)) for g in range(4)], axis=1)

    def packed_bias(k):
        kk = jax.random.split(k, 4)
        return jnp.concatenate([pad_bias(bvec(kk[g], D, D)) for g in range(4)], axis=0)

    wih1 = packed_gates(ks[4], D)
    whh1 = packed_gates(ks[5], D)
    wih2 = packed_gates(ks[6], D)
    whh2 = packed_gates(ks[7], D)
    b1 = packed_bias(ks[8])
    b2 = packed_bias(ks[9])
    lstm_w = jnp.concatenate([wih1, whh1, wih2, whh2], axis=0).astype(jnp.bfloat16)

    # graph conv + normalized ring adjacency
    graph_w = pad2(w(ks[10], (D, D), D), (DP, DP))
    graph_b = pad_bias(bvec(ks[11], D, D))
    eye = jnp.eye(n_nodes, dtype=jnp.float32)
    adj = eye + jnp.roll(eye, 1, axis=1) + jnp.roll(eye, -1, axis=1)
    adj = adj / jnp.sum(adj, axis=1, keepdims=True)
    a_mean = jnp.mean(adj, axis=0)                    # col-mean(A_norm): mean-node pooling

    # audio "Generator" stand-in: Linear + tanh
    audio_w = pad2(w(ks[12], (D, D), D), (DP, DP))
    audio_b = pad_bias(bvec(ks[13], D, D))

    # degenerate MHA (length-1 q/k/v): only value/out projections reach the output.
    # Folded at init: Wvo = Wv@Wo, bvo = bv@Wo + bo.
    wv = pad2(w(ks[14], (D, D), D), (DP, DP))
    wo = pad2(w(ks[15], (D, D), D), (DP, DP))
    bv = pad_bias(bvec(ks[16], D, D))
    bo = pad_bias(bvec(ks[17], D, D))
    wvo = wv @ wo
    bvo = bv @ wo + bo

    # fusion Linear(500 -> 100), pre-split into 5 (128,128) blocks
    fw = w(ks[18], (5 * D, D), 5 * D)
    fuse_blocks = [pad2(fw[i * D:(i + 1) * D], (DP, DP)) for i in range(5)]
    fuse_b = pad_bias(bvec(ks[19], D, 5 * D))

    # packed slabs (fewer, larger DMAs)
    w3 = jnp.stack([conv_w, proj_w, graph_w, audio_w, wvo] + fuse_blocks,
                   axis=0).astype(jnp.bfloat16)                        # (10,128,128)
    bias = jnp.zeros((8, 4 * DP), jnp.float32)
    bias = bias.at[0].set(b1)
    bias = bias.at[1].set(b2)
    for row, vec in ((2, conv_b), (3, proj_b), (4, graph_b),
                     (5, audio_b), (6, bvo), (7, fuse_b)):
        bias = bias.at[row, :DP].set(vec)

    # call-invariant pooling matrices (hoisted out of the jit'd forward)
    spatial = hw * hw
    pool = jnp.zeros((BP, B * spatial), jnp.float32)
    pool = pool.at[:B].set(
        jnp.repeat(jnp.eye(B, dtype=jnp.float32), spatial, axis=1) / spatial)
    gn_pad = ((B * n_nodes + 7) // 8) * 8
    gpool = jnp.zeros((BP, gn_pad), jnp.float32)
    gpool = gpool.at[:B, :B * n_nodes].set(
        jnp.kron(jnp.eye(B, dtype=jnp.float32), a_mean[None, :]))

    params = {"w3": w3, "lstm_w": lstm_w, "bias": bias, "pool": pool, "gpool": gpool}
    _check_padded_lanes(params)
    return params


# --------------------------------------------------------------------------
# Forward pass: one XLA program, one Pallas kernel, minimal wrapper glue.
# --------------------------------------------------------------------------
@jax.jit
def multimodal_forward(params, image, text, graph, audio):
    B = image.shape[0]
    T = text.shape[1]
    Hs, Ws = image.shape[2], image.shape[3]

    # ---- image prep ----
    # TODO(synk): pretrained ResNet50 backbone cannot be reproduced in-script; a
    # 3x3-conv stem + ReLU + global-average-pool + Linear->feature stands in.
    img_nhwc = jnp.transpose(image, (0, 2, 3, 1))
    patches = jax.lax.conv_general_dilated_patches(
        img_nhwc, filter_shape=(3, 3), window_strides=(1, 1), padding="SAME",
        dimension_numbers=("NHWC", "HWIO", "NHWC"))                 # (B, H, W, 27)
    patches = patches.reshape(B * Hs * Ws, -1)
    patches = jnp.pad(patches, ((0, 0), (0, DP - patches.shape[1])))  # K 27 -> 128

    # ---- text prep: time-major, batch padded 2->8 so per-step slices are vreg-aligned ----
    x_tm = jnp.transpose(text, (1, 0, 2))                           # (T, B, D)
    x_tm = jnp.pad(x_tm, ((0, 0), (0, BP - B), (0, DP - x_tm.shape[-1])))
    x_tm = x_tm.reshape(T * BP, DP)

    # ---- graph / audio prep ----
    gn_pad = params["gpool"].shape[1]
    gflat = graph.reshape(B * graph.shape[1], graph.shape[2])
    gflat = jnp.pad(gflat, ((0, gn_pad - gflat.shape[0]), (0, DP - gflat.shape[1])))
    audio_p = jnp.pad(audio, ((0, BP - B), (0, DP - audio.shape[1])))

    # TODO(synk): t5-small text_transformer cannot be reproduced in-script; its output
    # is only passed as an invalid extra positional MHA arg and never reaches the fused
    # output, so the dead branch is dropped. MultiheadAttention(100, 8) is invalid
    # (100 % 8 != 0); with length-1 sequences the head split does not affect the output.
    out = pallas_multimodal(patches, x_tm, gflat, audio_p,
                            params["pool"], params["gpool"],
                            params["w3"], params["lstm_w"], params["bias"], T=T)
    return out[:B, :D_REAL]                                         # (B, 100)


if __name__ == "__main__":
    key = jax.random.PRNGKey(0)
    k_img, k_txt, k_gra, k_aud, k_par = jax.random.split(key, 5)

    B, D, T, N = 2, 100, 8, 6
    image = jax.random.normal(k_img, (B, 3, 16, 16), dtype=jnp.float32)  # NCHW
    text = jax.random.normal(k_txt, (B, T, D), dtype=jnp.float32)
    graph = jax.random.normal(k_gra, (B, N, D), dtype=jnp.float32)
    audio = jax.random.normal(k_aud, (B, D), dtype=jnp.float32)

    params = init_params(k_par, B=B, hw=16, n_nodes=N)

    out = multimodal_forward(params, image, text, graph, audio)
    out = jax.block_until_ready(out)
    assert out.shape == (B, D) and out.dtype == jnp.float32
    assert bool(jnp.all(jnp.isfinite(out)))
    print("KERNEL_OK")
</pallas_src>

<mosaic_0001>
module attributes {stable_mosaic.version = 11 : i64} {
  func.func @_mm_kernel(%arg0: i32, %arg1: memref<512x128xf32, #tpu.memory_space<vmem>>, %arg2: memref<64x128xf32, #tpu.memory_space<vmem>>, %arg3: memref<16x128xf32, #tpu.memory_space<vmem>>, %arg4: memref<8x128xf32, #tpu.memory_space<vmem>>, %arg5: memref<8x512xf32, #tpu.memory_space<vmem>>, %arg6: memref<8x16xf32, #tpu.memory_space<vmem>>, %arg7: memref<10x128x128xbf16, #tpu.memory_space<vmem>>, %arg8: memref<512x512xbf16, #tpu.memory_space<vmem>>, %arg9: memref<8x512xf32, #tpu.memory_space<vmem>>, %arg10: memref<8x128xf32, #tpu.memory_space<vmem>>) attributes {dimension_semantics = [#tpu.dimension_semantics<arbitrary>], iteration_bounds = array<i64: 1>, scalar_prefetch = 0 : i64, scratch_operands = 0 : i64, tpu.core_type = #tpu.core_type<tc>, window_params = [{pipeline_mode = #tpu.pipeline_mode<synchronous>, transform_indices = @transform_0, window_bounds = array<i64: 512, 128>}, {pipeline_mode = #tpu.pipeline_mode<synchronous>, transform_indices = @transform_1, window_bounds = array<i64: 64, 128>}, {pipeline_mode = #tpu.pipeline_mode<synchronous>, transform_indices = @transform_2, window_bounds = array<i64: 16, 128>}, {pipeline_mode = #tpu.pipeline_mode<synchronous>, transform_indices = @transform_3, window_bounds = array<i64: 8, 128>}, {pipeline_mode = #tpu.pipeline_mode<synchronous>, transform_indices = @transform_4, window_bounds = array<i64: 8, 512>}, {pipeline_mode = #tpu.pipeline_mode<synchronous>, transform_indices = @transform_5, window_bounds = array<i64: 8, 16>}, {pipeline_mode = #tpu.pipeline_mode<synchronous>, transform_indices = @transform_6, window_bounds = array<i64: 10, 128, 128>}, {pipeline_mode = #tpu.pipeline_mode<synchronous>, transform_indices = @transform_7, window_bounds = array<i64: 512, 512>}, {pipeline_mode = #tpu.pipeline_mode<synchronous>, transform_indices = @transform_8, window_bounds = array<i64: 8, 512>}, {pipeline_mode = #tpu.pipeline_mode<synchronous>, transform_indices = @transform_9, window_bounds = array<i64: 8, 128>}]} {
    %c0 = arith.constant 0 : index
    %c0_0 = arith.constant 0 : index
    %0 = vector.load %arg1[%c0, %c0_0] : memref<512x128xf32, #tpu.memory_space<vmem>>, vector<512x128xf32>
    %c0_1 = arith.constant 0 : index
    %c0_2 = arith.constant 0 : index
    %c0_3 = arith.constant 0 : index
    %1 = vector.load %arg7[%c0_1, %c0_2, %c0_3] : memref<10x128x128xbf16, #tpu.memory_space<vmem>>, vector<1x128x128xbf16>
    %2 = vector.shape_cast %1 : vector<1x128x128xbf16> to vector<128x128xbf16>
    %3 = arith.truncf %0 : vector<512x128xf32> to vector<512x128xbf16>
    %cst = arith.constant dense<0.000000e+00> : vector<512x128xf32>
    %4 = tpu.matmul %3, %2, %cst {dimension_numbers = #tpu.dot_dimension_numbers<[1], [0], [0], [1], [0, 0, 1, 1], [], []>} : vector<512x128xbf16>, vector<128x128xbf16>, vector<512x128xf32> -> vector<512x128xf32>
    %c2 = arith.constant 2 : index
    %c0_4 = arith.constant 0 : index
    %5 = vector.load %arg9[%c2, %c0_4] : memref<8x512xf32, #tpu.memory_space<vmem>>, vector<1x128xf32>
    %6 = vector.broadcast %5 : vector<1x128xf32> to vector<512x128xf32>
    %7 = arith.addf %4, %6 : vector<512x128xf32>
    %cst_5 = arith.constant 0.000000e+00 : f32
    %8 = vector.broadcast %cst_5 : f32 to vector<512x128xf32>
    %9 = arith.maximumf %7, %8 : vector<512x128xf32>
    %c0_6 = arith.constant 0 : index
    %c0_7 = arith.constant 0 : index
    %10 = vector.load %arg5[%c0_6, %c0_7] : memref<8x512xf32, #tpu.memory_space<vmem>>, vector<8x512xf32>
    %11 = arith.truncf %10 : vector<8x512xf32> to vector<8x512xbf16>
    %12 = arith.truncf %9 : vector<512x128xf32> to vector<512x128xbf16>
    %cst_8 = arith.constant dense<0.000000e+00> : vector<8x128xf32>
    %13 = tpu.matmul %11, %12, %cst_8 {dimension_numbers = #tpu.dot_dimension_numbers<[1], [0], [0], [1], [0, 0, 1, 1], [], []>} : vector<8x512xbf16>, vector<512x128xbf16>, vector<8x128xf32> -> vector<8x128xf32>
    %c1 = arith.constant 1 : index
    %c0_9 = arith.constant 0 : index
    %c0_10 = arith.constant 0 : index
    %14 = vector.load %arg7[%c1, %c0_9, %c0_10] : memref<10x128x128xbf16, #tpu.memory_space<vmem>>, vector<1x128x128xbf16>
    %15 = vector.shape_cast %14 : vector<1x128x128xbf16> to vector<128x128xbf16>
    %16 = arith.truncf %13 : vector<8x128xf32> to vector<8x128xbf16>
    %cst_11 = arith.constant dense<0.000000e+00> : vector<8x128xf32>
    %17 = tpu.matmul %16, %15, %cst_11 {dimension_numbers = #tpu.dot_dimension_numbers<[1], [0], [0], [1], [0, 0, 1, 1], [], []>} : vector<8x128xbf16>, vector<128x128xbf16>, vector<8x128xf32> -> vector<8x128xf32>
    %c3 = arith.constant 3 : index
    %c0_12 = arith.constant 0 : index
    %18 = vector.load %arg9[%c3, %c0_12] : memref<8x512xf32, #tpu.memory_space<vmem>>, vector<1x128xf32>
    %19 = vector.broadcast %18 : vector<1x128xf32> to vector<8x128xf32>
    %20 = arith.addf %17, %19 : vector<8x128xf32>
    %c0_13 = arith.constant 0 : index
    %c0_14 = arith.constant 0 : index
    %21 = vector.load %arg8[%c0_13, %c0_14] : memref<512x512xbf16, #tpu.memory_space<vmem>>, vector<128x512xbf16>
    %c128 = arith.constant 128 : index
    %c0_15 = arith.constant 0 : index
    %22 = vector.load %arg8[%c128, %c0_15] : memref<512x512xbf16, #tpu.memory_space<vmem>>, vector<128x512xbf16>
    %c256 = arith.constant 256 : index
    %c0_16 = arith.constant 0 : index
    %23 = vector.load %arg8[%c256, %c0_16] : memref<512x512xbf16, #tpu.memory_space<vmem>>, vector<256x512xbf16>
    %c0_17 = arith.constant 0 : index
    %c0_18 = arith.constant 0 : index
    %24 = vector.load %arg9[%c0_17, %c0_18] : memref<8x512xf32, #tpu.memory_space<vmem>>, vector<1x512xf32>
    %c1_19 = arith.constant 1 : index
    %c0_20 = arith.constant 0 : index
    %25 = vector.load %arg9[%c1_19, %c0_20] : memref<8x512xf32, #tpu.memory_space<vmem>>, vector<1x512xf32>
    %26 = vector.shape_cast %25 : vector<1x512xf32> to vector<1x512xf32>
    %27 = vector.broadcast %26 : vector<1x512xf32> to vector<8x512xf32>
    %c0_21 = arith.constant 0 : index
    %c0_22 = arith.constant 0 : index
    %28 = vector.load %arg2[%c0_21, %c0_22] : memref<64x128xf32, #tpu.memory_space<vmem>>, vector<64x128xf32>
    %29 = arith.truncf %28 : vector<64x128xf32> to vector<64x128xbf16>
    %cst_23 = arith.constant dense<0.000000e+00> : vector<64x512xf32>
    %30 = tpu.matmul %29, %21, %cst_23 {dimension_numbers = #tpu.dot_dimension_numbers<[1], [0], [0], [1], [0, 0, 1, 1], [], []>} : vector<64x128xbf16>, vector<128x512xbf16>, vector<64x512xf32> -> vector<64x512xf32>
    %31 = vector.broadcast %24 : vector<1x512xf32> to vector<64x512xf32>
    %32 = arith.addf %30, %31 : vector<64x512xf32>
    %cst_24 = arith.constant 0.000000e+00 : f32
    %33 = vector.broadcast %cst_24 : f32 to vector<8x128xf32>
    %cst_25 = arith.constant 0.000000e+00 : f32
    %34 = vector.broadcast %cst_25 : f32 to vector<8x128xf32>
    %cst_26 = arith.constant 0.000000e+00 : f32
    %35 = vector.broadcast %cst_26 : f32 to vector<8x128xf32>
    %cst_27 = arith.constant 0.000000e+00 : f32
    %36 = vector.broadcast %cst_27 : f32 to vector<8x128xf32>
    %37 = vector.extract_strided_slice %32 {offsets = [0, 0], sizes = [8, 512], strides = [1, 1]} : vector<64x512xf32> to vector<8x512xf32>
    %38 = arith.truncf %33 : vector<8x128xf32> to vector<8x128xbf16>
    %cst_28 = arith.constant dense<0.000000e+00> : vector<8x512xf32>
    %39 = tpu.matmul %38, %22, %cst_28 {dimension_numbers = #tpu.dot_dimension_numbers<[1], [0], [0], [1], [0, 0, 1, 1], [], []>} : vector<8x128xbf16>, vector<128x512xbf16>, vector<8x512xf32> -> vector<8x512xf32>
    %40 = arith.addf %37, %39 : vector<8x512xf32>
    %41 = vector.extract_strided_slice %40 {offsets = [0, 0], sizes = [8, 384], strides = [1, 1]} : vector<8x512xf32> to vector<8x384xf32>
    %42 = arith.negf %41 : vector<8x384xf32>
    %43 = math.exp %42 : vector<8x384xf32>
    %cst_29 = arith.constant 1.000000e+00 : f32
    %44 = vector.broadcast %cst_29 : f32 to vector<8x384xf32>
    %45 = arith.addf %44, %43 : vector<8x384xf32>
    %46 = arith.divf %44, %45 : vector<8x384xf32>
    %47 = vector.extract_strided_slice %40 {offsets = [0, 384], sizes = [8, 128], strides = [1, 1]} : vector<8x512xf32> to vector<8x128xf32>
    %48 = math.tanh %47 : vector<8x128xf32>
    %49 = vector.extract_strided_slice %46 {offsets = [0, 0], sizes = [8, 128], strides = [1, 1]} : vector<8x384xf32> to vector<8x128xf32>
    %50 = vector.extract_strided_slice %46 {offsets = [0, 128], sizes = [8, 128], strides = [1, 1]} : vector<8x384xf32> to vector<8x128xf32>
    %51 = vector.extract_strided_slice %46 {offsets = [0, 256], sizes = [8, 128], strides = [1, 1]} : vector<8x384xf32> to vector<8x128xf32>
    %52 = arith.mulf %50, %34 : vector<8x128xf32>
    %53 = arith.mulf %49, %48 : vector<8x128xf32>
    %54 = arith.addf %52, %53 : vector<8x128xf32>
    %55 = math.tanh %54 : vector<8x128xf32>
    %56 = arith.mulf %51, %55 : vector<8x128xf32>
    %57 = tpu.concatenate %56, %35 in 1 : vector<8x128xf32>, vector<8x128xf32> -> vector<8x256xf32>
    %58 = arith.truncf %57 : vector<8x256xf32> to vector<8x256xbf16>
    %cst_30 = arith.constant dense<0.000000e+00> : vector<8x512xf32>
    %59 = tpu.matmul %58, %23, %cst_30 {dimension_numbers = #tpu.dot_dimension_numbers<[1], [0], [0], [1], [0, 0, 1, 1], [], []>} : vector<8x256xbf16>, vector<256x512xbf16>, vector<8x512xf32> -> vector<8x512xf32>
    %60 = arith.addf %59, %27 : vector<8x512xf32>
    %61 = vector.extract_strided_slice %60 {offsets = [0, 0], sizes = [8, 384], strides = [1, 1]} : vector<8x512xf32> to vector<8x384xf32>
    %62 = arith.negf %61 : vector<8x384xf32>
    %63 = math.exp %62 : vector<8x384xf32>
    %cst_31 = arith.constant 1.000000e+00 : f32
    %64 = vector.broadcast %cst_31 : f32 to vector<8x384xf32>
    %65 = arith.addf %64, %63 : vector<8x384xf32>
    %66 = arith.divf %64, %65 : vector<8x384xf32>
    %67 = vector.extract_strided_slice %60 {offsets = [0, 384], sizes = [8, 128], strides = [1, 1]} : vector<8x512xf32> to vector<8x128xf32>
    %68 = math.tanh %67 : vector<8x128xf32>
    %69 = vector.extract_strided_slice %66 {offsets = [0, 0], sizes = [8, 128], strides = [1, 1]} : vector<8x384xf32> to vector<8x128xf32>
    %70 = vector.extract_strided_slice %66 {offsets = [0, 128], sizes = [8, 128], strides = [1, 1]} : vector<8x384xf32> to vector<8x128xf32>
    %71 = vector.extract_strided_slice %66 {offsets = [0, 256], sizes = [8, 128], strides = [1, 1]} : vector<8x384xf32> to vector<8x128xf32>
    %72 = arith.mulf %70, %36 : vector<8x128xf32>
    %73 = arith.mulf %69, %68 : vector<8x128xf32>
    %74 = arith.addf %72, %73 : vector<8x128xf32>
    %75 = math.tanh %74 : vector<8x128xf32>
    %76 = arith.mulf %71, %75 : vector<8x128xf32>
    %77 = vector.extract_strided_slice %32 {offsets = [8, 0], sizes = [8, 512], strides = [1, 1]} : vector<64x512xf32> to vector<8x512xf32>
    %78 = arith.truncf %56 : vector<8x128xf32> to vector<8x128xbf16>
    %cst_32 = arith.constant dense<0.000000e+00> : vector<8x512xf32>
    %79 = tpu.matmul %78, %22, %cst_32 {dimension_numbers = #tpu.dot_dimension_numbers<[1], [0], [0], [1], [0, 0, 1, 1], [], []>} : vector<8x128xbf16>, vector<128x512xbf16>, vector<8x512xf32> -> vector<8x512xf32>
    %80 = arith.addf %77, %79 : vector<8x512xf32>
    %81 = vector.extract_strided_slice %80 {offsets = [0, 0], sizes = [8, 384], strides = [1, 1]} : vector<8x512xf32> to vector<8x384xf32>
    %82 = arith.negf %81 : vector<8x384xf32>
    %83 = math.exp %82 : vector<8x384xf32>
    %cst_33 = arith.constant 1.000000e+00 : f32
    %84 = vector.broadcast %cst_33 : f32 to vector<8x384xf32>
    %85 = arith.addf %84, %83 : vector<8x384xf32>
    %86 = arith.divf %84, %85 : vector<8x384xf32>
    %87 = vector.extract_strided_slice %80 {offsets = [0, 384], sizes = [8, 128], strides = [1, 1]} : vector<8x512xf32> to vector<8x128xf32>
    %88 = math.tanh %87 : vector<8x128xf32>
    %89 = vector.extract_strided_slice %86 {offsets = [0, 0], sizes = [8, 128], strides = [1, 1]} : vector<8x384xf32> to vector<8x128xf32>
    %90 = vector.extract_strided_slice %86 {offsets = [0, 128], sizes = [8, 128], strides = [1, 1]} : vector<8x384xf32> to vector<8x128xf32>
    %91 = vector.extract_strided_slice %86 {offsets = [0, 256], sizes = [8, 128], strides = [1, 1]} : vector<8x384xf32> to vector<8x128xf32>
    %92 = arith.mulf %90, %54 : vector<8x128xf32>
    %93 = arith.mulf %89, %88 : vector<8x128xf32>
    %94 = arith.addf %92, %93 : vector<8x128xf32>
    %95 = math.tanh %94 : vector<8x128xf32>
    %96 = arith.mulf %91, %95 : vector<8x128xf32>
    %97 = tpu.concatenate %96, %76 in 1 : vector<8x128xf32>, vector<8x128xf32> -> vector<8x256xf32>
    %98 = arith.truncf %97 : vector<8x256xf32> to vector<8x256xbf16>
    %cst_34 = arith.constant dense<0.000000e+00> : vector<8x512xf32>
    %99 = tpu.matmul %98, %23, %cst_34 {dimension_numbers = #tpu.dot_dimension_numbers<[1], [0], [0], [1], [0, 0, 1, 1], [], []>} : vector<8x256xbf16>, vector<256x512xbf16>, vector<8x512xf32> -> vector<8x512xf32>
    %100 = arith.addf %99, %27 : vector<8x512xf32>
    %101 = vector.extract_strided_slice %100 {offsets = [0, 0], sizes = [8, 384], strides = [1, 1]} : vector<8x512xf32> to vector<8x384xf32>
    %102 = arith.negf %101 : vector<8x384xf32>
    %103 = math.exp %102 : vector<8x384xf32>
    %cst_35 = arith.constant 1.000000e+00 : f32
    %104 = vector.broadcast %cst_35 : f32 to vector<8x384xf32>
    %105 = arith.addf %104, %103 : vector<8x384xf32>
    %106 = arith.divf %104, %105 : vector<8x384xf32>
    %107 = vector.extract_strided_slice %100 {offsets = [0, 384], sizes = [8, 128], strides = [1, 1]} : vector<8x512xf32> to vector<8x128xf32>
    %108 = math.tanh %107 : vector<8x128xf32>
    %109 = vector.extract_strided_slice %106 {offsets = [0, 0], sizes = [8, 128], strides = [1, 1]} : vector<8x384xf32> to vector<8x128xf32>
    %110 = vector.extract_strided_slice %106 {offsets = [0, 128], sizes = [8, 128], strides = [1, 1]} : vector<8x384xf32> to vector<8x128xf32>
    %111 = vector.extract_strided_slice %106 {offsets = [0, 256], sizes = [8, 128], strides = [1, 1]} : vector<8x384xf32> to vector<8x128xf32>
    %112 = arith.mulf %110, %74 : vector<8x128xf32>
    %113 = arith.mulf %109, %108 : vector<8x128xf32>
    %114 = arith.addf %112, %113 : vector<8x128xf32>
    %115 = math.tanh %114 : vector<8x128xf32>
    %116 = arith.mulf %111, %115 : vector<8x128xf32>
    %117 = vector.extract_strided_slice %32 {offsets = [16, 0], sizes = [8, 512], strides = [1, 1]} : vector<64x512xf32> to vector<8x512xf32>
    %118 = arith.truncf %96 : vector<8x128xf32> to vector<8x128xbf16>
    %cst_36 = arith.constant dense<0.000000e+00> : vector<8x512xf32>
    %119 = tpu.matmul %118, %22, %cst_36 {dimension_numbers = #tpu.dot_dimension_numbers<[1], [0], [0], [1], [0, 0, 1, 1], [], []>} : vector<8x128xbf16>, vector<128x512xbf16>, vector<8x512xf32> -> vector<8x512xf32>
    %120 = arith.addf %117, %119 : vector<8x512xf32>
    %121 = vector.extract_strided_slice %120 {offsets = [0, 0], sizes = [8, 384], strides = [1, 1]} : vector<8x512xf32> to vector<8x384xf32>
    %122 = arith.negf %121 : vector<8x384xf32>
    %123 = math.exp %122 : vector<8x384xf32>
    %cst_37 = arith.constant 1.000000e+00 : f32
    %124 = vector.broadcast %cst_37 : f32 to vector<8x384xf32>
    %125 = arith.addf %124, %123 : vector<8x384xf32>
    %126 = arith.divf %124, %125 : vector<8x384xf32>
    %127 = vector.extract_strided_slice %120 {offsets = [0, 384], sizes = [8, 128], strides = [1, 1]} : vector<8x512xf32> to vector<8x128xf32>
    %128 = math.tanh %127 : vector<8x128xf32>
    %129 = vector.extract_strided_slice %126 {offsets = [0, 0], sizes = [8, 128], strides = [1, 1]} : vector<8x384xf32> to vector<8x128xf32>
    %130 = vector.extract_strided_slice %126 {offsets = [0, 128], sizes = [8, 128], strides = [1, 1]} : vector<8x384xf32> to vector<8x128xf32>
    %131 = vector.extract_strided_slice %126 {offsets = [0, 256], sizes = [8, 128], strides = [1, 1]} : vector<8x384xf32> to vector<8x128xf32>
    %132 = arith.mulf %130, %94 : vector<8x128xf32>
    %133 = arith.mulf %129, %128 : vector<8x128xf32>
    %134 = arith.addf %132, %133 : vector<8x128xf32>
    %135 = math.tanh %134 : vector<8x128xf32>
    %136 = arith.mulf %131, %135 : vector<8x128xf32>
    %137 = tpu.concatenate %136, %116 in 1 : vector<8x128xf32>, vector<8x128xf32> -> vector<8x256xf32>
    %138 = arith.truncf %137 : vector<8x256xf32> to vector<8x256xbf16>
    %cst_38 = arith.constant dense<0.000000e+00> : vector<8x512xf32>
    %139 = tpu.matmul %138, %23, %cst_38 {dimension_numbers = #tpu.dot_dimension_numbers<[1], [0], [0], [1], [0, 0, 1, 1], [], []>} : vector<8x256xbf16>, vector<256x512xbf16>, vector<8x512xf32> -> vector<8x512xf32>
    %140 = arith.addf %139, %27 : vector<8x512xf32>
    %141 = vector.extract_strided_slice %140 {offsets = [0, 0], sizes = [8, 384], strides = [1, 1]} : vector<8x512xf32> to vector<8x384xf32>
    %142 = arith.negf %141 : vector<8x384xf32>
    %143 = math.exp %142 : vector<8x384xf32>
    %cst_39 = arith.constant 1.000000e+00 : f32
    %144 = vector.broadcast %cst_39 : f32 to vector<8x384xf32>
    %145 = arith.addf %144, %143 : vector<8x384xf32>
    %146 = arith.divf %144, %145 : vector<8x384xf32>
    %147 = vector.extract_strided_slice %140 {offsets = [0, 384], sizes = [8, 128], strides = [1, 1]} : vector<8x512xf32> to vector<8x128xf32>
    %148 = math.tanh %147 : vector<8x128xf32>
    %149 = vector.extract_strided_slice %146 {offsets = [0, 0], sizes = [8, 128], strides = [1, 1]} : vector<8x384xf32> to vector<8x128xf32>
    %150 = vector.extract_strided_slice %146 {offsets = [0, 128], sizes = [8, 128], strides = [1, 1]} : vector<8x384xf32> to vector<8x128xf32>
    %151 = vector.extract_strided_slice %146 {offsets = [0, 256], sizes = [8, 128], strides = [1, 1]} : vector<8x384xf32> to vector<8x128xf32>
    %152 = arith.mulf %150, %114 : vector<8x128xf32>
    %153 = arith.mulf %149, %148 : vector<8x128xf32>
    %154 = arith.addf %152, %153 : vector<8x128xf32>
    %155 = math.tanh %154 : vector<8x128xf32>
    %156 = arith.mulf %151, %155 : vector<8x128xf32>
    %157 = vector.extract_strided_slice %32 {offsets = [24, 0], sizes = [8, 512], strides = [1, 1]} : vector<64x512xf32> to vector<8x512xf32>
    %158 = arith.truncf %136 : vector<8x128xf32> to vector<8x128xbf16>
    %cst_40 = arith.constant dense<0.000000e+00> : vector<8x512xf32>
    %159 = tpu.matmul %158, %22, %cst_40 {dimension_numbers = #tpu.dot_dimension_numbers<[1], [0], [0], [1], [0, 0, 1, 1], [], []>} : vector<8x128xbf16>, vector<128x512xbf16>, vector<8x512xf32> -> vector<8x512xf32>
    %160 = arith.addf %157, %159 : vector<8x512xf32>
    %161 = vector.extract_strided_slice %160 {offsets = [0, 0], sizes = [8, 384], strides = [1, 1]} : vector<8x512xf32> to vector<8x384xf32>
    %162 = arith.negf %161 : vector<8x384xf32>
    %163 = math.exp %162 : vector<8x384xf32>
    %cst_41 = arith.constant 1.000000e+00 : f32
    %164 = vector.broadcast %cst_41 : f32 to vector<8x384xf32>
    %165 = arith.addf %164, %163 : vector<8x384xf32>
    %166 = arith.divf %164, %165 : vector<8x384xf32>
    %167 = vector.extract_strided_slice %160 {offsets = [0, 384], sizes = [8, 128], strides = [1, 1]} : vector<8x512xf32> to vector<8x128xf32>
    %168 = math.tanh %167 : vector<8x128xf32>
    %169 = vector.extract_strided_slice %166 {offsets = [0, 0], sizes = [8, 128], strides = [1, 1]} : vector<8x384xf32> to vector<8x128xf32>
    %170 = vector.extract_strided_slice %166 {offsets = [0, 128], sizes = [8, 128], strides = [1, 1]} : vector<8x384xf32> to vector<8x128xf32>
    %171 = vector.extract_strided_slice %166 {offsets = [0, 256], sizes = [8, 128], strides = [1, 1]} : vector<8x384xf32> to vector<8x128xf32>
    %172 = arith.mulf %170, %134 : vector<8x128xf32>
    %173 = arith.mulf %169, %168 : vector<8x128xf32>
    %174 = arith.addf %172, %173 : vector<8x128xf32>
    %175 = math.tanh %174 : vector<8x128xf32>
    %176 = arith.mulf %171, %175 : vector<8x128xf32>
    %177 = tpu.concatenate %176, %156 in 1 : vector<8x128xf32>, vector<8x128xf32> -> vector<8x256xf32>
    %178 = arith.truncf %177 : vector<8x256xf32> to vector<8x256xbf16>
    %cst_42 = arith.constant dense<0.000000e+00> : vector<8x512xf32>
    %179 = tpu.matmul %178, %23, %cst_42 {dimension_numbers = #tpu.dot_dimension_numbers<[1], [0], [0], [1], [0, 0, 1, 1], [], []>} : vector<8x256xbf16>, vector<256x512xbf16>, vector<8x512xf32> -> vector<8x512xf32>
    %180 = arith.addf %179, %27 : vector<8x512xf32>
    %181 = vector.extract_strided_slice %180 {offsets = [0, 0], sizes = [8, 384], strides = [1, 1]} : vector<8x512xf32> to vector<8x384xf32>
    %182 = arith.negf %181 : vector<8x384xf32>
    %183 = math.exp %182 : vector<8x384xf32>
    %cst_43 = arith.constant 1.000000e+00 : f32
    %184 = vector.broadcast %cst_43 : f32 to vector<8x384xf32>
    %185 = arith.addf %184, %183 : vector<8x384xf32>
    %186 = arith.divf %184, %185 : vector<8x384xf32>
    %187 = vector.extract_strided_slice %180 {offsets = [0, 384], sizes = [8, 128], strides = [1, 1]} : vector<8x512xf32> to vector<8x128xf32>
    %188 = math.tanh %187 : vector<8x128xf32>
    %189 = vector.extract_strided_slice %186 {offsets = [0, 0], sizes = [8, 128], strides = [1, 1]} : vector<8x384xf32> to vector<8x128xf32>
    %190 = vector.extract_strided_slice %186 {offsets = [0, 128], sizes = [8, 128], strides = [1, 1]} : vector<8x384xf32> to vector<8x128xf32>
    %191 = vector.extract_strided_slice %186 {offsets = [0, 256], sizes = [8, 128], strides = [1, 1]} : vector<8x384xf32> to vector<8x128xf32>
    %192 = arith.mulf %190, %154 : vector<8x128xf32>
    %193 = arith.mulf %189, %188 : vector<8x128xf32>
    %194 = arith.addf %192, %193 : vector<8x128xf32>
    %195 = math.tanh %194 : vector<8x128xf32>
    %196 = arith.mulf %191, %195 : vector<8x128xf32>
    %197 = vector.extract_strided_slice %32 {offsets = [32, 0], sizes = [8, 512], strides = [1, 1]} : vector<64x512xf32> to vector<8x512xf32>
    %198 = arith.truncf %176 : vector<8x128xf32> to vector<8x128xbf16>
    %cst_44 = arith.constant dense<0.000000e+00> : vector<8x512xf32>
    %199 = tpu.matmul %198, %22, %cst_44 {dimension_numbers = #tpu.dot_dimension_numbers<[1], [0], [0], [1], [0, 0, 1, 1], [], []>} : vector<8x128xbf16>, vector<128x512xbf16>, vector<8x512xf32> -> vector<8x512xf32>
    %200 = arith.addf %197, %199 : vector<8x512xf32>
    %201 = vector.extract_strided_slice %200 {offsets = [0, 0], sizes = [8, 384], strides = [1, 1]} : vector<8x512xf32> to vector<8x384xf32>
    %202 = arith.negf %201 : vector<8x384xf32>
    %203 = math.exp %202 : vector<8x384xf32>
    %cst_45 = arith.constant 1.000000e+00 : f32
    %204 = vector.broadcast %cst_45 : f32 to vector<8x384xf32>
    %205 = arith.addf %204, %203 : vector<8x384xf32>
    %206 = arith.divf %204, %205 : vector<8x384xf32>
    %207 = vector.extract_strided_slice %200 {offsets = [0, 384], sizes = [8, 128], strides = [1, 1]} : vector<8x512xf32> to vector<8x128xf32>
    %208 = math.tanh %207 : vector<8x128xf32>
    %209 = vector.extract_strided_slice %206 {offsets = [0, 0], sizes = [8, 128], strides = [1, 1]} : vector<8x384xf32> to vector<8x128xf32>
    %210 = vector.extract_strided_slice %206 {offsets = [0, 128], sizes = [8, 128], strides = [1, 1]} : vector<8x384xf32> to vector<8x128xf32>
    %211 = vector.extract_strided_slice %206 {offsets = [0, 256], sizes = [8, 128], strides = [1, 1]} : vector<8x384xf32> to vector<8x128xf32>
    %212 = arith.mulf %210, %174 : vector<8x128xf32>
    %213 = arith.mulf %209, %208 : vector<8x128xf32>
    %214 = arith.addf %212, %213 : vector<8x128xf32>
    %215 = math.tanh %214 : vector<8x128xf32>
    %216 = arith.mulf %211, %215 : vector<8x128xf32>
    %217 = tpu.concatenate %216, %196 in 1 : vector<8x128xf32>, vector<8x128xf32> -> vector<8x256xf32>
    %218 = arith.truncf %217 : vector<8x256xf32> to vector<8x256xbf16>
    %cst_46 = arith.constant dense<0.000000e+00> : vector<8x512xf32>
    %219 = tpu.matmul %218, %23, %cst_46 {dimension_numbers = #tpu.dot_dimension_numbers<[1], [0], [0], [1], [0, 0, 1, 1], [], []>} : vector<8x256xbf16>, vector<256x512xbf16>, vector<8x512xf32> -> vector<8x512xf32>
    %220 = arith.addf %219, %27 : vector<8x512xf32>
    %221 = vector.extract_strided_slice %220 {offsets = [0, 0], sizes = [8, 384], strides = [1, 1]} : vector<8x512xf32> to vector<8x384xf32>
    %222 = arith.negf %221 : vector<8x384xf32>
    %223 = math.exp %222 : vector<8x384xf32>
    %cst_47 = arith.constant 1.000000e+00 : f32
    %224 = vector.broadcast %cst_47 : f32 to vector<8x384xf32>
    %225 = arith.addf %224, %223 : vector<8x384xf32>
    %226 = arith.divf %224, %225 : vector<8x384xf32>
    %227 = vector.extract_strided_slice %220 {offsets = [0, 384], sizes = [8, 128], strides = [1, 1]} : vector<8x512xf32> to vector<8x128xf32>
    %228 = math.tanh %227 : vector<8x128xf32>
    %229 = vector.extract_strided_slice %226 {offsets = [0, 0], sizes = [8, 128], strides = [1, 1]} : vector<8x384xf32> to vector<8x128xf32>
    %230 = vector.extract_strided_slice %226 {offsets = [0, 128], sizes = [8, 128], strides = [1, 1]} : vector<8x384xf32> to vector<8x128xf32>
    %231 = vector.extract_strided_slice %226 {offsets = [0, 256], sizes = [8, 128], strides = [1, 1]} : vector<8x384xf32> to vector<8x128xf32>
    %232 = arith.mulf %230, %194 : vector<8x128xf32>
    %233 = arith.mulf %229, %228 : vector<8x128xf32>
    %234 = arith.addf %232, %233 : vector<8x128xf32>
    %235 = math.tanh %234 : vector<8x128xf32>
    %236 = arith.mulf %231, %235 : vector<8x128xf32>
    %237 = vector.extract_strided_slice %32 {offsets = [40, 0], sizes = [8, 512], strides = [1, 1]} : vector<64x512xf32> to vector<8x512xf32>
    %238 = arith.truncf %216 : vector<8x128xf32> to vector<8x128xbf16>
    %cst_48 = arith.constant dense<0.000000e+00> : vector<8x512xf32>
    %239 = tpu.matmul %238, %22, %cst_48 {dimension_numbers = #tpu.dot_dimension_numbers<[1], [0], [0], [1], [0, 0, 1, 1], [], []>} : vector<8x128xbf16>, vector<128x512xbf16>, vector<8x512xf32> -> vector<8x512xf32>
    %240 = arith.addf %237, %239 : vector<8x512xf32>
    %241 = vector.extract_strided_slice %240 {offsets = [0, 0], sizes = [8, 384], strides = [1, 1]} : vector<8x512xf32> to vector<8x384xf32>
    %242 = arith.negf %241 : vector<8x384xf32>
    %243 = math.exp %242 : vector<8x384xf32>
    %cst_49 = arith.constant 1.000000e+00 : f32
    %244 = vector.broadcast %cst_49 : f32 to vector<8x384xf32>
    %245 = arith.addf %244, %243 : vector<8x384xf32>
    %246 = arith.divf %244, %245 : vector<8x384xf32>
    %247 = vector.extract_strided_slice %240 {offsets = [0, 384], sizes = [8, 128], strides = [1, 1]} : vector<8x512xf32> to vector<8x128xf32>
    %248 = math.tanh %247 : vector<8x128xf32>
    %249 = vector.extract_strided_slice %246 {offsets = [0, 0], sizes = [8, 128], strides = [1, 1]} : vector<8x384xf32> to vector<8x128xf32>
    %250 = vector.extract_strided_slice %246 {offsets = [0, 128], sizes = [8, 128], strides = [1, 1]} : vector<8x384xf32> to vector<8x128xf32>
    %251 = vector.extract_strided_slice %246 {offsets = [0, 256], sizes = [8, 128], strides = [1, 1]} : vector<8x384xf32> to vector<8x128xf32>
    %252 = arith.mulf %250, %214 : vector<8x128xf32>
    %253 = arith.mulf %249, %248 : vector<8x128xf32>
    %254 = arith.addf %252, %253 : vector<8x128xf32>
    %255 = math.tanh %254 : vector<8x128xf32>
    %256 = arith.mulf %251, %255 : vector<8x128xf32>
    %257 = tpu.concatenate %256, %236 in 1 : vector<8x128xf32>, vector<8x128xf32> -> vector<8x256xf32>
    %258 = arith.truncf %257 : vector<8x256xf32> to vector<8x256xbf16>
    %cst_50 = arith.constant dense<0.000000e+00> : vector<8x512xf32>
    %259 = tpu.matmul %258, %23, %cst_50 {dimension_numbers = #tpu.dot_dimension_numbers<[1], [0], [0], [1], [0, 0, 1, 1], [], []>} : vector<8x256xbf16>, vector<256x512xbf16>, vector<8x512xf32> -> vector<8x512xf32>
    %260 = arith.addf %259, %27 : vector<8x512xf32>
    %261 = vector.extract_strided_slice %260 {offsets = [0, 0], sizes = [8, 384], strides = [1, 1]} : vector<8x512xf32> to vector<8x384xf32>
    %262 = arith.negf %261 : vector<8x384xf32>
    %263 = math.exp %262 : vector<8x384xf32>
    %cst_51 = arith.constant 1.000000e+00 : f32
    %264 = vector.broadcast %cst_51 : f32 to vector<8x384xf32>
    %265 = arith.addf %264, %263 : vector<8x384xf32>
    %266 = arith.divf %264, %265 : vector<8x384xf32>
    %267 = vector.extract_strided_slice %260 {offsets = [0, 384], sizes = [8, 128], strides = [1, 1]} : vector<8x512xf32> to vector<8x128xf32>
    %268 = math.tanh %267 : vector<8x128xf32>
    %269 = vector.extract_strided_slice %266 {offsets = [0, 0], sizes = [8, 128], strides = [1, 1]} : vector<8x384xf32> to vector<8x128xf32>
    %270 = vector.extract_strided_slice %266 {offsets = [0, 128], sizes = [8, 128], strides = [1, 1]} : vector<8x384xf32> to vector<8x128xf32>
    %271 = vector.extract_strided_slice %266 {offsets = [0, 256], sizes = [8, 128], strides = [1, 1]} : vector<8x384xf32> to vector<8x128xf32>
    %272 = arith.mulf %270, %234 : vector<8x128xf32>
    %273 = arith.mulf %269, %268 : vector<8x128xf32>
    %274 = arith.addf %272, %273 : vector<8x128xf32>
    %275 = math.tanh %274 : vector<8x128xf32>
    %276 = arith.mulf %271, %275 : vector<8x128xf32>
    %277 = vector.extract_strided_slice %32 {offsets = [48, 0], sizes = [8, 512], strides = [1, 1]} : vector<64x512xf32> to vector<8x512xf32>
    %278 = arith.truncf %256 : vector<8x128xf32> to vector<8x128xbf16>
    %cst_52 = arith.constant dense<0.000000e+00> : vector<8x512xf32>
    %279 = tpu.matmul %278, %22, %cst_52 {dimension_numbers = #tpu.dot_dimension_numbers<[1], [0], [0], [1], [0, 0, 1, 1], [], []>} : vector<8x128xbf16>, vector<128x512xbf16>, vector<8x512xf32> -> vector<8x512xf32>
    %280 = arith.addf %277, %279 : vector<8x512xf32>
    %281 = vector.extract_strided_slice %280 {offsets = [0, 0], sizes = [8, 384], strides = [1, 1]} : vector<8x512xf32> to vector<8x384xf32>
    %282 = arith.negf %281 : vector<8x384xf32>
    %283 = math.exp %282 : vector<8x384xf32>
    %cst_53 = arith.constant 1.000000e+00 : f32
    %284 = vector.broadcast %cst_53 : f32 to vector<8x384xf32>
    %285 = arith.addf %284, %283 : vector<8x384xf32>
    %286 = arith.divf %284, %285 : vector<8x384xf32>
    %287 = vector.extract_strided_slice %280 {offsets = [0, 384], sizes = [8, 128], strides = [1, 1]} : vector<8x512xf32> to vector<8x128xf32>
    %288 = math.tanh %287 : vector<8x128xf32>
    %289 = vector.extract_strided_slice %286 {offsets = [0, 0], sizes = [8, 128], strides = [1, 1]} : vector<8x384xf32> to vector<8x128xf32>
    %290 = vector.extract_strided_slice %286 {offsets = [0, 128], sizes = [8, 128], strides = [1, 1]} : vector<8x384xf32> to vector<8x128xf32>
    %291 = vector.extract_strided_slice %286 {offsets = [0, 256], sizes = [8, 128], strides = [1, 1]} : vector<8x384xf32> to vector<8x128xf32>
    %292 = arith.mulf %290, %254 : vector<8x128xf32>
    %293 = arith.mulf %289, %288 : vector<8x128xf32>
    %294 = arith.addf %292, %293 : vector<8x128xf32>
    %295 = math.tanh %294 : vector<8x128xf32>
    %296 = arith.mulf %291, %295 : vector<8x128xf32>
    %297 = tpu.concatenate %296, %276 in 1 : vector<8x128xf32>, vector<8x128xf32> -> vector<8x256xf32>
    %298 = arith.truncf %297 : vector<8x256xf32> to vector<8x256xbf16>
    %cst_54 = arith.constant dense<0.000000e+00> : vector<8x512xf32>
    %299 = tpu.matmul %298, %23, %cst_54 {dimension_numbers = #tpu.dot_dimension_numbers<[1], [0], [0], [1], [0, 0, 1, 1], [], []>} : vector<8x256xbf16>, vector<256x512xbf16>, vector<8x512xf32> -> vector<8x512xf32>
    %300 = arith.addf %299, %27 : vector<8x512xf32>
    %301 = vector.extract_strided_slice %300 {offsets = [0, 0], sizes = [8, 384], strides = [1, 1]} : vector<8x512xf32> to vector<8x384xf32>
    %302 = arith.negf %301 : vector<8x384xf32>
    %303 = math.exp %302 : vector<8x384xf32>
    %cst_55 = arith.constant 1.000000e+00 : f32
    %304 = vector.broadcast %cst_55 : f32 to vector<8x384xf32>
    %305 = arith.addf %304, %303 : vector<8x384xf32>
    %306 = arith.divf %304, %305 : vector<8x384xf32>
    %307 = vector.extract_strided_slice %300 {offsets = [0, 384], sizes = [8, 128], strides = [1, 1]} : vector<8x512xf32> to vector<8x128xf32>
    %308 = math.tanh %307 : vector<8x128xf32>
    %309 = vector.extract_strided_slice %306 {offsets = [0, 0], sizes = [8, 128], strides = [1, 1]} : vector<8x384xf32> to vector<8x128xf32>
    %310 = vector.extract_strided_slice %306 {offsets = [0, 128], sizes = [8, 128], strides = [1, 1]} : vector<8x384xf32> to vector<8x128xf32>
    %311 = vector.extract_strided_slice %306 {offsets = [0, 256], sizes = [8, 128], strides = [1, 1]} : vector<8x384xf32> to vector<8x128xf32>
    %312 = arith.mulf %310, %274 : vector<8x128xf32>
    %313 = arith.mulf %309, %308 : vector<8x128xf32>
    %314 = arith.addf %312, %313 : vector<8x128xf32>
    %315 = math.tanh %314 : vector<8x128xf32>
    %316 = arith.mulf %311, %315 : vector<8x128xf32>
    %317 = vector.extract_strided_slice %32 {offsets = [56, 0], sizes = [8, 512], strides = [1, 1]} : vector<64x512xf32> to vector<8x512xf32>
    %318 = arith.truncf %296 : vector<8x128xf32> to vector<8x128xbf16>
    %cst_56 = arith.constant dense<0.000000e+00> : vector<8x512xf32>
    %319 = tpu.matmul %318, %22, %cst_56 {dimension_numbers = #tpu.dot_dimension_numbers<[1], [0], [0], [1], [0, 0, 1, 1], [], []>} : vector<8x128xbf16>, vector<128x512xbf16>, vector<8x512xf32> -> vector<8x512xf32>
    %320 = arith.addf %317, %319 : vector<8x512xf32>
    %321 = vector.extract_strided_slice %320 {offsets = [0, 0], sizes = [8, 384], strides = [1, 1]} : vector<8x512xf32> to vector<8x384xf32>
    %322 = arith.negf %321 : vector<8x384xf32>
    %323 = math.exp %322 : vector<8x384xf32>
    %cst_57 = arith.constant 1.000000e+00 : f32
    %324 = vector.broadcast %cst_57 : f32 to vector<8x384xf32>
    %325 = arith.addf %324, %323 : vector<8x384xf32>
    %326 = arith.divf %324, %325 : vector<8x384xf32>
    %327 = vector.extract_strided_slice %320 {offsets = [0, 384], sizes = [8, 128], strides = [1, 1]} : vector<8x512xf32> to vector<8x128xf32>
    %328 = math.tanh %327 : vector<8x128xf32>
    %329 = vector.extract_strided_slice %326 {offsets = [0, 0], sizes = [8, 128], strides = [1, 1]} : vector<8x384xf32> to vector<8x128xf32>
    %330 = vector.extract_strided_slice %326 {offsets = [0, 128], sizes = [8, 128], strides = [1, 1]} : vector<8x384xf32> to vector<8x128xf32>
    %331 = vector.extract_strided_slice %326 {offsets = [0, 256], sizes = [8, 128], strides = [1, 1]} : vector<8x384xf32> to vector<8x128xf32>
    %332 = arith.mulf %330, %294 : vector<8x128xf32>
    %333 = arith.mulf %329, %328 : vector<8x128xf32>
    %334 = arith.addf %332, %333 : vector<8x128xf32>
    %335 = math.tanh %334 : vector<8x128xf32>
    %336 = arith.mulf %331, %335 : vector<8x128xf32>
    %337 = tpu.concatenate %336, %316 in 1 : vector<8x128xf32>, vector<8x128xf32> -> vector<8x256xf32>
    %338 = arith.truncf %337 : vector<8x256xf32> to vector<8x256xbf16>
    %cst_58 = arith.constant dense<0.000000e+00> : vector<8x512xf32>
    %339 = tpu.matmul %338, %23, %cst_58 {dimension_numbers = #tpu.dot_dimension_numbers<[1], [0], [0], [1], [0, 0, 1, 1], [], []>} : vector<8x256xbf16>, vector<256x512xbf16>, vector<8x512xf32> -> vector<8x512xf32>
    %340 = arith.addf %339, %27 : vector<8x512xf32>
    %341 = vector.extract_strided_slice %340 {offsets = [0, 0], sizes = [8, 384], strides = [1, 1]} : vector<8x512xf32> to vector<8x384xf32>
    %342 = arith.negf %341 : vector<8x384xf32>
    %343 = math.exp %342 : vector<8x384xf32>
    %cst_59 = arith.constant 1.000000e+00 : f32
    %344 = vector.broadcast %cst_59 : f32 to vector<8x384xf32>
    %345 = arith.addf %344, %343 : vector<8x384xf32>
    %346 = arith.divf %344, %345 : vector<8x384xf32>
    %347 = vector.extract_strided_slice %340 {offsets = [0, 384], sizes = [8, 128], strides = [1, 1]} : vector<8x512xf32> to vector<8x128xf32>
    %348 = math.tanh %347 : vector<8x128xf32>
    %349 = vector.extract_strided_slice %346 {offsets = [0, 0], sizes = [8, 128], strides = [1, 1]} : vector<8x384xf32> to vector<8x128xf32>
    %350 = vector.extract_strided_slice %346 {offsets = [0, 128], sizes = [8, 128], strides = [1, 1]} : vector<8x384xf32> to vector<8x128xf32>
    %351 = vector.extract_strided_slice %346 {offsets = [0, 256], sizes = [8, 128], strides = [1, 1]} : vector<8x384xf32> to vector<8x128xf32>
    %352 = arith.mulf %350, %314 : vector<8x128xf32>
    %353 = arith.mulf %349, %348 : vector<8x128xf32>
    %354 = arith.addf %352, %353 : vector<8x128xf32>
    %355 = math.tanh %354 : vector<8x128xf32>
    %356 = arith.mulf %351, %355 : vector<8x128xf32>
    %c0_60 = arith.constant 0 : index
    %c0_61 = arith.constant 0 : index
    %357 = vector.load %arg6[%c0_60, %c0_61] : memref<8x16xf32, #tpu.memory_space<vmem>>, vector<8x16xf32>
    %c0_62 = arith.constant 0 : index
    %c0_63 = arith.constant 0 : index
    %358 = vector.load %arg3[%c0_62, %c0_63] : memref<16x128xf32, #tpu.memory_space<vmem>>, vector<16x128xf32>
    %359 = arith.truncf %357 : vector<8x16xf32> to vector<8x16xbf16>
    %360 = arith.truncf %358 : vector<16x128xf32> to vector<16x128xbf16>
    %cst_64 = arith.constant dense<0.000000e+00> : vector<8x128xf32>
    %361 = tpu.matmul %359, %360, %cst_64 {dimension_numbers = #tpu.dot_dimension_numbers<[1], [0], [0], [1], [0, 0, 1, 1], [], []>} : vector<8x16xbf16>, vector<16x128xbf16>, vector<8x128xf32> -> vector<8x128xf32>
    %c2_65 = arith.constant 2 : index
    %c0_66 = arith.constant 0 : index
    %c0_67 = arith.constant 0 : index
    %362 = vector.load %arg7[%c2_65, %c0_66, %c0_67] : memref<10x128x128xbf16, #tpu.memory_space<vmem>>, vector<1x128x128xbf16>
    %363 = vector.shape_cast %362 : vector<1x128x128xbf16> to vector<128x128xbf16>
    %364 = arith.truncf %361 : vector<8x128xf32> to vector<8x128xbf16>
    %cst_68 = arith.constant dense<0.000000e+00> : vector<8x128xf32>
    %365 = tpu.matmul %364, %363, %cst_68 {dimension_numbers = #tpu.dot_dimension_numbers<[1], [0], [0], [1], [0, 0, 1, 1], [], []>} : vector<8x128xbf16>, vector<128x128xbf16>, vector<8x128xf32> -> vector<8x128xf32>
    %c4 = arith.constant 4 : index
    %c0_69 = arith.constant 0 : index
    %366 = vector.load %arg9[%c4, %c0_69] : memref<8x512xf32, #tpu.memory_space<vmem>>, vector<1x128xf32>
    %367 = vector.broadcast %366 : vector<1x128xf32> to vector<8x128xf32>
    %368 = arith.addf %365, %367 : vector<8x128xf32>
    %c0_70 = arith.constant 0 : index
    %c0_71 = arith.constant 0 : index
    %369 = vector.load %arg4[%c0_70, %c0_71] : memref<8x128xf32, #tpu.memory_space<vmem>>, vector<8x128xf32>
    %c3_72 = arith.constant 3 : index
    %c0_73 = arith.constant 0 : index
    %c0_74 = arith.constant 0 : index
    %370 = vector.load %arg7[%c3_72, %c0_73, %c0_74] : memref<10x128x128xbf16, #tpu.memory_space<vmem>>, vector<1x128x128xbf16>
    %371 = vector.shape_cast %370 : vector<1x128x128xbf16> to vector<128x128xbf16>
    %372 = arith.truncf %369 : vector<8x128xf32> to vector<8x128xbf16>
    %cst_75 = arith.constant dense<0.000000e+00> : vector<8x128xf32>
    %373 = tpu.matmul %372, %371, %cst_75 {dimension_numbers = #tpu.dot_dimension_numbers<[1], [0], [0], [1], [0, 0, 1, 1], [], []>} : vector<8x128xbf16>, vector<128x128xbf16>, vector<8x128xf32> -> vector<8x128xf32>
    %c5 = arith.constant 5 : index
    %c0_76 = arith.constant 0 : index
    %374 = vector.load %arg9[%c5, %c0_76] : memref<8x512xf32, #tpu.memory_space<vmem>>, vector<1x128xf32>
    %375 = vector.broadcast %374 : vector<1x128xf32> to vector<8x128xf32>
    %376 = arith.addf %373, %375 : vector<8x128xf32>
    %377 = math.tanh %376 : vector<8x128xf32>
    %c4_77 = arith.constant 4 : index
    %c0_78 = arith.constant 0 : index
    %c0_79 = arith.constant 0 : index
    %378 = vector.load %arg7[%c4_77, %c0_78, %c0_79] : memref<10x128x128xbf16, #tpu.memory_space<vmem>>, vector<1x128x128xbf16>
    %379 = vector.shape_cast %378 : vector<1x128x128xbf16> to vector<128x128xbf16>
    %380 = arith.truncf %368 : vector<8x128xf32> to vector<8x128xbf16>
    %cst_80 = arith.constant dense<0.000000e+00> : vector<8x128xf32>
    %381 = tpu.matmul %380, %379, %cst_80 {dimension_numbers = #tpu.dot_dimension_numbers<[1], [0], [0], [1], [0, 0, 1, 1], [], []>} : vector<8x128xbf16>, vector<128x128xbf16>, vector<8x128xf32> -> vector<8x128xf32>
    %c6 = arith.constant 6 : index
    %c0_81 = arith.constant 0 : index
    %382 = vector.load %arg9[%c6, %c0_81] : memref<8x512xf32, #tpu.memory_space<vmem>>, vector<1x128xf32>
    %383 = vector.broadcast %382 : vector<1x128xf32> to vector<8x128xf32>
    %384 = arith.addf %381, %383 : vector<8x128xf32>
    %c5_82 = arith.constant 5 : index
    %c0_83 = arith.constant 0 : index
    %c0_84 = arith.constant 0 : index
    %385 = vector.load %arg7[%c5_82, %c0_83, %c0_84] : memref<10x128x128xbf16, #tpu.memory_space<vmem>>, vector<1x128x128xbf16>
    %386 = vector.shape_cast %385 : vector<1x128x128xbf16> to vector<128x128xbf16>
    %387 = arith.truncf %20 : vector<8x128xf32> to vector<8x128xbf16>
    %cst_85 = arith.constant dense<0.000000e+00> : vector<8x128xf32>
    %388 = tpu.matmul %387, %386, %cst_85 {dimension_numbers = #tpu.dot_dimension_numbers<[1], [0], [0], [1], [0, 0, 1, 1], [], []>} : vector<8x128xbf16>, vector<128x128xbf16>, vector<8x128xf32> -> vector<8x128xf32>
    %c6_86 = arith.constant 6 : index
    %c0_87 = arith.constant 0 : index
    %c0_88 = arith.constant 0 : index
    %389 = vector.load %arg7[%c6_86, %c0_87, %c0_88] : memref<10x128x128xbf16, #tpu.memory_space<vmem>>, vector<1x128x128xbf16>
    %390 = vector.shape_cast %389 : vector<1x128x128xbf16> to vector<128x128xbf16>
    %391 = arith.truncf %356 : vector<8x128xf32> to vector<8x128xbf16>
    %cst_89 = arith.constant dense<0.000000e+00> : vector<8x128xf32>
    %392 = tpu.matmul %391, %390, %cst_89 {dimension_numbers = #tpu.dot_dimension_numbers<[1], [0], [0], [1], [0, 0, 1, 1], [], []>} : vector<8x128xbf16>, vector<128x128xbf16>, vector<8x128xf32> -> vector<8x128xf32>
    %393 = arith.addf %388, %392 : vector<8x128xf32>
    %c7 = arith.constant 7 : index
    %c0_90 = arith.constant 0 : index
    %c0_91 = arith.constant 0 : index
    %394 = vector.load %arg7[%c7, %c0_90, %c0_91] : memref<10x128x128xbf16, #tpu.memory_space<vmem>>, vector<1x128x128xbf16>
    %395 = vector.shape_cast %394 : vector<1x128x128xbf16> to vector<128x128xbf16>
    %396 = arith.truncf %368 : vector<8x128xf32> to vector<8x128xbf16>
    %cst_92 = arith.constant dense<0.000000e+00> : vector<8x128xf32>
    %397 = tpu.matmul %396, %395, %cst_92 {dimension_numbers = #tpu.dot_dimension_numbers<[1], [0], [0], [1], [0, 0, 1, 1], [], []>} : vector<8x128xbf16>, vector<128x128xbf16>, vector<8x128xf32> -> vector<8x128xf32>
    %398 = arith.addf %393, %397 : vector<8x128xf32>
    %c8 = arith.constant 8 : index
    %c0_93 = arith.constant 0 : index
    %c0_94 = arith.constant 0 : index
    %399 = vector.load %arg7[%c8, %c0_93, %c0_94] : memref<10x128x128xbf16, #tpu.memory_space<vmem>>, vector<1x128x128xbf16>
    %400 = vector.shape_cast %399 : vector<1x128x128xbf16> to vector<128x128xbf16>
    %401 = arith.truncf %377 : vector<8x128xf32> to vector<8x128xbf16>
    %cst_95 = arith.constant dense<0.000000e+00> : vector<8x128xf32>
    %402 = tpu.matmul %401, %400, %cst_95 {dimension_numbers = #tpu.dot_dimension_numbers<[1], [0], [0], [1], [0, 0, 1, 1], [], []>} : vector<8x128xbf16>, vector<128x128xbf16>, vector<8x128xf32> -> vector<8x128xf32>
    %403 = arith.addf %398, %402 : vector<8x128xf32>
    %c9 = arith.constant 9 : index
    %c0_96 = arith.constant 0 : index
    %c0_97 = arith.constant 0 : index
    %404 = vector.load %arg7[%c9, %c0_96, %c0_97] : memref<10x128x128xbf16, #tpu.memory_space<vmem>>, vector<1x128x128xbf16>
    %405 = vector.shape_cast %404 : vector<1x128x128xbf16> to vector<128x128xbf16>
    %406 = arith.truncf %384 : vector<8x128xf32> to vector<8x128xbf16>
    %cst_98 = arith.constant dense<0.000000e+00> : vector<8x128xf32>
    %407 = tpu.matmul %406, %405, %cst_98 {dimension_numbers = #tpu.dot_dimension_numbers<[1], [0], [0], [1], [0, 0, 1, 1], [], []>} : vector<8x128xbf16>, vector<128x128xbf16>, vector<8x128xf32> -> vector<8x128xf32>
    %408 = arith.addf %403, %407 : vector<8x128xf32>
    %c7_99 = arith.constant 7 : index
    %c0_100 = arith.constant 0 : index
    %409 = vector.load %arg9[%c7_99, %c0_100] : memref<8x512xf32, #tpu.memory_space<vmem>>, vector<1x128xf32>
    %410 = vector.broadcast %409 : vector<1x128xf32> to vector<8x128xf32>
    %411 = arith.addf %408, %410 : vector<8x128xf32>
    %c0_101 = arith.constant 0 : index
    %c0_102 = arith.constant 0 : index
    %412 = vector.load %arg10[%c0_101, %c0_102] : memref<8x128xf32, #tpu.memory_space<vmem>>, vector<8x128xf32>
    tpu.vector_store %arg10[%c0_101, %c0_102], %411 {strides = array<i32>} : memref<8x128xf32, #tpu.memory_space<vmem>>, vector<8x128xf32>,
    return
  }
  func.func @transform_0(%arg0: i32) -> (i32, i32) {
    %c0_i32 = arith.constant 0 : i32
    %c0_i32_0 = arith.constant 0 : i32
    %c0_i32_1 = arith.constant 0 : i32
    return %c0_i32, %c0_i32_0 : i32, i32
  }
  func.func @transform_1(%arg0: i32) -> (i32, i32) {
    %c0_i32 = arith.constant 0 : i32
    %c0_i32_0 = arith.constant 0 : i32
    %c0_i32_1 = arith.constant 0 : i32
    return %c0_i32, %c0_i32_0 : i32, i32
  }
  func.func @transform_2(%arg0: i32) -> (i32, i32) {
    %c0_i32 = arith.constant 0 : i32
    %c0_i32_0 = arith.constant 0 : i32
    %c0_i32_1 = arith.constant 0 : i32
    return %c0_i32, %c0_i32_0 : i32, i32
  }
  func.func @transform_3(%arg0: i32) -> (i32, i32) {
    %c0_i32 = arith.constant 0 : i32
    %c0_i32_0 = arith.constant 0 : i32
    %c0_i32_1 = arith.constant 0 : i32
    return %c0_i32, %c0_i32_0 : i32, i32
  }
  func.func @transform_4(%arg0: i32) -> (i32, i32) {
    %c0_i32 = arith.constant 0 : i32
    %c0_i32_0 = arith.constant 0 : i32
    %c0_i32_1 = arith.constant 0 : i32
    return %c0_i32, %c0_i32_0 : i32, i32
  }
  func.func @transform_5(%arg0: i32) -> (i32, i32) {
    %c0_i32 = arith.constant 0 : i32
    %c0_i32_0 = arith.constant 0 : i32
    %c0_i32_1 = arith.constant 0 : i32
    return %c0_i32, %c0_i32_0 : i32, i32
  }
  func.func @transform_6(%arg0: i32) -> (i32, i32, i32) {
    %c0_i32 = arith.constant 0 : i32
    %c0_i32_0 = arith.constant 0 : i32
    %c0_i32_1 = arith.constant 0 : i32
    %c0_i32_2 = arith.constant 0 : i32
    return %c0_i32, %c0_i32_0, %c0_i32_1 : i32, i32, i32
  }
  func.func @transform_7(%arg0: i32) -> (i32, i32) {
    %c0_i32 = arith.constant 0 : i32
    %c0_i32_0 = arith.constant 0 : i32
    %c0_i32_1 = arith.constant 0 : i32
    return %c0_i32, %c0_i32_0 : i32, i32
  }
  func.func @transform_8(%arg0: i32) -> (i32, i32) {
    %c0_i32 = arith.constant 0 : i32
    %c0_i32_0 = arith.constant 0 : i32
    %c0_i32_1 = arith.constant 0 : i32
    return %c0_i32, %c0_i32_0 : i32, i32
  }
  func.func @transform_9(%arg0: i32) -> (i32, i32) {
    %c0_i32 = arith.constant 0 : i32
    %c0_i32_0 = arith.constant 0 : i32
    %c0_i32_1 = arith.constant 0 : i32
    return %c0_i32, %c0_i32_0 : i32, i32
  }
}

</mosaic_0001>

<llo_original>
// kernel: multimodal_forward.1
$region0: #{multimodal_forward.1}
  #allocation0 [shape = 'u32[]', space=smem, size = 0x4, offset = 0x4, fixed_abs, tag = 'smem constant byte address 0x4 - core index']
  #allocation1 [shape = 'u32[144,128]{1,0:T(1,128)}', space=vmem, size = 0x12000, scoped, tag = 'internal scratch']
  %s0 = inlined_call_operand.vmem [shape: f32[512,128], index: 0, kind: input, shape index: {}]
  %s1 = inlined_call_operand.vmem [shape: f32[64,128], index: 1, kind: input, shape index: {}]
  %s2 = inlined_call_operand.vmem [shape: f32[16,128], index: 2, kind: input, shape index: {}]
  %s3 = inlined_call_operand.vmem [shape: f32[8,128], index: 3, kind: input, shape index: {}]
  %s4 = inlined_call_operand.vmem [shape: f32[8,512], index: 4, kind: input, shape index: {}]
  %s5 = inlined_call_operand.vmem [shape: f32[8,16], index: 5, kind: input, shape index: {}]
  %s6 = inlined_call_operand.vmem [shape: bf16[10,128,128], index: 6, kind: input, shape index: {}]
  %s7 = inlined_call_operand.vmem [shape: bf16[512,512], index: 7, kind: input, shape index: {}]
  %s8 = inlined_call_operand.vmem [shape: f32[8,512], index: 8, kind: input, shape index: {}]
  %s9 = inlined_call_operand.vmem [shape: f32[8,128], index: 9, kind: output, shape index: {}]
  %s10 = sld [smem:[#allocation0]]
  $region46: #{multimodal_forward.1} parent=0
    _
  %s12 = ssub.s32 1, %s10
  %s13 = scalar_select 0, %s12, %s10
  // Predicated region
  $region2: #{multimodal_forward.1} parent=0 // pred_check
    _
  $region3: #{multimodal_forward.1} parent=0 // pred_check_branch
    %15 = sbr.rel (0) target = $region5
  $region4: #{multimodal_forward.1} parent=0 // pred_region
    _
  $region5: #{multimodal_forward.1} parent=0 // pred_fallthru
    _
  // Predicated region
  $region6: #{multimodal_forward.1} parent=0 // pred_check
    _
  $region7: #{multimodal_forward.1} parent=0 // pred_check_branch
    %17 = sbr.rel (0) target = $region9
  $region8: #{multimodal_forward.1} parent=0 // pred_region
    _
  $region9: #{multimodal_forward.1} parent=0 // pred_fallthru
    _
  // Predicated region
  $region10: #{multimodal_forward.1} parent=0 // pred_check
    _
  $region11: #{multimodal_forward.1} parent=0 // pred_check_branch
    %19 = sbr.rel (0) target = $region13
  $region12: #{multimodal_forward.1} parent=0 // pred_region
    _
  $region13: #{multimodal_forward.1} parent=0 // pred_fallthru
    _
  // Predicated region
  $region14: #{multimodal_forward.1} parent=0 // pred_check
    _
  $region15: #{multimodal_forward.1} parent=0 // pred_check_branch
    %21 = sbr.rel (0) target = $region17
  $region16: #{multimodal_forward.1} parent=0 // pred_region
    _
  $region17: #{multimodal_forward.1} parent=0 // pred_fallthru
    _
  // Predicated region
  $region18: #{multimodal_forward.1} parent=0 // pred_check
    _
  $region19: #{multimodal_forward.1} parent=0 // pred_check_branch
    %23 = sbr.rel (0) target = $region21
  $region20: #{multimodal_forward.1} parent=0 // pred_region
    _
  $region21: #{multimodal_forward.1} parent=0 // pred_fallthru
    _
  // Predicated region
  $region22: #{multimodal_forward.1} parent=0 // pred_check
    _
  $region23: #{multimodal_forward.1} parent=0 // pred_check_branch
    %25 = sbr.rel (0) target = $region25
  $region24: #{multimodal_forward.1} parent=0 // pred_region
    _
  $region25: #{multimodal_forward.1} parent=0 // pred_fallthru
    _
  // Predicated region
  $region26: #{multimodal_forward.1} parent=0 // pred_check
    _
  $region27: #{multimodal_forward.1} parent=0 // pred_check_branch
    %27 = sbr.rel (0) target = $region29
  $region28: #{multimodal_forward.1} parent=0 // pred_region
    _
  $region29: #{multimodal_forward.1} parent=0 // pred_fallthru
    _
  // Predicated region
  $region30: #{multimodal_forward.1} parent=0 // pred_check
    _
  $region31: #{multimodal_forward.1} parent=0 // pred_check_branch
    %29 = sbr.rel (0) target = $region33
  $region32: #{multimodal_forward.1} parent=0 // pred_region
    _
  $region33: #{multimodal_forward.1} parent=0 // pred_fallthru
    _
  // Predicated region
  $region34: #{multimodal_forward.1} parent=0 // pred_check
    _
  $region35: #{multimodal_forward.1} parent=0 // pred_check_branch
    %31 = sbr.rel (0) target = $region37
  $region36: #{multimodal_forward.1} parent=0 // pred_region
    _
  $region37: #{multimodal_forward.1} parent=0 // pred_fallthru
    _
  %v33 = vld [vmem:[%s0] sm:$0xff]
  %v34 = vld [vmem:[%s0 + $0x8] sm:$0xff]
  %v35 = vld [vmem:[%s0 + $0x10] sm:$0xff]
  %v36 = vld [vmem:[%s0 + $0x18] sm:$0xff]
  %v37 = vld [vmem:[%s0 + $0x20] sm:$0xff]
  %v38 = vld [vmem:[%s0 + $0x28] sm:$0xff]
  %v39 = vld [vmem:[%s0 + $0x30] sm:$0xff]
  %v40 = vld [vmem:[%s0 + $0x38] sm:$0xff]
  %v41 = vld [vmem:[%s0 + $0x40] sm:$0xff]
  %v42 = vld [vmem:[%s0 + $0x48] sm:$0xff]
  %v43 = vld [vmem:[%s0 + $0x50] sm:$0xff]
  %v44 = vld [vmem:[%s0 + $0x58] sm:$0xff]
  %v45 = vld [vmem:[%s0 + $0x60] sm:$0xff]
  %v46 = vld [vmem:[%s0 + $0x68] sm:$0xff]
  %v47 = vld [vmem:[%s0 + $0x70] sm:$0xff]
  %v48 = vld [vmem:[%s0 + $0x78] sm:$0xff]
  %v49 = vld [vmem:[%s0 + $0x80] sm:$0xff]
  %v50 = vld [vmem:[%s0 + $0x88] sm:$0xff]
  %v51 = vld [vmem:[%s0 + $0x90] sm:$0xff]
  %v52 = vld [vmem:[%s0 + $0x98] sm:$0xff]
  %v53 = vld [vmem:[%s0 + $0xa0] sm:$0xff]
  %v54 = vld [vmem:[%s0 + $0xa8] sm:$0xff]
  %v55 = vld [vmem:[%s0 + $0xb0] sm:$0xff]
  %v56 = vld [vmem:[%s0 + $0xb8] sm:$0xff]
  %v57 = vld [vmem:[%s0 + $0xc0] sm:$0xff]
  %v58 = vld [vmem:[%s0 + $0xc8] sm:$0xff]
  %v59 = vld [vmem:[%s0 + $0xd0] sm:$0xff]
  %v60 = vld [vmem:[%s0 + $0xd8] sm:$0xff]
  %v61 = vld [vmem:[%s0 + $0xe0] sm:$0xff]
  %v62 = vld [vmem:[%s0 + $0xe8] sm:$0xff]
  %v63 = vld [vmem:[%s0 + $0xf0] sm:$0xff]
  %v64 = vld [vmem:[%s0 + $0xf8] sm:$0xff]
  %v65 = vld [vmem:[%s0 + $0x100] sm:$0xff]
  %v66 = vld [vmem:[%s0 + $0x108] sm:$0xff]
  %v67 = vld [vmem:[%s0 + $0x110] sm:$0xff]
  %v68 = vld [vmem:[%s0 + $0x118] sm:$0xff]
  %v69 = vld [vmem:[%s0 + $0x120] sm:$0xff]
  %v70 = vld [vmem:[%s0 + $0x128] sm:$0xff]
  %v71 = vld [vmem:[%s0 + $0x130] sm:$0xff]
  %v72 = vld [vmem:[%s0 + $0x138] sm:$0xff]
  %v73 = vld [vmem:[%s0 + $0x140] sm:$0xff]
  %v74 = vld [vmem:[%s0 + $0x148] sm:$0xff]
  %v75 = vld [vmem:[%s0 + $0x150] sm:$0xff]
  %v76 = vld [vmem:[%s0 + $0x158] sm:$0xff]
  %v77 = vld [vmem:[%s0 + $0x160] sm:$0xff]
  %v78 = vld [vmem:[%s0 + $0x168] sm:$0xff]
  %v79 = vld [vmem:[%s0 + $0x170] sm:$0xff]
  %v80 = vld [vmem:[%s0 + $0x178] sm:$0xff]
  %v81 = vld [vmem:[%s0 + $0x180] sm:$0xff]
  %v82 = vld [vmem:[%s0 + $0x188] sm:$0xff]
  %v83 = vld [vmem:[%s0 + $0x190] sm:$0xff]
  %v84 = vld [vmem:[%s0 + $0x198] sm:$0xff]
  %v85 = vld [vmem:[%s0 + $0x1a0] sm:$0xff]
  %v86 = vld [vmem:[%s0 + $0x1a8] sm:$0xff]
  %v87 = vld [vmem:[%s0 + $0x1b0] sm:$0xff]
  %v88 = vld [vmem:[%s0 + $0x1b8] sm:$0xff]
  %v89 = vld [vmem:[%s0 + $0x1c0] sm:$0xff]
  %v90 = vld [vmem:[%s0 + $0x1c8] sm:$0xff]
  %v91 = vld [vmem:[%s0 + $0x1d0] sm:$0xff]
  %v92 = vld [vmem:[%s0 + $0x1d8] sm:$0xff]
  %v93 = vld [vmem:[%s0 + $0x1e0] sm:$0xff]
  %v94 = vld [vmem:[%s0 + $0x1e8] sm:$0xff]
  %v95 = vld [vmem:[%s0 + $0x1f0] sm:$0xff]
  %v96 = vld [vmem:[%s0 + $0x1f8] sm:$0xff]
  %v97 = vld [vmem:[%s6] sm:$0xf]
  %v98 = vld [vmem:[%s6 + $0x4] sm:$0xf]
  %v99 = vld [vmem:[%s6 + $0x8] sm:$0xf]
  %v100 = vld [vmem:[%s6 + $0xc] sm:$0xf]
  %v101 = vld [vmem:[%s6 + $0x10] sm:$0xf]
  %v102 = vld [vmem:[%s6 + $0x14] sm:$0xf]
  %v103 = vld [vmem:[%s6 + $0x18] sm:$0xf]
  %v104 = vld [vmem:[%s6 + $0x1c] sm:$0xf]
  %v105 = vld [vmem:[%s6 + $0x20] sm:$0xf]
  %v106 = vld [vmem:[%s6 + $0x24] sm:$0xf]
  %v107 = vld [vmem:[%s6 + $0x28] sm:$0xf]
  %v108 = vld [vmem:[%s6 + $0x2c] sm:$0xf]
  %v109 = vld [vmem:[%s6 + $0x30] sm:$0xf]
  %v110 = vld [vmem:[%s6 + $0x34] sm:$0xf]
  %v111 = vld [vmem:[%s6 + $0x38] sm:$0xf]
  %v112 = vld [vmem:[%s6 + $0x3c] sm:$0xf]
  %v113 = vpack.c.bf16 %v34, %v33
  %v114 = vpack.c.bf16 %v36, %v35
  %v115 = vpack.c.bf16 %v38, %v37
  %v116 = vpack.c.bf16 %v40, %v39
  %v117 = vpack.c.bf16 %v42, %v41
  %v118 = vpack.c.bf16 %v44, %v43
  %v119 = vpack.c.bf16 %v46, %v45
  %v120 = vpack.c.bf16 %v48, %v47
  %v121 = vpack.c.bf16 %v50, %v49
  %v122 = vpack.c.bf16 %v52, %v51
  %v123 = vpack.c.bf16 %v54, %v53
  %v124 = vpack.c.bf16 %v56, %v55
  %v125 = vpack.c.bf16 %v58, %v57
  %v126 = vpack.c.bf16 %v60, %v59
  %v127 = vpack.c.bf16 %v62, %v61
  %v128 = vpack.c.bf16 %v64, %v63
  %v129 = vpack.c.bf16 %v66, %v65
  %v130 = vpack.c.bf16 %v68, %v67
  %v131 = vpack.c.bf16 %v70, %v69
  %v132 = vpack.c.bf16 %v72, %v71
  %v133 = vpack.c.bf16 %v74, %v73
  %v134 = vpack.c.bf16 %v76, %v75
  %v135 = vpack.c.bf16 %v78, %v77
  %v136 = vpack.c.bf16 %v80, %v79
  %v137 = vpack.c.bf16 %v82, %v81
  %v138 = vpack.c.bf16 %v84, %v83
  %v139 = vpack.c.bf16 %v86, %v85
  %v140 = vpack.c.bf16 %v88, %v87
  %v141 = vpack.c.bf16 %v90, %v89
  %v142 = vpack.c.bf16 %v92, %v91
  %v143 = vpack.c.bf16 %v94, %v93
  %v144 = vpack.c.bf16 %v96, %v95
  %v145 = vld [vmem:[%s8 + $0x2] ss:$0 sm:$0xff]
  %v162 = vunpack.c.l.b16 %v97
  %v163 = vunpack.c.l.b16 %v98
  %v164 = vunpack.c.l.b16 %v99
  %v165 = vunpack.c.l.b16 %v100
  %v166 = vunpack.c.l.b16 %v101
  %v167 = vunpack.c.l.b16 %v102
  %v168 = vunpack.c.l.b16 %v103
  %v169 = vunpack.c.l.b16 %v104
  %v170 = vunpack.c.l.b16 %v105
  %v171 = vunpack.c.l.b16 %v106
  %v172 = vunpack.c.l.b16 %v107
  %v173 = vunpack.c.l.b16 %v108
  %v174 = vunpack.c.l.b16 %v109
  %v175 = vunpack.c.l.b16 %v110
  %v176 = vunpack.c.l.b16 %v111
  %v177 = vunpack.c.l.b16 %v112
  %v178 = vpack.c.b16 %v163, %v162
  %v179 = vpack.c.b16 %v165, %v164
  %v180 = vpack.c.b16 %v167, %v166
  %v181 = vpack.c.b16 %v169, %v168
  %v182 = vpack.c.b16 %v171, %v170
  %v183 = vpack.c.b16 %v173, %v172
  %v184 = vpack.c.b16 %v175, %v174
  %v185 = vpack.c.b16 %v177, %v176
  %194 = vmatprep.subr.bf16.mxu0 0
  %195 = vmatpush1.bf16.msra.mxu0 %v178
  %196 = vmatprep.subr.bf16.mxu0 0
  %197 = vmatpush1.bf16.msra.mxu0 %v179
  %198 = vmatprep.subr.bf16.mxu0 0
  %199 = vmatpush1.bf16.msra.mxu0 %v180
  %200 = vmatprep.subr.bf16.mxu0 0
  %201 = vmatpush1.bf16.msra.mxu0 %v181
  %202 = vmatprep.subr.bf16.mxu0 0
  %203 = vmatpush1.bf16.msra.mxu0 %v182
  %204 = vmatprep.subr.bf16.mxu0 0
  %205 = vmatpush1.bf16.msra.mxu0 %v183
  %206 = vmatprep.subr.bf16.mxu0 0
  %207 = vmatpush1.bf16.msra.mxu0 %v184
  %208 = vmatprep.subr.bf16.mxu0 0
  %209 = vmatpush1.bf16.msra.mxu0 %v185
  %210 = vmatprep.subr.bf16.mxu0 0
  %211 = vmatpush1.bf16.msra.mxu0 0
  %212 = vmatprep.subr.bf16.mxu0 0
  %213 = vmatpush1.bf16.msra.mxu0 0
  %214 = vmatprep.subr.bf16.mxu0 0
  %215 = vmatpush1.bf16.msra.mxu0 0
  %216 = vmatprep.subr.bf16.mxu0 0
  %217 = vmatpush1.bf16.msra.mxu0 0
  %218 = vmatprep.subr.bf16.mxu0 0
  %219 = vmatpush1.bf16.msra.mxu0 0
  %220 = vmatprep.subr.bf16.mxu0 0
  %221 = vmatpush1.bf16.msra.mxu0 0
  %222 = vmatprep.subr.bf16.mxu0 0
  %223 = vmatpush1.bf16.msra.mxu0 0
  %224 = vmatprep.subr.bf16.mxu0 0
  %225 = vmatpush1.bf16.msra.mxu0 0
  %226 = vmatprep.mubr.bf16.mxu0 0
  %227 = vmatmul.mubr.bf16.gmra.mrb[0].mxu0 %v113
  %v228 = vpop.f32.mrb[0].mxu0
  %v229 = vadd.f32 %v145, %v228
  %v230 = vpop.f32.mrb[0].mxu0
  %v231 = vpop.f32.mrb[0].mxu0
  %v232 = vadd.f32 %v145, %v231
  %v233 = vpop.f32.mrb[0].mxu0
  %234 = vmatprep.mubr.bf16.mxu0 0
  %235 = vmatmul.mubr.bf16.gmra.mrb[0].mxu0 %v114
  %v236 = vpop.f32.mrb[0].mxu0
  %v237 = vadd.f32 %v145, %v236
  %v238 = vpop.f32.mrb[0].mxu0
  %v239 = vpop.f32.mrb[0].mxu0
  %v240 = vadd.f32 %v145, %v239
  %v241 = vpop.f32.mrb[0].mxu0
  %242 = vmatprep.mubr.bf16.mxu0 0
  %243 = vmatmul.mubr.bf16.gmra.mrb[0].mxu0 %v115
  %v244 = vpop.f32.mrb[0].mxu0
  %v245 = vadd.f32 %v145, %v244
  %v246 = vpop.f32.mrb[0].mxu0
  %v247 = vpop.f32.mrb[0].mxu0
  %v248 = vadd.f32 %v145, %v247
  %v249 = vpop.f32.mrb[0].mxu0
  %250 = vmatprep.mubr.bf16.mxu0 0
  %251 = vmatmul.mubr.bf16.gmra.mrb[0].mxu0 %v116
  %v252 = vpop.f32.mrb[0].mxu0
  %v253 = vadd.f32 %v145, %v252
  %v254 = vpop.f32.mrb[0].mxu0
  %v255 = vpop.f32.mrb[0].mxu0
  %v256 = vadd.f32 %v145, %v255
  %v257 = vpop.f32.mrb[0].mxu0
  %258 = vmatprep.mubr.bf16.mxu0 0
  %259 = vmatmul.mubr.bf16.gmra.mrb[0].mxu0 %v117
  %v260 = vpop.f32.mrb[0].mxu0
  %v261 = vadd.f32 %v145, %v260
  %v262 = vpop.f32.mrb[0].mxu0
  %v263 = vpop.f32.mrb[0].mxu0
  %v264 = vadd.f32 %v145, %v263
  %v265 = vpop.f32.mrb[0].mxu0
  %266 = vmatprep.mubr.bf16.mxu0 0
  %267 = vmatmul.mubr.bf16.gmra.mrb[0].mxu0 %v118
  %v268 = vpop.f32.mrb[0].mxu0
  %v269 = vadd.f32 %v145, %v268
  %v270 = vpop.f32.mrb[0].mxu0
  %v271 = vpop.f32.mrb[0].mxu0
  %v272 = vadd.f32 %v145, %v271
  %v273 = vpop.f32.mrb[0].mxu0
  %274 = vmatprep.mubr.bf16.mxu0 0
  %275 = vmatmul.mubr.bf16.gmra.mrb[0].mxu0 %v119
  %v276 = vpop.f32.mrb[0].mxu0
  %v277 = vadd.f32 %v145, %v276
  %v278 = vpop.f32.mrb[0].mxu0
  %v279 = vpop.f32.mrb[0].mxu0
  %v280 = vadd.f32 %v145, %v279
  %v281 = vpop.f32.mrb[0].mxu0
  %282 = vmatprep.mubr.bf16.mxu0 0
  %283 = vmatmul.mubr.bf16.gmra.mrb[0].mxu0 %v120
  %v284 = vpop.f32.mrb[0].mxu0
  %v285 = vadd.f32 %v145, %v284
  %v286 = vpop.f32.mrb[0].mxu0
  %v287 = vpop.f32.mrb[0].mxu0
  %v288 = vadd.f32 %v145, %v287
  %v289 = vpop.f32.mrb[0].mxu0
  %290 = vmatprep.mubr.bf16.mxu0 0
  %291 = vmatmul.mubr.bf16.gmra.mrb[0].mxu0 %v121
  %v292 = vpop.f32.mrb[0].mxu0
  %v293 = vadd.f32 %v145, %v292
  %v294 = vpop.f32.mrb[0].mxu0
  %v295 = vpop.f32.mrb[0].mxu0
  %v296 = vadd.f32 %v145, %v295
  %v297 = vpop.f32.mrb[0].mxu0
  %298 = vmatprep.mubr.bf16.mxu0 0
  %299 = vmatmul.mubr.bf16.gmra.mrb[0].mxu0 %v122
  %v300 = vpop.f32.mrb[0].mxu0
  %v301 = vadd.f32 %v145, %v300
  %v302 = vpop.f32.mrb[0].mxu0
  %v303 = vpop.f32.mrb[0].mxu0
  %v304 = vadd.f32 %v145, %v303
  %v305 = vpop.f32.mrb[0].mxu0
  %306 = vmatprep.mubr.bf16.mxu0 0
  %307 = vmatmul.mubr.bf16.gmra.mrb[0].mxu0 %v123
  %v308 = vpop.f32.mrb[0].mxu0
  %v309 = vadd.f32 %v145, %v308
  %v310 = vpop.f32.mrb[0].mxu0
  %v311 = vpop.f32.mrb[0].mxu0
  %v312 = vadd.f32 %v145, %v311
  %v313 = vpop.f32.mrb[0].mxu0
  %314 = vmatprep.mubr.bf16.mxu0 0
  %315 = vmatmul.mubr.bf16.gmra.mrb[0].mxu0 %v124
  %v316 = vpop.f32.mrb[0].mxu0
  %v317 = vadd.f32 %v145, %v316
  %v318 = vpop.f32.mrb[0].mxu0
  %v319 = vpop.f32.mrb[0].mxu0
  %v320 = vadd.f32 %v145, %v319
  %v321 = vpop.f32.mrb[0].mxu0
  %322 = vmatprep.mubr.bf16.mxu0 0
  %323 = vmatmul.mubr.bf16.gmra.mrb[0].mxu0 %v125
  %v324 = vpop.f32.mrb[0].mxu0
  %v325 = vadd.f32 %v145, %v324
  %v326 = vpop.f32.mrb[0].mxu0
  %v327 = vpop.f32.mrb[0].mxu0
  %v328 = vadd.f32 %v145, %v327
  %v329 = vpop.f32.mrb[0].mxu0
  %330 = vmatprep.mubr.bf16.mxu0 0
  %331 = vmatmul.mubr.bf16.gmra.mrb[0].mxu0 %v126
  %v332 = vpop.f32.mrb[0].mxu0
  %v333 = vadd.f32 %v145, %v332
  %v334 = vpop.f32.mrb[0].mxu0
  %v335 = vpop.f32.mrb[0].mxu0
  %v336 = vadd.f32 %v145, %v335
  %v337 = vpop.f32.mrb[0].mxu0
  %338 = vmatprep.mubr.bf16.mxu0 0
  %339 = vmatmul.mubr.bf16.gmra.mrb[0].mxu0 %v127
  %v340 = vpop.f32.mrb[0].mxu0
  %v341 = vadd.f32 %v145, %v340
  %v342 = vpop.f32.mrb[0].mxu0
  %v343 = vpop.f32.mrb[0].mxu0
  %v344 = vadd.f32 %v145, %v343
  %v345 = vpop.f32.mrb[0].mxu0
  %346 = vmatprep.mubr.bf16.mxu0 0
  %347 = vmatmul.mubr.bf16.gmra.mrb[0].mxu0 %v128
  %v348 = vpop.f32.mrb[0].mxu0
  %v349 = vadd.f32 %v145, %v348
  %v350 = vpop.f32.mrb[0].mxu0
  %v351 = vpop.f32.mrb[0].mxu0
  %v352 = vadd.f32 %v145, %v351
  %v353 = vpop.f32.mrb[0].mxu0
  %354 = vmatprep.mubr.bf16.mxu0 0
  %355 = vmatmul.mubr.bf16.gmra.mrb[0].mxu0 %v129
  %v356 = vpop.f32.mrb[0].mxu0
  %v357 = vadd.f32 %v145, %v356
  %v358 = vpop.f32.mrb[0].mxu0
  %v359 = vpop.f32.mrb[0].mxu0
  %v360 = vadd.f32 %v145, %v359
  %v361 = vpop.f32.mrb[0].mxu0
  %362 = vmatprep.mubr.bf16.mxu0 0
  %363 = vmatmul.mubr.bf16.gmra.mrb[0].mxu0 %v130
  %v364 = vpop.f32.mrb[0].mxu0
  %v365 = vadd.f32 %v145, %v364
  %v366 = vpop.f32.mrb[0].mxu0
  %v367 = vpop.f32.mrb[0].mxu0
  %v368 = vadd.f32 %v145, %v367
  %v369 = vpop.f32.mrb[0].mxu0
  %370 = vmatprep.mubr.bf16.mxu0 0
  %371 = vmatmul.mubr.bf16.gmra.mrb[0].mxu0 %v131
  %v372 = vpop.f32.mrb[0].mxu0
  %v373 = vadd.f32 %v145, %v372
  %v374 = vpop.f32.mrb[0].mxu0
  %v375 = vpop.f32.mrb[0].mxu0
  %v376 = vadd.f32 %v145, %v375
  %v377 = vpop.f32.mrb[0].mxu0
  %378 = vmatprep.mubr.bf16.mxu0 0
  %379 = vmatmul.mubr.bf16.gmra.mrb[0].mxu0 %v132
  %v380 = vpop.f32.mrb[0].mxu0
  %v381 = vadd.f32 %v145, %v380
  %v382 = vpop.f32.mrb[0].mxu0
  %v383 = vpop.f32.mrb[0].mxu0
  %v384 = vadd.f32 %v145, %v383
  %v385 = vpop.f32.mrb[0].mxu0
  %386 = vmatprep.mubr.bf16.mxu0 0
  %387 = vmatmul.mubr.bf16.gmra.mrb[0].mxu0 %v133
  %v388 = vpop.f32.mrb[0].mxu0
  %v389 = vadd.f32 %v145, %v388
  %v390 = vpop.f32.mrb[0].mxu0
  %v391 = vpop.f32.mrb[0].mxu0
  %v392 = vadd.f32 %v145, %v391
  %v393 = vpop.f32.mrb[0].mxu0
  %394 = vmatprep.mubr.bf16.mxu0 0
  %395 = vmatmul.mubr.bf16.gmra.mrb[0].mxu0 %v134
  %v396 = vpop.f32.mrb[0].mxu0
  %v397 = vadd.f32 %v145, %v396
  %v398 = vpop.f32.mrb[0].mxu0
  %v399 = vpop.f32.mrb[0].mxu0
  %v400 = vadd.f32 %v145, %v399
  %v401 = vpop.f32.mrb[0].mxu0
  %402 = vmatprep.mubr.bf16.mxu0 0
  %403 = vmatmul.mubr.bf16.gmra.mrb[0].mxu0 %v135
  %v404 = vpop.f32.mrb[0].mxu0
  %v405 = vadd.f32 %v145, %v404
  %v406 = vpop.f32.mrb[0].mxu0
  %v407 = vpop.f32.mrb[0].mxu0
  %v408 = vadd.f32 %v145, %v407
  %v409 = vpop.f32.mrb[0].mxu0
  %410 = vmatprep.mubr.bf16.mxu0 0
  %411 = vmatmul.mubr.bf16.gmra.mrb[0].mxu0 %v136
  %v412 = vpop.f32.mrb[0].mxu0
  %v413 = vadd.f32 %v145, %v412
  %v414 = vpop.f32.mrb[0].mxu0
  %v415 = vpop.f32.mrb[0].mxu0
  %v416 = vadd.f32 %v145, %v415
  %v417 = vpop.f32.mrb[0].mxu0
  %418 = vmatprep.mubr.bf16.mxu0 0
  %419 = vmatmul.mubr.bf16.gmra.mrb[0].mxu0 %v137
  %v420 = vpop.f32.mrb[0].mxu0
  %v421 = vadd.f32 %v145, %v420
  %v422 = vpop.f32.mrb[0].mxu0
  %v423 = vpop.f32.mrb[0].mxu0
  %v424 = vadd.f32 %v145, %v423
  %v425 = vpop.f32.mrb[0].mxu0
  %426 = vmatprep.mubr.bf16.mxu0 0
  %427 = vmatmul.mubr.bf16.gmra.mrb[0].mxu0 %v138
  %v428 = vpop.f32.mrb[0].mxu0
  %v429 = vadd.f32 %v145, %v428
  %v430 = vpop.f32.mrb[0].mxu0
  %v431 = vpop.f32.mrb[0].mxu0
  %v432 = vadd.f32 %v145, %v431
  %v433 = vpop.f32.mrb[0].mxu0
  %434 = vmatprep.mubr.bf16.mxu0 0
  %435 = vmatmul.mubr.bf16.gmra.mrb[0].mxu0 %v139
  %v436 = vpop.f32.mrb[0].mxu0
  %v437 = vadd.f32 %v145, %v436
  %v438 = vpop.f32.mrb[0].mxu0
  %v439 = vpop.f32.mrb[0].mxu0
  %v440 = vadd.f32 %v145, %v439
  %v441 = vpop.f32.mrb[0].mxu0
  %442 = vmatprep.mubr.bf16.mxu0 0
  %443 = vmatmul.mubr.bf16.gmra.mrb[0].mxu0 %v140
  %v444 = vpop.f32.mrb[0].mxu0
  %v445 = vadd.f32 %v145, %v444
  %v446 = vpop.f32.mrb[0].mxu0
  %v447 = vpop.f32.mrb[0].mxu0
  %v448 = vadd.f32 %v145, %v447
  %v449 = vpop.f32.mrb[0].mxu0
  %450 = vmatprep.mubr.bf16.mxu0 0
  %451 = vmatmul.mubr.bf16.gmra.mrb[0].mxu0 %v141
  %v452 = vpop.f32.mrb[0].mxu0
  %v453 = vadd.f32 %v145, %v452
  %v454 = vpop.f32.mrb[0].mxu0
  %v455 = vpop.f32.mrb[0].mxu0
  %v456 = vadd.f32 %v145, %v455
  %v457 = vpop.f32.mrb[0].mxu0
  %458 = vmatprep.mubr.bf16.mxu0 0
  %459 = vmatmul.mubr.bf16.gmra.mrb[0].mxu0 %v142
  %v460 = vpop.f32.mrb[0].mxu0
  %v461 = vadd.f32 %v145, %v460
  %v462 = vpop.f32.mrb[0].mxu0
  %v463 = vpop.f32.mrb[0].mxu0
  %v464 = vadd.f32 %v145, %v463
  %v465 = vpop.f32.mrb[0].mxu0
  %466 = vmatprep.mubr.bf16.mxu0 0
  %467 = vmatmul.mubr.bf16.gmra.mrb[0].mxu0 %v143
  %v468 = vpop.f32.mrb[0].mxu0
  %v469 = vadd.f32 %v145, %v468
  %v470 = vpop.f32.mrb[0].mxu0
  %v471 = vpop.f32.mrb[0].mxu0
  %v472 = vadd.f32 %v145, %v471
  %v473 = vpop.f32.mrb[0].mxu0
  %474 = vmatprep.mubr.bf16.mxu0 0
  %475 = vmatmul.mubr.bf16.gmra.mrb[0].mxu0 %v144
  %v476 = vpop.f32.mrb[0].mxu0
  %v477 = vadd.f32 %v145, %v476
  %v478 = vpop.f32.mrb[0].mxu0
  %v479 = vpop.f32.mrb[0].mxu0
  %v480 = vadd.f32 %v145, %v479
  %v481 = vpop.f32.mrb[0].mxu0
  %482 = vdwg.mxu0
  %v483 = vmax.f32 %v229, 0.0
  %v484 = vmax.f32 %v232, 0.0
  %v485 = vmax.f32 %v237, 0.0
  %v486 = vmax.f32 %v240, 0.0
  %v487 = vmax.f32 %v245, 0.0
  %v488 = vmax.f32 %v248, 0.0
  %v489 = vmax.f32 %v253, 0.0
  %v490 = vmax.f32 %v256, 0.0
  %v491 = vmax.f32 %v261, 0.0
  %v492 = vmax.f32 %v264, 0.0
  %v493 = vmax.f32 %v269, 0.0
  %v494 = vmax.f32 %v272, 0.0
  %v495 = vmax.f32 %v277, 0.0
  %v496 = vmax.f32 %v280, 0.0
  %v497 = vmax.f32 %v285, 0.0
  %v498 = vmax.f32 %v288, 0.0
  %v499 = vmax.f32 %v293, 0.0
  %v500 = vmax.f32 %v296, 0.0
  %v501 = vmax.f32 %v301, 0.0
  %v502 = vmax.f32 %v304, 0.0
  %v503 = vmax.f32 %v309, 0.0
  %v504 = vmax.f32 %v312, 0.0
  %v505 = vmax.f32 %v317, 0.0
  %v506 = vmax.f32 %v320, 0.0
  %v507 = vmax.f32 %v325, 0.0
  %v508 = vmax.f32 %v328, 0.0
  %v509 = vmax.f32 %v333, 0.0
  %v510 = vmax.f32 %v336, 0.0
  %v511 = vmax.f32 %v341, 0.0
  %v512 = vmax.f32 %v344, 0.0
  %v513 = vmax.f32 %v349, 0.0
  %v514 = vmax.f32 %v352, 0.0
  %v515 = vmax.f32 %v357, 0.0
  %v516 = vmax.f32 %v360, 0.0
  %v517 = vmax.f32 %v365, 0.0
  %v518 = vmax.f32 %v368, 0.0
  %v519 = vmax.f32 %v373, 0.0
  %v520 = vmax.f32 %v376, 0.0
  %v521 = vmax.f32 %v381, 0.0
  %v522 = vmax.f32 %v384, 0.0
  %v523 = vmax.f32 %v389, 0.0
  %v524 = vmax.f32 %v392, 0.0
  %v525 = vmax.f32 %v397, 0.0
  %v526 = vmax.f32 %v400, 0.0
  %v527 = vmax.f32 %v405, 0.0
  %v528 = vmax.f32 %v408, 0.0
  %v529 = vmax.f32 %v413, 0.0
  %v530 = vmax.f32 %v416, 0.0
  %v531 = vmax.f32 %v421, 0.0
  %v532 = vmax.f32 %v424, 0.0
  %v533 = vmax.f32 %v429, 0.0
  %v534 = vmax.f32 %v432, 0.0
  %v535 = vmax.f32 %v437, 0.0
  %v536 = vmax.f32 %v440, 0.0
  %v537 = vmax.f32 %v445, 0.0
  %v538 = vmax.f32 %v448, 0.0
  %v539 = vmax.f32 %v453, 0.0
  %v540 = vmax.f32 %v456, 0.0
  %v541 = vmax.f32 %v461, 0.0
  %v542 = vmax.f32 %v464, 0.0
  %v543 = vmax.f32 %v469, 0.0
  %v544 = vmax.f32 %v472, 0.0
  %v545 = vmax.f32 %v477, 0.0
  %v546 = vmax.f32 %v480, 0.0
  %v547 = vld [vmem:[%s4] sm:$0xff]
  %v548 = vld [vmem:[%s4 + $0x8] sm:$0xff]
  %v549 = vld [vmem:[%s4 + $0x10] sm:$0xff]
  %v550 = vld [vmem:[%s4 + $0x18] sm:$0xff]
  %v551 = vpack.c.bf16 %v547, %v547
  %v552 = vpack.c.bf16 %v548, %v548
  %v553 = vpack.c.bf16 %v549, %v549
  %v554 = vpack.c.bf16 %v550, %v550
  %v555 = vpack.c.bf16 %v484, %v483
  %v556 = vpack.c.bf16 %v486, %v485
  %v557 = vpack.c.bf16 %v488, %v487
  %v558 = vpack.c.bf16 %v490, %v489
  %v559 = vpack.c.bf16 %v492, %v491
  %v560 = vpack.c.bf16 %v494, %v493
  %v561 = vpack.c.bf16 %v496, %v495
  %v562 = vpack.c.bf16 %v498, %v497
  %v563 = vpack.c.bf16 %v500, %v499
  %v564 = vpack.c.bf16 %v502, %v501
  %v565 = vpack.c.bf16 %v504, %v503
  %v566 = vpack.c.bf16 %v506, %v505
  %v567 = vpack.c.bf16 %v508, %v507
  %v568 = vpack.c.bf16 %v510, %v509
  %v569 = vpack.c.bf16 %v512, %v511
  %v570 = vpack.c.bf16 %v514, %v513
  %v571 = vpack.c.bf16 %v516, %v515
  %v572 = vpack.c.bf16 %v518, %v517
  %v573 = vpack.c.bf16 %v520, %v519
  %v574 = vpack.c.bf16 %v522, %v521
  %v575 = vpack.c.bf16 %v524, %v523
  %v576 = vpack.c.bf16 %v526, %v525
  %v577 = vpack.c.bf16 %v528, %v527
  %v578 = vpack.c.bf16 %v530, %v529
  %v579 = vpack.c.bf16 %v532, %v531
  %v580 = vpack.c.bf16 %v534, %v533
  %v581 = vpack.c.bf16 %v536, %v535
  %v582 = vpack.c.bf16 %v538, %v537
  %v583 = vpack.c.bf16 %v540, %v539
  %v584 = vpack.c.bf16 %v542, %v541
  %v585 = vpack.c.bf16 %v544, %v543
  %v586 = vpack.c.bf16 %v546, %v545
  %587 = vmatprep.subr.bf16.mxu0 0
  %588 = vmatpush1.bf16.msra.mxu0 %v555
  %589 = vmatprep.subr.bf16.mxu0 0
  %590 = vmatpush1.bf16.msra.mxu0 %v556
  %591 = vmatprep.subr.bf16.mxu0 0
  %592 = vmatpush1.bf16.msra.mxu0 %v557
  %593 = vmatprep.subr.bf16.mxu0 0
  %594 = vmatpush1.bf16.msra.mxu0 %v558
  %595 = vmatprep.subr.bf16.mxu0 0
  %596 = vmatpush1.bf16.msra.mxu0 %v559
  %597 = vmatprep.subr.bf16.mxu0 0
  %598 = vmatpush1.bf16.msra.mxu0 %v560
  %599 = vmatprep.subr.bf16.mxu0 0
  %600 = vmatpush1.bf16.msra.mxu0 %v561
  %601 = vmatprep.subr.bf16.mxu0 0
  %602 = vmatpush1.bf16.msra.mxu0 %v562
  %603 = vmatprep.subr.bf16.mxu0 0
  %604 = vmatpush1.bf16.msra.mxu0 %v563
  %605 = vmatprep.subr.bf16.mxu0 0
  %606 = vmatpush1.bf16.msra.mxu0 %v564
  %607 = vmatprep.subr.bf16.mxu0 0
  %608 = vmatpush1.bf16.msra.mxu0 %v565
  %609 = vmatprep.subr.bf16.mxu0 0
  %610 = vmatpush1.bf16.msra.mxu0 %v566
  %611 = vmatprep.subr.bf16.mxu0 0
  %612 = vmatpush1.bf16.msra.mxu0 %v567
  %613 = vmatprep.subr.bf16.mxu0 0
  %614 = vmatpush1.bf16.msra.mxu0 %v568
  %615 = vmatprep.subr.bf16.mxu0 0
  %616 = vmatpush1.bf16.msra.mxu0 %v569
  %617 = vmatprep.subr.bf16.mxu0 0
  %618 = vmatpush1.bf16.msra.mxu0 %v570
  %619 = vmatprep.mubr.bf16.mxu0 %v552
  %620 = vmatmul.mubr.bf16.gmra.mrb[0].mxu0 %v551
  %v621 = vpop.f32.mrb[0].mxu0
  %v622 = vadd.f32 0.0, %v621
  %v623 = vpop.f32.mrb[0].mxu0
  %v624 = vpop.f32.mrb[0].mxu0
  %v625 = vpop.f32.mrb[0].mxu0
  %626 = vdwg.mxu0
  %627 = vmatprep.subr.bf16.mxu0 0
  %628 = vmatpush1.bf16.msra.mxu0 %v571
  %629 = vmatprep.subr.bf16.mxu0 0
  %630 = vmatpush1.bf16.msra.mxu0 %v572
  %631 = vmatprep.subr.bf16.mxu0 0
  %632 = vmatpush1.bf16.msra.mxu0 %v573
  %633 = vmatprep.subr.bf16.mxu0 0
  %634 = vmatpush1.bf16.msra.mxu0 %v574
  %635 = vmatprep.subr.bf16.mxu0 0
  %636 = vmatpush1.bf16.msra.mxu0 %v575
  %637 = vmatprep.subr.bf16.mxu0 0
  %638 = vmatpush1.bf16.msra.mxu0 %v576
  %639 = vmatprep.subr.bf16.mxu0 0
  %640 = vmatpush1.bf16.msra.mxu0 %v577
  %641 = vmatprep.subr.bf16.mxu0 0
  %642 = vmatpush1.bf16.msra.mxu0 %v578
  %643 = vmatprep.subr.bf16.mxu0 0
  %644 = vmatpush1.bf16.msra.mxu0 %v579
  %645 = vmatprep.subr.bf16.mxu0 0
  %646 = vmatpush1.bf16.msra.mxu0 %v580
  %647 = vmatprep.subr.bf16.mxu0 0
  %648 = vmatpush1.bf16.msra.mxu0 %v581
  %649 = vmatprep.subr.bf16.mxu0 0
  %650 = vmatpush1.bf16.msra.mxu0 %v582
  %651 = vmatprep.subr.bf16.mxu0 0
  %652 = vmatpush1.bf16.msra.mxu0 %v583
  %653 = vmatprep.subr.bf16.mxu0 0
  %654 = vmatpush1.bf16.msra.mxu0 %v584
  %655 = vmatprep.subr.bf16.mxu0 0
  %656 = vmatpush1.bf16.msra.mxu0 %v585
  %657 = vmatprep.subr.bf16.mxu0 0
  %658 = vmatpush1.bf16.msra.mxu0 %v586
  %659 = vmatprep.mubr.bf16.mxu0 %v554
  %660 = vmatmul.mubr.bf16.gmra.mrb[0].mxu0 %v553
  %v661 = vpop.f32.mrb[0].mxu0
  %v662 = vadd.f32 %v622, %v661
  %v663 = vpop.f32.mrb[0].mxu0
  %v664 = vpop.f32.mrb[0].mxu0
  %v665 = vpop.f32.mrb[0].mxu0
  %666 = vdwg.mxu0
  %s667 = scalar_lea.vmem %s6, 64
  %v668 = vld [vmem:[%s667] sm:$0xf]
  %v669 = vld [vmem:[%s667 + $0x4] sm:$0xf]
  %v670 = vld [vmem:[%s667 + $0x8] sm:$0xf]
  %v671 = vld [vmem:[%s667 + $0xc] sm:$0xf]
  %v672 = vld [vmem:[%s667 + $0x10] sm:$0xf]
  %v673 = vld [vmem:[%s667 + $0x14] sm:$0xf]
  %v674 = vld [vmem:[%s667 + $0x18] sm:$0xf]
  %v675 = vld [vmem:[%s667 + $0x1c] sm:$0xf]
  %v676 = vld [vmem:[%s667 + $0x20] sm:$0xf]
  %v677 = vld [vmem:[%s667 + $0x24] sm:$0xf]
  %v678 = vld [vmem:[%s667 + $0x28] sm:$0xf]
  %v679 = vld [vmem:[%s667 + $0x2c] sm:$0xf]
  %v680 = vld [vmem:[%s667 + $0x30] sm:$0xf]
  %v681 = vld [vmem:[%s667 + $0x34] sm:$0xf]
  %v682 = vld [vmem:[%s667 + $0x38] sm:$0xf]
  %v683 = vld [vmem:[%s667 + $0x3c] sm:$0xf]
  %v684 = vpack.c.bf16 %v662, %v662
  %v685 = vld [vmem:[%s8 + $0x3] ss:$0 sm:$0xff]
  %v702 = vunpack.c.l.b16 %v668
  %v703 = vunpack.c.l.b16 %v669
  %v704 = vunpack.c.l.b16 %v670
  %v705 = vunpack.c.l.b16 %v671
  %v706 = vunpack.c.l.b16 %v672
  %v707 = vunpack.c.l.b16 %v673
  %v708 = vunpack.c.l.b16 %v674
  %v709 = vunpack.c.l.b16 %v675
  %v710 = vunpack.c.l.b16 %v676
  %v711 = vunpack.c.l.b16 %v677
  %v712 = vunpack.c.l.b16 %v678
  %v713 = vunpack.c.l.b16 %v679
  %v714 = vunpack.c.l.b16 %v680
  %v715 = vunpack.c.l.b16 %v681
  %v716 = vunpack.c.l.b16 %v682
  %v717 = vunpack.c.l.b16 %v683
  %v718 = vpack.c.b16 %v703, %v702
  %v719 = vpack.c.b16 %v705, %v704
  %v720 = vpack.c.b16 %v707, %v706
  %v721 = vpack.c.b16 %v709, %v708
  %v722 = vpack.c.b16 %v711, %v710
  %v723 = vpack.c.b16 %v713, %v712
  %v724 = vpack.c.b16 %v715, %v714
  %v725 = vpack.c.b16 %v717, %v716
  %734 = vmatprep.subr.bf16.mxu0 0
  %735 = vmatpush1.bf16.msra.mxu0 %v718
  %736 = vmatprep.subr.bf16.mxu0 0
  %737 = vmatpush1.bf16.msra.mxu0 %v719
  %738 = vmatprep.subr.bf16.mxu0 0
  %739 = vmatpush1.bf16.msra.mxu0 %v720
  %740 = vmatprep.subr.bf16.mxu0 0
  %741 = vmatpush1.bf16.msra.mxu0 %v721
  %742 = vmatprep.subr.bf16.mxu0 0
  %743 = vmatpush1.bf16.msra.mxu0 %v722
  %744 = vmatprep.subr.bf16.mxu0 0
  %745 = vmatpush1.bf16.msra.mxu0 %v723
  %746 = vmatprep.subr.bf16.mxu0 0
  %747 = vmatpush1.bf16.msra.mxu0 %v724
  %748 = vmatprep.subr.bf16.mxu0 0
  %749 = vmatpush1.bf16.msra.mxu0 %v725
  %750 = vmatprep.subr.bf16.mxu0 0
  %751 = vmatpush1.bf16.msra.mxu0 0
  %752 = vmatprep.subr.bf16.mxu0 0
  %753 = vmatpush1.bf16.msra.mxu0 0
  %754 = vmatprep.subr.bf16.mxu0 0
  %755 = vmatpush1.bf16.msra.mxu0 0
  %756 = vmatprep.subr.bf16.mxu0 0
  %757 = vmatpush1.bf16.msra.mxu0 0
  %758 = vmatprep.subr.bf16.mxu0 0
  %759 = vmatpush1.bf16.msra.mxu0 0
  %760 = vmatprep.subr.bf16.mxu0 0
  %761 = vmatpush1.bf16.msra.mxu0 0
  %762 = vmatprep.subr.bf16.mxu0 0
  %763 = vmatpush1.bf16.msra.mxu0 0
  %764 = vmatprep.subr.bf16.mxu0 0
  %765 = vmatpush1.bf16.msra.mxu0 0
  %766 = vmatprep.mubr.bf16.mxu0 0
  %767 = vmatmul.mubr.bf16.gmra.mrb[0].mxu0 %v684
  %v768 = vpop.f32.mrb[0].mxu0
  %v769 = vadd.f32 %v685, %v768
  %v770 = vpop.f32.mrb[0].mxu0
  %v771 = vpop.f32.mrb[0].mxu0
  %v772 = vpop.f32.mrb[0].mxu0
  %773 = vdwg.mxu0
  %v774 = vld [vmem:[%s7] sm:$0xff]
  %v775 = vld [vmem:[%s7 + $0x8] sm:$0xff]
  %v776 = vld [vmem:[%s7 + $0x10] sm:$0xff]
  %v777 = vld [vmem:[%s7 + $0x18] sm:$0xff]
  %v778 = vld [vmem:[%s7 + $0x20] sm:$0xff]
  %v779 = vld [vmem:[%s7 + $0x28] sm:$0xff]
  %v780 = vld [vmem:[%s7 + $0x30] sm:$0xff]
  %v781 = vld [vmem:[%s7 + $0x38] sm:$0xff]
  %v782 = vld [vmem:[%s7 + $0x40] sm:$0xff]
  %v783 = vld [vmem:[%s7 + $0x48] sm:$0xff]
  %v784 = vld [vmem:[%s7 + $0x50] sm:$0xff]
  %v785 = vld [vmem:[%s7 + $0x58] sm:$0xff]
  %v786 = vld [vmem:[%s7 + $0x60] sm:$0xff]
  %v787 = vld [vmem:[%s7 + $0x68] sm:$0xff]
  %v788 = vld [vmem:[%s7 + $0x70] sm:$0xff]
  %v789 = vld [vmem:[%s7 + $0x78] sm:$0xff]
  %v790 = vld [vmem:[%s7 + $0x80] sm:$0xff]
  %v791 = vld [vmem:[%s7 + $0x88] sm:$0xff]
  %v792 = vld [vmem:[%s7 + $0x90] sm:$0xff]
  %v793 = vld [vmem:[%s7 + $0x98] sm:$0xff]
  %v794 = vld [vmem:[%s7 + $0xa0] sm:$0xff]
  %v795 = vld [vmem:[%s7 + $0xa8] sm:$0xff]
  %v796 = vld [vmem:[%s7 + $0xb0] sm:$0xff]
  %v797 = vld [vmem:[%s7 + $0xb8] sm:$0xff]
  %v798 = vld [vmem:[%s7 + $0xc0] sm:$0xff]
  %v799 = vld [vmem:[%s7 + $0xc8] sm:$0xff]
  %v800 = vld [vmem:[%s7 + $0xd0] sm:$0xff]
  %v801 = vld [vmem:[%s7 + $0xd8] sm:$0xff]
  %v802 = vld [vmem:[%s7 + $0xe0] sm:$0xff]
  %v803 = vld [vmem:[%s7 + $0xe8] sm:$0xff]
  %v804 = vld [vmem:[%s7 + $0xf0] sm:$0xff]
  %v805 = vld [vmem:[%s7 + $0xf8] sm:$0xff]
  %v806 = vld [vmem:[%s7 + $0x100] sm:$0xff]
  %v807 = vld [vmem:[%s7 + $0x108] sm:$0xff]
  %v808 = vld [vmem:[%s7 + $0x110] sm:$0xff]
  %v809 = vld [vmem:[%s7 + $0x118] sm:$0xff]
  %v810 = vld [vmem:[%s7 + $0x120] sm:$0xff]
  %v811 = vld [vmem:[%s7 + $0x128] sm:$0xff]
  %v812 = vld [vmem:[%s7 + $0x130] sm:$0xff]
  %v813 = vld [vmem:[%s7 + $0x138] sm:$0xff]
  %v814 = vld [vmem:[%s7 + $0x140] sm:$0xff]
  %v815 = vld [vmem:[%s7 + $0x148] sm:$0xff]
  %v816 = vld [vmem:[%s7 + $0x150] sm:$0xff]
  %v817 = vld [vmem:[%s7 + $0x158] sm:$0xff]
  %v818 = vld [vmem:[%s7 + $0x160] sm:$0xff]
  %v819 = vld [vmem:[%s7 + $0x168] sm:$0xff]
  %v820 = vld [vmem:[%s7 + $0x170] sm:$0xff]
  %v821 = vld [vmem:[%s7 + $0x178] sm:$0xff]
  %v822 = vld [vmem:[%s7 + $0x180] sm:$0xff]
  %v823 = vld [vmem:[%s7 + $0x188] sm:$0xff]
  %v824 = vld [vmem:[%s7 + $0x190] sm:$0xff]
  %v825 = vld [vmem:[%s7 + $0x198] sm:$0xff]
  %v826 = vld [vmem:[%s7 + $0x1a0] sm:$0xff]
  %v827 = vld [vmem:[%s7 + $0x1a8] sm:$0xff]
  %v828 = vld [vmem:[%s7 + $0x1b0] sm:$0xff]
  %v829 = vld [vmem:[%s7 + $0x1b8] sm:$0xff]
  %v830 = vld [vmem:[%s7 + $0x1c0] sm:$0xff]
  %v831 = vld [vmem:[%s7 + $0x1c8] sm:$0xff]
  %v832 = vld [vmem:[%s7 + $0x1d0] sm:$0xff]
  %v833 = vld [vmem:[%s7 + $0x1d8] sm:$0xff]
  %v834 = vld [vmem:[%s7 + $0x1e0] sm:$0xff]
  %v835 = vld [vmem:[%s7 + $0x1e8] sm:$0xff]
  %v836 = vld [vmem:[%s7 + $0x1f0] sm:$0xff]
  %v837 = vld [vmem:[%s7 + $0x1f8] sm:$0xff]
  %v838 = vld [vmem:[%s7 + $0x200] sm:$0xff]
  %v839 = vld [vmem:[%s7 + $0x208] sm:$0xff]
  %v840 = vld [vmem:[%s7 + $0x210] sm:$0xff]
  %v841 = vld [vmem:[%s7 + $0x218] sm:$0xff]
  %v842 = vld [vmem:[%s7 + $0x220] sm:$0xff]
  %v843 = vld [vmem:[%s7 + $0x228] sm:$0xff]
  %v844 = vld [vmem:[%s7 + $0x230] sm:$0xff]
  %v845 = vld [vmem:[%s7 + $0x238] sm:$0xff]
  %v846 = vld [vmem:[%s7 + $0x240] sm:$0xff]
  %v847 = vld [vmem:[%s7 + $0x248] sm:$0xff]
  %v848 = vld [vmem:[%s7 + $0x250] sm:$0xff]
  %v849 = vld [vmem:[%s7 + $0x258] sm:$0xff]
  %v850 = vld [vmem:[%s7 + $0x260] sm:$0xff]
  %v851 = vld [vmem:[%s7 + $0x268] sm:$0xff]
  %v852 = vld [vmem:[%s7 + $0x270] sm:$0xff]
  %v853 = vld [vmem:[%s7 + $0x278] sm:$0xff]
  %v854 = vld [vmem:[%s7 + $0x280] sm:$0xff]
  %v855 = vld [vmem:[%s7 + $0x288] sm:$0xff]
  %v856 = vld [vmem:[%s7 + $0x290] sm:$0xff]
  %v857 = vld [vmem:[%s7 + $0x298] sm:$0xff]
  %v858 = vld [vmem:[%s7 + $0x2a0] sm:$0xff]
  %v859 = vld [vmem:[%s7 + $0x2a8] sm:$0xff]
  %v860 = vld [vmem:[%s7 + $0x2b0] sm:$0xff]
  %v861 = vld [vmem:[%s7 + $0x2b8] sm:$0xff]
  %v862 = vld [vmem:[%s7 + $0x2c0] sm:$0xff]
  %v863 = vld [vmem:[%s7 + $0x2c8] sm:$0xff]
  %v864 = vld [vmem:[%s7 + $0x2d0] sm:$0xff]
  %v865 = vld [vmem:[%s7 + $0x2d8] sm:$0xff]
  %v866 = vld [vmem:[%s7 + $0x2e0] sm:$0xff]
  %v867 = vld [vmem:[%s7 + $0x2e8] sm:$0xff]
  %v868 = vld [vmem:[%s7 + $0x2f0] sm:$0xff]
  %v869 = vld [vmem:[%s7 + $0x2f8] sm:$0xff]
  %v870 = vld [vmem:[%s7 + $0x300] sm:$0xff]
  %v871 = vld [vmem:[%s7 + $0x308] sm:$0xff]
  %v872 = vld [vmem:[%s7 + $0x310] sm:$0xff]
  %v873 = vld [vmem:[%s7 + $0x318] sm:$0xff]
  %v874 = vld [vmem:[%s7 + $0x320] sm:$0xff]
  %v875 = vld [vmem:[%s7 + $0x328] sm:$0xff]
  %v876 = vld [vmem:[%s7 + $0x330] sm:$0xff]
  %v877 = vld [vmem:[%s7 + $0x338] sm:$0xff]
  %v878 = vld [vmem:[%s7 + $0x340] sm:$0xff]
  %v879 = vld [vmem:[%s7 + $0x348] sm:$0xff]
  %v880 = vld [vmem:[%s7 + $0x350] sm:$0xff]
  %v881 = vld [vmem:[%s7 + $0x358] sm:$0xff]
  %v882 = vld [vmem:[%s7 + $0x360] sm:$0xff]
  %v883 = vld [vmem:[%s7 + $0x368] sm:$0xff]
  %v884 = vld [vmem:[%s7 + $0x370] sm:$0xff]
  %v885 = vld [vmem:[%s7 + $0x378] sm:$0xff]
  %v886 = vld [vmem:[%s7 + $0x380] sm:$0xff]
  %v887 = vld [vmem:[%s7 + $0x388] sm:$0xff]
  %v888 = vld [vmem:[%s7 + $0x390] sm:$0xff]
  %v889 = vld [vmem:[%s7 + $0x398] sm:$0xff]
  %v890 = vld [vmem:[%s7 + $0x3a0] sm:$0xff]
  %v891 = vld [vmem:[%s7 + $0x3a8] sm:$0xff]
  %v892 = vld [vmem:[%s7 + $0x3b0] sm:$0xff]
  %v893 = vld [vmem:[%s7 + $0x3b8] sm:$0xff]
  %v894 = vld [vmem:[%s7 + $0x3c0] sm:$0xff]
  %v895 = vld [vmem:[%s7 + $0x3c8] sm:$0xff]
  %v896 = vld [vmem:[%s7 + $0x3d0] sm:$0xff]
  %v897 = vld [vmem:[%s7 + $0x3d8] sm:$0xff]
  %v898 = vld [vmem:[%s7 + $0x3e0] sm:$0xff]
  %v899 = vld [vmem:[%s7 + $0x3e8] sm:$0xff]
  %v900 = vld [vmem:[%s7 + $0x3f0] sm:$0xff]
  %v901 = vld [vmem:[%s7 + $0x3f8] sm:$0xff]
  %v902 = vld [vmem:[%s8] ss:$8 sm:$0xf]
  %s903 = scalar_lea.vmem %s8, 1
  %v904 = vld [vmem:[%s903] ss:$8 sm:$0xf]
  %v906 = vlaneseq
  %v907 = vshrl.u32 %v906, 7
  %v908 = vsub.s32 0, %v907
  %v909 = vrot.slane %v904, %v908
  %v910 = vlaneseq
  %v911 = vshrl.u32 %v910, 7
  %v912 = vsub.s32 1, %v911
  %v913 = vrot.slane %v904, %v912
  %v914 = vlaneseq
  %v915 = vshrl.u32 %v914, 7
  %v916 = vsub.s32 2, %v915
  %v917 = vrot.slane %v904, %v916
  %v918 = vlaneseq
  %v919 = vshrl.u32 %v918, 7
  %v920 = vsub.s32 3, %v919
  %v921 = vrot.slane %v904, %v920
  %v926 = vld [vmem:[%s1] sm:$0xff]
  %v927 = vld [vmem:[%s1 + $0x8] sm:$0xff]
  %v928 = vld [vmem:[%s1 + $0x10] sm:$0xff]
  %v929 = vld [vmem:[%s1 + $0x18] sm:$0xff]
  %v930 = vld [vmem:[%s1 + $0x20] sm:$0xff]
  %v931 = vld [vmem:[%s1 + $0x28] sm:$0xff]
  %v932 = vld [vmem:[%s1 + $0x30] sm:$0xff]
  %v933 = vld [vmem:[%s1 + $0x38] sm:$0xff]
  %v934 = vpack.c.bf16 %v927, %v926
  %v935 = vpack.c.bf16 %v929, %v928
  %v936 = vpack.c.bf16 %v931, %v930
  %v937 = vpack.c.bf16 %v933, %v932
  %v939 = vlaneseq
  %v940 = vshrl.u32 %v939, 7
  %v941 = vsub.s32 0, %v940
  %v942 = vrot.slane %v902, %v941
  %v943 = vlaneseq
  %v944 = vshrl.u32 %v943, 7
  %v945 = vsub.s32 1, %v944
  %v946 = vrot.slane %v902, %v945
  %v947 = vlaneseq
  %v948 = vshrl.u32 %v947, 7
  %v949 = vsub.s32 2, %v948
  %v950 = vrot.slane %v902, %v949
  %v951 = vlaneseq
  %v952 = vshrl.u32 %v951, 7
  %v953 = vsub.s32 3, %v952
  %v954 = vrot.slane %v902, %v953
  %v991 = vunpack.c.l.b16 %v774
  %v992 = vunpack.c.h.b16 %v774
  %v993 = vunpack.c.l.b16 %v775
  %v994 = vunpack.c.h.b16 %v775
  %v995 = vunpack.c.l.b16 %v776
  %v996 = vunpack.c.h.b16 %v776
  %v997 = vunpack.c.l.b16 %v777
  %v998 = vunpack.c.h.b16 %v777
  %v999 = vunpack.c.l.b16 %v778
  %v1000 = vunpack.c.h.b16 %v778
  %v1001 = vunpack.c.l.b16 %v779
  %v1002 = vunpack.c.h.b16 %v779
  %v1003 = vunpack.c.l.b16 %v780
  %v1004 = vunpack.c.h.b16 %v780
  %v1005 = vunpack.c.l.b16 %v781
  %v1006 = vunpack.c.h.b16 %v781
  %v1007 = vunpack.c.l.b16 %v782
  %v1008 = vunpack.c.h.b16 %v782
  %v1009 = vunpack.c.l.b16 %v783
  %v1010 = vunpack.c.h.b16 %v783
  %v1011 = vunpack.c.l.b16 %v784
  %v1012 = vunpack.c.h.b16 %v784
  %v1013 = vunpack.c.l.b16 %v785
  %v1014 = vunpack.c.h.b16 %v785
  %v1015 = vunpack.c.l.b16 %v786
  %v1016 = vunpack.c.h.b16 %v786
  %v1017 = vunpack.c.l.b16 %v787
  %v1018 = vunpack.c.h.b16 %v787
  %v1019 = vunpack.c.l.b16 %v788
  %v1020 = vunpack.c.h.b16 %v788
  %v1021 = vunpack.c.l.b16 %v789
  %v1022 = vunpack.c.h.b16 %v789
  %v1023 = vunpack.c.l.b16 %v790
  %v1024 = vunpack.c.h.b16 %v790
  %v1025 = vunpack.c.l.b16 %v791
  %v1026 = vunpack.c.h.b16 %v791
  %v1027 = vunpack.c.l.b16 %v792
  %v1028 = vunpack.c.h.b16 %v792
  %v1029 = vunpack.c.l.b16 %v793
  %v1030 = vunpack.c.h.b16 %v793
  %v1031 = vunpack.c.l.b16 %v794
  %v1032 = vunpack.c.h.b16 %v794
  %v1033 = vunpack.c.l.b16 %v795
  %v1034 = vunpack.c.h.b16 %v795
  %v1035 = vunpack.c.l.b16 %v796
  %v1036 = vunpack.c.h.b16 %v796
  %v1037 = vunpack.c.l.b16 %v797
  %v1038 = vunpack.c.h.b16 %v797
  %v1039 = vunpack.c.l.b16 %v798
  %v1040 = vunpack.c.h.b16 %v798
  %v1041 = vunpack.c.l.b16 %v799
  %v1042 = vunpack.c.h.b16 %v799
  %v1043 = vunpack.c.l.b16 %v800
  %v1044 = vunpack.c.h.b16 %v800
  %v1045 = vunpack.c.l.b16 %v801
  %v1046 = vunpack.c.h.b16 %v801
  %v1047 = vunpack.c.l.b16 %v802
  %v1048 = vunpack.c.h.b16 %v802
  %v1049 = vunpack.c.l.b16 %v803
  %v1050 = vunpack.c.h.b16 %v803
  %v1051 = vunpack.c.l.b16 %v804
  %v1052 = vunpack.c.h.b16 %v804
  %v1053 = vunpack.c.l.b16 %v805
  %v1054 = vunpack.c.h.b16 %v805
  %v1055 = vpack.c.b16 %v995, %v991
  %v1056 = vpack.c.b16 %v996, %v992
  %v1057 = vpack.c.b16 %v997, %v993
  %v1058 = vpack.c.b16 %v998, %v994
  %v1059 = vpack.c.b16 %v1003, %v999
  %v1060 = vpack.c.b16 %v1004, %v1000
  %v1061 = vpack.c.b16 %v1005, %v1001
  %v1062 = vpack.c.b16 %v1006, %v1002
  %v1063 = vpack.c.b16 %v1011, %v1007
  %v1064 = vpack.c.b16 %v1012, %v1008
  %v1065 = vpack.c.b16 %v1013, %v1009
  %v1066 = vpack.c.b16 %v1014, %v1010
  %v1067 = vpack.c.b16 %v1019, %v1015
  %v1068 = vpack.c.b16 %v1020, %v1016
  %v1069 = vpack.c.b16 %v1021, %v1017
  %v1070 = vpack.c.b16 %v1022, %v1018
  %v1071 = vpack.c.b16 %v1027, %v1023
  %v1072 = vpack.c.b16 %v1028, %v1024
  %v1073 = vpack.c.b16 %v1029, %v1025
  %v1074 = vpack.c.b16 %v1030, %v1026
  %v1075 = vpack.c.b16 %v1035, %v1031
  %v1076 = vpack.c.b16 %v1036, %v1032
  %v1077 = vpack.c.b16 %v1037, %v1033
  %v1078 = vpack.c.b16 %v1038, %v1034
  %v1079 = vpack.c.b16 %v1043, %v1039
  %v1080 = vpack.c.b16 %v1044, %v1040
  %v1081 = vpack.c.b16 %v1045, %v1041
  %v1082 = vpack.c.b16 %v1046, %v1042
  %v1083 = vpack.c.b16 %v1051, %v1047
  %v1084 = vpack.c.b16 %v1052, %v1048
  %v1085 = vpack.c.b16 %v1053, %v1049
  %v1086 = vpack.c.b16 %v1054, %v1050
  %1119 = vmatprep.subr.bf16.mxu0 %v1056
  %1120 = vmatpush1.bf16.msra.mxu0 %v1055
  %1121 = vmatprep.subr.bf16.mxu0 %v1060
  %1122 = vmatpush1.bf16.msra.mxu0 %v1059
  %1123 = vmatprep.subr.bf16.mxu0 %v1064
  %1124 = vmatpush1.bf16.msra.mxu0 %v1063
  %1125 = vmatprep.subr.bf16.mxu0 %v1068
  %1126 = vmatpush1.bf16.msra.mxu0 %v1067
  %1127 = vmatprep.subr.bf16.mxu0 %v1072
  %1128 = vmatpush1.bf16.msra.mxu0 %v1071
  %1129 = vmatprep.subr.bf16.mxu0 %v1076
  %1130 = vmatpush1.bf16.msra.mxu0 %v1075
  %1131 = vmatprep.subr.bf16.mxu0 %v1080
  %1132 = vmatpush1.bf16.msra.mxu0 %v1079
  %1133 = vmatprep.subr.bf16.mxu0 %v1084
  %1134 = vmatpush1.bf16.msra.mxu0 %v1083
  %1135 = vmatprep.subr.bf16.mxu0 0
  %1136 = vmatpush1.bf16.msra.mxu0 0
  %1137 = vmatprep.subr.bf16.mxu0 0
  %1138 = vmatpush1.bf16.msra.mxu0 0
  %1139 = vmatprep.subr.bf16.mxu0 0
  %1140 = vmatpush1.bf16.msra.mxu0 0
  %1141 = vmatprep.subr.bf16.mxu0 0
  %1142 = vmatpush1.bf16.msra.mxu0 0
  %1143 = vmatprep.subr.bf16.mxu0 0
  %1144 = vmatpush1.bf16.msra.mxu0 0
  %1145 = vmatprep.subr.bf16.mxu0 0
  %1146 = vmatpush1.bf16.msra.mxu0 0
  %1147 = vmatprep.subr.bf16.mxu0 0
  %1148 = vmatpush1.bf16.msra.mxu0 0
  %1149 = vmatprep.subr.bf16.mxu0 0
  %1150 = vmatpush1.bf16.msra.mxu0 0
  %1151 = vmatprep.mubr.bf16.mxu0 0
  %1152 = vmatmul.mubr.bf16.gmra.mrb[0].mxu0 %v934
  %v1153 = vpop.f32.mrb[0].mxu0
  %v1154 = vadd.f32 %v942, %v1153
  %v1155 = vpop.f32.mrb[0].mxu0
  %v1156 = vadd.f32 %v946, %v1155
  %v1157 = vpop.f32.mrb[0].mxu0
  %v1158 = vadd.f32 %v942, %v1157
  %v1159 = vpop.f32.mrb[0].mxu0
  %v1160 = vadd.f32 %v946, %v1159
  %1161 = vmatprep.mubr.bf16.mxu0 0
  %1162 = vmatmul.mubr.bf16.gmra.mrb[0].mxu0 %v935
  %v1163 = vpop.f32.mrb[0].mxu0
  %v1164 = vadd.f32 %v942, %v1163
  %v1165 = vpop.f32.mrb[0].mxu0
  %v1166 = vadd.f32 %v946, %v1165
  %v1167 = vpop.f32.mrb[0].mxu0
  %v1168 = vadd.f32 %v942, %v1167
  %v1169 = vpop.f32.mrb[0].mxu0
  %v1170 = vadd.f32 %v946, %v1169
  %1171 = vmatprep.mubr.bf16.mxu0 0
  %1172 = vmatmul.mubr.bf16.gmra.mrb[0].mxu0 %v936
  %v1173 = vpop.f32.mrb[0].mxu0
  %v1174 = vadd.f32 %v942, %v1173
  %v1175 = vpop.f32.mrb[0].mxu0
  %v1176 = vadd.f32 %v946, %v1175
  %v1177 = vpop.f32.mrb[0].mxu0
  %v1178 = vadd.f32 %v942, %v1177
  %v1179 = vpop.f32.mrb[0].mxu0
  %v1180 = vadd.f32 %v946, %v1179
  %1181 = vmatprep.mubr.bf16.mxu0 0
  %1182 = vmatmul.mubr.bf16.gmra.mrb[0].mxu0 %v937
  %v1183 = vpop.f32.mrb[0].mxu0
  %v1184 = vadd.f32 %v942, %v1183
  %v1185 = vpop.f32.mrb[0].mxu0
  %v1186 = vadd.f32 %v946, %v1185
  %v1187 = vpop.f32.mrb[0].mxu0
  %v1188 = vadd.f32 %v942, %v1187
  %v1189 = vpop.f32.mrb[0].mxu0
  %v1190 = vadd.f32 %v946, %v1189
  %1191 = vdwg.mxu0
  %1192 = vmatprep.subr.bf16.mxu0 %v1058
  %1193 = vmatpush1.bf16.msra.mxu0 %v1057
  %1194 = vmatprep.subr.bf16.mxu0 %v1062
  %1195 = vmatpush1.bf16.msra.mxu0 %v1061
  %1196 = vmatprep.subr.bf16.mxu0 %v1066
  %1197 = vmatpush1.bf16.msra.mxu0 %v1065
  %1198 = vmatprep.subr.bf16.mxu0 %v1070
  %1199 = vmatpush1.bf16.msra.mxu0 %v1069
  %1200 = vmatprep.subr.bf16.mxu0 %v1074
  %1201 = vmatpush1.bf16.msra.mxu0 %v1073
  %1202 = vmatprep.subr.bf16.mxu0 %v1078
  %1203 = vmatpush1.bf16.msra.mxu0 %v1077
  %1204 = vmatprep.subr.bf16.mxu0 %v1082
  %1205 = vmatpush1.bf16.msra.mxu0 %v1081
  %1206 = vmatprep.subr.bf16.mxu0 %v1086
  %1207 = vmatpush1.bf16.msra.mxu0 %v1085
  %1208 = vmatprep.subr.bf16.mxu0 0
  %1209 = vmatpush1.bf16.msra.mxu0 0
  %1210 = vmatprep.subr.bf16.mxu0 0
  %1211 = vmatpush1.bf16.msra.mxu0 0
  %1212 = vmatprep.subr.bf16.mxu0 0
  %1213 = vmatpush1.bf16.msra.mxu0 0
  %1214 = vmatprep.subr.bf16.mxu0 0
  %1215 = vmatpush1.bf16.msra.mxu0 0
  %1216 = vmatprep.subr.bf16.mxu0 0
  %1217 = vmatpush1.bf16.msra.mxu0 0
  %1218 = vmatprep.subr.bf16.mxu0 0
  %1219 = vmatpush1.bf16.msra.mxu0 0
  %1220 = vmatprep.subr.bf16.mxu0 0
  %1221 = vmatpush1.bf16.msra.mxu0 0
  %1222 = vmatprep.subr.bf16.mxu0 0
  %1223 = vmatpush1.bf16.msra.mxu0 0
  %1224 = vmatprep.mubr.bf16.mxu0 0
  %1225 = vmatmul.mubr.bf16.gmra.mrb[0].mxu0 %v934
  %v1226 = vpop.f32.mrb[0].mxu0
  %v1227 = vadd.f32 %v950, %v1226
  %v1228 = vpop.f32.mrb[0].mxu0
  %v1229 = vadd.f32 %v954, %v1228
  %v1230 = vpop.f32.mrb[0].mxu0
  %v1231 = vadd.f32 %v950, %v1230
  %v1232 = vpop.f32.mrb[0].mxu0
  %v1233 = vadd.f32 %v954, %v1232
  %1234 = vmatprep.mubr.bf16.mxu0 0
  %1235 = vmatmul.mubr.bf16.gmra.mrb[0].mxu0 %v935
  %v1236 = vpop.f32.mrb[0].mxu0
  %v1237 = vadd.f32 %v950, %v1236
  %v1238 = vpop.f32.mrb[0].mxu0
  %v1239 = vadd.f32 %v954, %v1238
  %v1240 = vpop.f32.mrb[0].mxu0
  %v1241 = vadd.f32 %v950, %v1240
  %v1242 = vpop.f32.mrb[0].mxu0
  %v1243 = vadd.f32 %v954, %v1242
  %1244 = vmatprep.mubr.bf16.mxu0 0
  %1245 = vmatmul.mubr.bf16.gmra.mrb[0].mxu0 %v936
  %v1246 = vpop.f32.mrb[0].mxu0
  %v1247 = vadd.f32 %v950, %v1246
  %v1248 = vpop.f32.mrb[0].mxu0
  %v1249 = vadd.f32 %v954, %v1248
  %v1250 = vpop.f32.mrb[0].mxu0
  %v1251 = vadd.f32 %v950, %v1250
  %v1252 = vpop.f32.mrb[0].mxu0
  %v1253 = vadd.f32 %v954, %v1252
  %1254 = vmatprep.mubr.bf16.mxu0 0
  %1255 = vmatmul.mubr.bf16.gmra.mrb[0].mxu0 %v937
  %v1256 = vpop.f32.mrb[0].mxu0
  %v1257 = vadd.f32 %v950, %v1256
  %v1258 = vpop.f32.mrb[0].mxu0
  %v1259 = vadd.f32 %v954, %v1258
  %v1260 = vpop.f32.mrb[0].mxu0
  %v1261 = vadd.f32 %v950, %v1260
  %v1262 = vpop.f32.mrb[0].mxu0
  %v1263 = vadd.f32 %v954, %v1262
  %1264 = vdwg.mxu0
  %v1297 = vunpack.c.l.b16 %v806
  %v1298 = vunpack.c.h.b16 %v806
  %v1299 = vunpack.c.l.b16 %v807
  %v1300 = vunpack.c.h.b16 %v807
  %v1301 = vunpack.c.l.b16 %v808
  %v1302 = vunpack.c.h.b16 %v808
  %v1303 = vunpack.c.l.b16 %v809
  %v1304 = vunpack.c.h.b16 %v809
  %v1305 = vunpack.c.l.b16 %v810
  %v1306 = vunpack.c.h.b16 %v810
  %v1307 = vunpack.c.l.b16 %v811
  %v1308 = vunpack.c.h.b16 %v811
  %v1309 = vunpack.c.l.b16 %v812
  %v1310 = vunpack.c.h.b16 %v812
  %v1311 = vunpack.c.l.b16 %v813
  %v1312 = vunpack.c.h.b16 %v813
  %v1313 = vunpack.c.l.b16 %v814
  %v1314 = vunpack.c.h.b16 %v814
  %v1315 = vunpack.c.l.b16 %v815
  %v1316 = vunpack.c.h.b16 %v815
  %v1317 = vunpack.c.l.b16 %v816
  %v1318 = vunpack.c.h.b16 %v816
  %v1319 = vunpack.c.l.b16 %v817
  %v1320 = vunpack.c.h.b16 %v817
  %v1321 = vunpack.c.l.b16 %v818
  %v1322 = vunpack.c.h.b16 %v818
  %v1323 = vunpack.c.l.b16 %v819
  %v1324 = vunpack.c.h.b16 %v819
  %v1325 = vunpack.c.l.b16 %v820
  %v1326 = vunpack.c.h.b16 %v820
  %v1327 = vunpack.c.l.b16 %v821
  %v1328 = vunpack.c.h.b16 %v821
  %v1329 = vunpack.c.l.b16 %v822
  %v1330 = vunpack.c.h.b16 %v822
  %v1331 = vunpack.c.l.b16 %v823
  %v1332 = vunpack.c.h.b16 %v823
  %v1333 = vunpack.c.l.b16 %v824
  %v1334 = vunpack.c.h.b16 %v824
  %v1335 = vunpack.c.l.b16 %v825
  %v1336 = vunpack.c.h.b16 %v825
  %v1337 = vunpack.c.l.b16 %v826
  %v1338 = vunpack.c.h.b16 %v826
  %v1339 = vunpack.c.l.b16 %v827
  %v1340 = vunpack.c.h.b16 %v827
  %v1341 = vunpack.c.l.b16 %v828
  %v1342 = vunpack.c.h.b16 %v828
  %v1343 = vunpack.c.l.b16 %v829
  %v1344 = vunpack.c.h.b16 %v829
  %v1345 = vunpack.c.l.b16 %v830
  %v1346 = vunpack.c.h.b16 %v830
  %v1347 = vunpack.c.l.b16 %v831
  %v1348 = vunpack.c.h.b16 %v831
  %v1349 = vunpack.c.l.b16 %v832
  %v1350 = vunpack.c.h.b16 %v832
  %v1351 = vunpack.c.l.b16 %v833
  %v1352 = vunpack.c.h.b16 %v833
  %v1353 = vunpack.c.l.b16 %v834
  %v1354 = vunpack.c.h.b16 %v834
  %v1355 = vunpack.c.l.b16 %v835
  %v1356 = vunpack.c.h.b16 %v835
  %v1357 = vunpack.c.l.b16 %v836
  %v1358 = vunpack.c.h.b16 %v836
  %v1359 = vunpack.c.l.b16 %v837
  %v1360 = vunpack.c.h.b16 %v837
  %v1361 = vpack.c.b16 %v1301, %v1297
  %v1362 = vpack.c.b16 %v1302, %v1298
  %v1363 = vpack.c.b16 %v1303, %v1299
  %v1364 = vpack.c.b16 %v1304, %v1300
  %v1365 = vpack.c.b16 %v1309, %v1305
  %v1366 = vpack.c.b16 %v1310, %v1306
  %v1367 = vpack.c.b16 %v1311, %v1307
  %v1368 = vpack.c.b16 %v1312, %v1308
  %v1369 = vpack.c.b16 %v1317, %v1313
  %v1370 = vpack.c.b16 %v1318, %v1314
  %v1371 = vpack.c.b16 %v1319, %v1315
  %v1372 = vpack.c.b16 %v1320, %v1316
  %v1373 = vpack.c.b16 %v1325, %v1321
  %v1374 = vpack.c.b16 %v1326, %v1322
  %v1375 = vpack.c.b16 %v1327, %v1323
  %v1376 = vpack.c.b16 %v1328, %v1324
  %v1377 = vpack.c.b16 %v1333, %v1329
  %v1378 = vpack.c.b16 %v1334, %v1330
  %v1379 = vpack.c.b16 %v1335, %v1331
  %v1380 = vpack.c.b16 %v1336, %v1332
  %v1381 = vpack.c.b16 %v1341, %v1337
  %v1382 = vpack.c.b16 %v1342, %v1338
  %v1383 = vpack.c.b16 %v1343, %v1339
  %v1384 = vpack.c.b16 %v1344, %v1340
  %v1385 = vpack.c.b16 %v1349, %v1345
  %v1386 = vpack.c.b16 %v1350, %v1346
  %v1387 = vpack.c.b16 %v1351, %v1347
  %v1388 = vpack.c.b16 %v1352, %v1348
  %v1389 = vpack.c.b16 %v1357, %v1353
  %v1390 = vpack.c.b16 %v1358, %v1354
  %v1391 = vpack.c.b16 %v1359, %v1355
  %v1392 = vpack.c.b16 %v1360, %v1356
  %1425 = vmatprep.subr.bf16.mxu0 %v1362
  %1426 = vmatpush1.bf16.msra.mxu0 %v1361
  %1427 = vmatprep.subr.bf16.mxu0 %v1366
  %1428 = vmatpush1.bf16.msra.mxu0 %v1365
  %1429 = vmatprep.subr.bf16.mxu0 %v1370
  %1430 = vmatpush1.bf16.msra.mxu0 %v1369
  %1431 = vmatprep.subr.bf16.mxu0 %v1374
  %1432 = vmatpush1.bf16.msra.mxu0 %v1373
  %1433 = vmatprep.subr.bf16.mxu0 %v1378
  %1434 = vmatpush1.bf16.msra.mxu0 %v1377
  %1435 = vmatprep.subr.bf16.mxu0 %v1382
  %1436 = vmatpush1.bf16.msra.mxu0 %v1381
  %1437 = vmatprep.subr.bf16.mxu0 %v1386
  %1438 = vmatpush1.bf16.msra.mxu0 %v1385
  %1439 = vmatprep.subr.bf16.mxu0 %v1390
  %1440 = vmatpush1.bf16.msra.mxu0 %v1389
  %1441 = vmatprep.subr.bf16.mxu0 0
  %1442 = vmatpush1.bf16.msra.mxu0 0
  %1443 = vmatprep.subr.bf16.mxu0 0
  %1444 = vmatpush1.bf16.msra.mxu0 0
  %1445 = vmatprep.subr.bf16.mxu0 0
  %1446 = vmatpush1.bf16.msra.mxu0 0
  %1447 = vmatprep.subr.bf16.mxu0 0
  %1448 = vmatpush1.bf16.msra.mxu0 0
  %1449 = vmatprep.subr.bf16.mxu0 0
  %1450 = vmatpush1.bf16.msra.mxu0 0
  %1451 = vmatprep.subr.bf16.mxu0 0
  %1452 = vmatpush1.bf16.msra.mxu0 0
  %1453 = vmatprep.subr.bf16.mxu0 0
  %1454 = vmatpush1.bf16.msra.mxu0 0
  %1455 = vmatprep.subr.bf16.mxu0 0
  %1456 = vmatpush1.bf16.msra.mxu0 0
  %1457 = vmatprep.mubr.bf16.mxu0 0
  %1458 = vmatmul.mubr.bf16.gmra.mrb[0].mxu0 0
  %v1459 = vpop.f32.mrb[0].mxu0
  %v1460 = vadd.f32 0.0, %v1459
  %v1461 = vpop.f32.mrb[0].mxu0
  %v1462 = vadd.f32 0.0, %v1461
  %v1463 = vpop.f32.mrb[0].mxu0
  %v1464 = vpop.f32.mrb[0].mxu0
  %1465 = vdwg.mxu0
  %1466 = vmatprep.subr.bf16.mxu0 %v1364
  %1467 = vmatpush1.bf16.msra.mxu0 %v1363
  %1468 = vmatprep.subr.bf16.mxu0 %v1368
  %1469 = vmatpush1.bf16.msra.mxu0 %v1367
  %1470 = vmatprep.subr.bf16.mxu0 %v1372
  %1471 = vmatpush1.bf16.msra.mxu0 %v1371
  %1472 = vmatprep.subr.bf16.mxu0 %v1376
  %1473 = vmatpush1.bf16.msra.mxu0 %v1375
  %1474 = vmatprep.subr.bf16.mxu0 %v1380
  %1475 = vmatpush1.bf16.msra.mxu0 %v1379
  %1476 = vmatprep.subr.bf16.mxu0 %v1384
  %1477 = vmatpush1.bf16.msra.mxu0 %v1383
  %1478 = vmatprep.subr.bf16.mxu0 %v1388
  %1479 = vmatpush1.bf16.msra.mxu0 %v1387
  %1480 = vmatprep.subr.bf16.mxu0 %v1392
  %1481 = vmatpush1.bf16.msra.mxu0 %v1391
  %1482 = vmatprep.subr.bf16.mxu0 0
  %1483 = vmatpush1.bf16.msra.mxu0 0
  %1484 = vmatprep.subr.bf16.mxu0 0
  %1485 = vmatpush1.bf16.msra.mxu0 0
  %1486 = vmatprep.subr.bf16.mxu0 0
  %1487 = vmatpush1.bf16.msra.mxu0 0
  %1488 = vmatprep.subr.bf16.mxu0 0
  %1489 = vmatpush1.bf16.msra.mxu0 0
  %1490 = vmatprep.subr.bf16.mxu0 0
  %1491 = vmatpush1.bf16.msra.mxu0 0
  %1492 = vmatprep.subr.bf16.mxu0 0
  %1493 = vmatpush1.bf16.msra.mxu0 0
  %1494 = vmatprep.subr.bf16.mxu0 0
  %1495 = vmatpush1.bf16.msra.mxu0 0
  %1496 = vmatprep.subr.bf16.mxu0 0
  %1497 = vmatpush1.bf16.msra.mxu0 0
  %1498 = vmatprep.mubr.bf16.mxu0 0
  %1499 = vmatmul.mubr.bf16.gmra.mrb[0].mxu0 0
  %v1500 = vpop.f32.mrb[0].mxu0
  %v1501 = vadd.f32 0.0, %v1500
  %v1502 = vpop.f32.mrb[0].mxu0
  %v1503 = vadd.f32 0.0, %v1502
  %v1504 = vpop.f32.mrb[0].mxu0
  %v1505 = vpop.f32.mrb[0].mxu0
  %1506 = vdwg.mxu0
  %v1507 = vadd.f32 %v1154, %v1460
  %v1508 = vadd.f32 %v1156, %v1462
  %v1509 = vadd.f32 %v1227, %v1501
  %v1510 = vadd.f32 %v1229, %v1503
  %v1511 = vxor.u32 %v1507, 2147483648
  %v1512 = vxor.u32 %v1508, 2147483648
  %v1513 = vxor.u32 %v1509, 2147483648
  %v1514 = vmul.f32 %v1511, 1.442695
  %v1515 = vpow.pop %v1514
  %v1516 = vmul.f32 %v1512, 1.442695
  %v1517 = vpow.pop %v1516
  %v1518 = vmul.f32 %v1513, 1.442695
  %v1519 = vpow.pop %v1518
  %v1520 = vadd.f32 %v1515, 1.0
  %v1521 = vadd.f32 %v1517, 1.0
  %v1522 = vadd.f32 %v1519, 1.0
  %v1523 = vrcp.pop %v1520
  %v1524 = vmul.f32 1.0, %v1523
  %v1525 = vrcp.pop %v1521
  %v1526 = vmul.f32 1.0, %v1525
  %v1527 = vrcp.pop %v1522
  %v1528 = vmul.f32 1.0, %v1527
  %v1529 = vtanh.pop %v1510
  %v1530 = vmul.f32 %v1526, 0.0
  %v1531 = vmul.f32 %v1524, %v1529
  %v1532 = vadd.f32 %v1530, %v1531
  %v1533 = vtanh.pop %v1532
  %v1534 = vmul.f32 %v1528, %v1533
  %v1535 = vpack.c.bf16 %v1534, %v1534
  %v1536 = vpack.c.bf16 0.0, 0.0
  %v1601 = vunpack.c.l.b16 %v838
  %v1602 = vunpack.c.h.b16 %v838
  %v1603 = vunpack.c.l.b16 %v839
  %v1604 = vunpack.c.h.b16 %v839
  %v1605 = vunpack.c.l.b16 %v840
  %v1606 = vunpack.c.h.b16 %v840
  %v1607 = vunpack.c.l.b16 %v841
  %v1608 = vunpack.c.h.b16 %v841
  %v1609 = vunpack.c.l.b16 %v842
  %v1610 = vunpack.c.h.b16 %v842
  %v1611 = vunpack.c.l.b16 %v843
  %v1612 = vunpack.c.h.b16 %v843
  %v1613 = vunpack.c.l.b16 %v844
  %v1614 = vunpack.c.h.b16 %v844
  %v1615 = vunpack.c.l.b16 %v845
  %v1616 = vunpack.c.h.b16 %v845
  %v1617 = vunpack.c.l.b16 %v846
  %v1618 = vunpack.c.h.b16 %v846
  %v1619 = vunpack.c.l.b16 %v847
  %v1620 = vunpack.c.h.b16 %v847
  %v1621 = vunpack.c.l.b16 %v848
  %v1622 = vunpack.c.h.b16 %v848
  %v1623 = vunpack.c.l.b16 %v849
  %v1624 = vunpack.c.h.b16 %v849
  %v1625 = vunpack.c.l.b16 %v850
  %v1626 = vunpack.c.h.b16 %v850
  %v1627 = vunpack.c.l.b16 %v851
  %v1628 = vunpack.c.h.b16 %v851
  %v1629 = vunpack.c.l.b16 %v852
  %v1630 = vunpack.c.h.b16 %v852
  %v1631 = vunpack.c.l.b16 %v853
  %v1632 = vunpack.c.h.b16 %v853
  %v1633 = vunpack.c.l.b16 %v854
  %v1634 = vunpack.c.h.b16 %v854
  %v1635 = vunpack.c.l.b16 %v855
  %v1636 = vunpack.c.h.b16 %v855
  %v1637 = vunpack.c.l.b16 %v856
  %v1638 = vunpack.c.h.b16 %v856
  %v1639 = vunpack.c.l.b16 %v857
  %v1640 = vunpack.c.h.b16 %v857
  %v1641 = vunpack.c.l.b16 %v858
  %v1642 = vunpack.c.h.b16 %v858
  %v1643 = vunpack.c.l.b16 %v859
  %v1644 = vunpack.c.h.b16 %v859
  %v1645 = vunpack.c.l.b16 %v860
  %v1646 = vunpack.c.h.b16 %v860
  %v1647 = vunpack.c.l.b16 %v861
  %v1648 = vunpack.c.h.b16 %v861
  %v1649 = vunpack.c.l.b16 %v862
  %v1650 = vunpack.c.h.b16 %v862
  %v1651 = vunpack.c.l.b16 %v863
  %v1652 = vunpack.c.h.b16 %v863
  %v1653 = vunpack.c.l.b16 %v864
  %v1654 = vunpack.c.h.b16 %v864
  %v1655 = vunpack.c.l.b16 %v865
  %v1656 = vunpack.c.h.b16 %v865
  %v1657 = vunpack.c.l.b16 %v866
  %v1658 = vunpack.c.h.b16 %v866
  %v1659 = vunpack.c.l.b16 %v867
  %v1660 = vunpack.c.h.b16 %v867
  %v1661 = vunpack.c.l.b16 %v868
  %v1662 = vunpack.c.h.b16 %v868
  %v1663 = vunpack.c.l.b16 %v869
  %v1664 = vunpack.c.h.b16 %v869
  %v1665 = vunpack.c.l.b16 %v870
  %v1666 = vunpack.c.h.b16 %v870
  %v1667 = vunpack.c.l.b16 %v871
  %v1668 = vunpack.c.h.b16 %v871
  %v1669 = vunpack.c.l.b16 %v872
  %v1670 = vunpack.c.h.b16 %v872
  %v1671 = vunpack.c.l.b16 %v873
  %v1672 = vunpack.c.h.b16 %v873
  %v1673 = vunpack.c.l.b16 %v874
  %v1674 = vunpack.c.h.b16 %v874
  %v1675 = vunpack.c.l.b16 %v875
  %v1676 = vunpack.c.h.b16 %v875
  %v1677 = vunpack.c.l.b16 %v876
  %v1678 = vunpack.c.h.b16 %v876
  %v1679 = vunpack.c.l.b16 %v877
  %v1680 = vunpack.c.h.b16 %v877
  %v1681 = vunpack.c.l.b16 %v878
  %v1682 = vunpack.c.h.b16 %v878
  %v1683 = vunpack.c.l.b16 %v879
  %v1684 = vunpack.c.h.b16 %v879
  %v1685 = vunpack.c.l.b16 %v880
  %v1686 = vunpack.c.h.b16 %v880
  %v1687 = vunpack.c.l.b16 %v881
  %v1688 = vunpack.c.h.b16 %v881
  %v1689 = vunpack.c.l.b16 %v882
  %v1690 = vunpack.c.h.b16 %v882
  %v1691 = vunpack.c.l.b16 %v883
  %v1692 = vunpack.c.h.b16 %v883
  %v1693 = vunpack.c.l.b16 %v884
  %v1694 = vunpack.c.h.b16 %v884
  %v1695 = vunpack.c.l.b16 %v885
  %v1696 = vunpack.c.h.b16 %v885
  %v1697 = vunpack.c.l.b16 %v886
  %v1698 = vunpack.c.h.b16 %v886
  %v1699 = vunpack.c.l.b16 %v887
  %v1700 = vunpack.c.h.b16 %v887
  %v1701 = vunpack.c.l.b16 %v888
  %v1702 = vunpack.c.h.b16 %v888
  %v1703 = vunpack.c.l.b16 %v889
  %v1704 = vunpack.c.h.b16 %v889
  %v1705 = vunpack.c.l.b16 %v890
  %v1706 = vunpack.c.h.b16 %v890
  %v1707 = vunpack.c.l.b16 %v891
  %v1708 = vunpack.c.h.b16 %v891
  %v1709 = vunpack.c.l.b16 %v892
  %v1710 = vunpack.c.h.b16 %v892
  %v1711 = vunpack.c.l.b16 %v893
  %v1712 = vunpack.c.h.b16 %v893
  %v1713 = vunpack.c.l.b16 %v894
  %v1714 = vunpack.c.h.b16 %v894
  %v1715 = vunpack.c.l.b16 %v895
  %v1716 = vunpack.c.h.b16 %v895
  %v1717 = vunpack.c.l.b16 %v896
  %v1718 = vunpack.c.h.b16 %v896
  %v1719 = vunpack.c.l.b16 %v897
  %v1720 = vunpack.c.h.b16 %v897
  %v1721 = vunpack.c.l.b16 %v898
  %v1722 = vunpack.c.h.b16 %v898
  %v1723 = vunpack.c.l.b16 %v899
  %v1724 = vunpack.c.h.b16 %v899
  %v1725 = vunpack.c.l.b16 %v900
  %v1726 = vunpack.c.h.b16 %v900
  %v1727 = vunpack.c.l.b16 %v901
  %v1728 = vunpack.c.h.b16 %v901
  %v1729 = vpack.c.b16 %v1605, %v1601
  %v1730 = vpack.c.b16 %v1606, %v1602
  %v1731 = vpack.c.b16 %v1607, %v1603
  %v1732 = vpack.c.b16 %v1608, %v1604
  %v1733 = vpack.c.b16 %v1613, %v1609
  %v1734 = vpack.c.b16 %v1614, %v1610
  %v1735 = vpack.c.b16 %v1615, %v1611
  %v1736 = vpack.c.b16 %v1616, %v1612
  %v1737 = vpack.c.b16 %v1621, %v1617
  %v1738 = vpack.c.b16 %v1622, %v1618
  %v1739 = vpack.c.b16 %v1623, %v1619
  %v1740 = vpack.c.b16 %v1624, %v1620
  %v1741 = vpack.c.b16 %v1629, %v1625
  %v1742 = vpack.c.b16 %v1630, %v1626
  %v1743 = vpack.c.b16 %v1631, %v1627
  %v1744 = vpack.c.b16 %v1632, %v1628
  %v1745 = vpack.c.b16 %v1637, %v1633
  %v1746 = vpack.c.b16 %v1638, %v1634
  %v1747 = vpack.c.b16 %v1639, %v1635
  %v1748 = vpack.c.b16 %v1640, %v1636
  %v1749 = vpack.c.b16 %v1645, %v1641
  %v1750 = vpack.c.b16 %v1646, %v1642
  %v1751 = vpack.c.b16 %v1647, %v1643
  %v1752 = vpack.c.b16 %v1648, %v1644
  %v1753 = vpack.c.b16 %v1653, %v1649
  %v1754 = vpack.c.b16 %v1654, %v1650
  %v1755 = vpack.c.b16 %v1655, %v1651
  %v1756 = vpack.c.b16 %v1656, %v1652
  %v1757 = vpack.c.b16 %v1661, %v1657
  %v1758 = vpack.c.b16 %v1662, %v1658
  %v1759 = vpack.c.b16 %v1663, %v1659
  %v1760 = vpack.c.b16 %v1664, %v1660
  %v1761 = vpack.c.b16 %v1669, %v1665
  %v1762 = vpack.c.b16 %v1670, %v1666
  %v1763 = vpack.c.b16 %v1671, %v1667
  %v1764 = vpack.c.b16 %v1672, %v1668
  %v1765 = vpack.c.b16 %v1677, %v1673
  %v1766 = vpack.c.b16 %v1678, %v1674
  %v1767 = vpack.c.b16 %v1679, %v1675
  %v1768 = vpack.c.b16 %v1680, %v1676
  %v1769 = vpack.c.b16 %v1685, %v1681
  %v1770 = vpack.c.b16 %v1686, %v1682
  %v1771 = vpack.c.b16 %v1687, %v1683
  %v1772 = vpack.c.b16 %v1688, %v1684
  %v1773 = vpack.c.b16 %v1693, %v1689
  %v1774 = vpack.c.b16 %v1694, %v1690
  %v1775 = vpack.c.b16 %v1695, %v1691
  %v1776 = vpack.c.b16 %v1696, %v1692
  %v1777 = vpack.c.b16 %v1701, %v1697
  %v1778 = vpack.c.b16 %v1702, %v1698
  %v1779 = vpack.c.b16 %v1703, %v1699
  %v1780 = vpack.c.b16 %v1704, %v1700
  %v1781 = vpack.c.b16 %v1709, %v1705
  %v1782 = vpack.c.b16 %v1710, %v1706
  %v1783 = vpack.c.b16 %v1711, %v1707
  %v1784 = vpack.c.b16 %v1712, %v1708
  %v1785 = vpack.c.b16 %v1717, %v1713
  %v1786 = vpack.c.b16 %v1718, %v1714
  %v1787 = vpack.c.b16 %v1719, %v1715
  %v1788 = vpack.c.b16 %v1720, %v1716
  %v1789 = vpack.c.b16 %v1725, %v1721
  %v1790 = vpack.c.b16 %v1726, %v1722
  %v1791 = vpack.c.b16 %v1727, %v1723
  %v1792 = vpack.c.b16 %v1728, %v1724
  %1857 = vmatprep.subr.bf16.mxu0 %v1730
  %1858 = vmatpush1.bf16.msra.mxu0 %v1729
  %1859 = vmatprep.subr.bf16.mxu0 %v1734
  %1860 = vmatpush1.bf16.msra.mxu0 %v1733
  %1861 = vmatprep.subr.bf16.mxu0 %v1738
  %1862 = vmatpush1.bf16.msra.mxu0 %v1737
  %1863 = vmatprep.subr.bf16.mxu0 %v1742
  %1864 = vmatpush1.bf16.msra.mxu0 %v1741
  %1865 = vmatprep.subr.bf16.mxu0 %v1746
  %1866 = vmatpush1.bf16.msra.mxu0 %v1745
  %1867 = vmatprep.subr.bf16.mxu0 %v1750
  %1868 = vmatpush1.bf16.msra.mxu0 %v1749
  %1869 = vmatprep.subr.bf16.mxu0 %v1754
  %1870 = vmatpush1.bf16.msra.mxu0 %v1753
  %1871 = vmatprep.subr.bf16.mxu0 %v1758
  %1872 = vmatpush1.bf16.msra.mxu0 %v1757
  %1873 = vmatprep.subr.bf16.mxu0 %v1762
  %1874 = vmatpush1.bf16.msra.mxu0 %v1761
  %1875 = vmatprep.subr.bf16.mxu0 %v1766
  %1876 = vmatpush1.bf16.msra.mxu0 %v1765
  %1877 = vmatprep.subr.bf16.mxu0 %v1770
  %1878 = vmatpush1.bf16.msra.mxu0 %v1769
  %1879 = vmatprep.subr.bf16.mxu0 %v1774
  %1880 = vmatpush1.bf16.msra.mxu0 %v1773
  %1881 = vmatprep.subr.bf16.mxu0 %v1778
  %1882 = vmatpush1.bf16.msra.mxu0 %v1777
  %1883 = vmatprep.subr.bf16.mxu0 %v1782
  %1884 = vmatpush1.bf16.msra.mxu0 %v1781
  %1885 = vmatprep.subr.bf16.mxu0 %v1786
  %1886 = vmatpush1.bf16.msra.mxu0 %v1785
  %1887 = vmatprep.subr.bf16.mxu0 %v1790
  %1888 = vmatpush1.bf16.msra.mxu0 %v1789
  %1889 = vmatprep.mubr.bf16.mxu0 %v1536
  %1890 = vmatmul.mubr.bf16.gmra.mrb[0].mxu0 %v1535
  %v1891 = vpop.f32.mrb[0].mxu0
  %v1892 = vadd.f32 %v909, %v1891
  %v1893 = vpop.f32.mrb[0].mxu0
  %v1894 = vadd.f32 %v913, %v1893
  %v1895 = vpop.f32.mrb[0].mxu0
  %v1896 = vpop.f32.mrb[0].mxu0
  %1897 = vdwg.mxu0
  %1898 = vmatprep.subr.bf16.mxu0 %v1732
  %1899 = vmatpush1.bf16.msra.mxu0 %v1731
  %1900 = vmatprep.subr.bf16.mxu0 %v1736
  %1901 = vmatpush1.bf16.msra.mxu0 %v1735
  %1902 = vmatprep.subr.bf16.mxu0 %v1740
  %1903 = vmatpush1.bf16.msra.mxu0 %v1739
  %1904 = vmatprep.subr.bf16.mxu0 %v1744
  %1905 = vmatpush1.bf16.msra.mxu0 %v1743
  %1906 = vmatprep.subr.bf16.mxu0 %v1748
  %1907 = vmatpush1.bf16.msra.mxu0 %v1747
  %1908 = vmatprep.subr.bf16.mxu0 %v1752
  %1909 = vmatpush1.bf16.msra.mxu0 %v1751
  %1910 = vmatprep.subr.bf16.mxu0 %v1756
  %1911 = vmatpush1.bf16.msra.mxu0 %v1755
  %1912 = vmatprep.subr.bf16.mxu0 %v1760
  %1913 = vmatpush1.bf16.msra.mxu0 %v1759
  %1914 = vmatprep.subr.bf16.mxu0 %v1764
  %1915 = vmatpush1.bf16.msra.mxu0 %v1763
  %1916 = vmatprep.subr.bf16.mxu0 %v1768
  %1917 = vmatpush1.bf16.msra.mxu0 %v1767
  %1918 = vmatprep.subr.bf16.mxu0 %v1772
  %1919 = vmatpush1.bf16.msra.mxu0 %v1771
  %1920 = vmatprep.subr.bf16.mxu0 %v1776
  %1921 = vmatpush1.bf16.msra.mxu0 %v1775
  %1922 = vmatprep.subr.bf16.mxu0 %v1780
  %1923 = vmatpush1.bf16.msra.mxu0 %v1779
  %1924 = vmatprep.subr.bf16.mxu0 %v1784
  %1925 = vmatpush1.bf16.msra.mxu0 %v1783
  %1926 = vmatprep.subr.bf16.mxu0 %v1788
  %1927 = vmatpush1.bf16.msra.mxu0 %v1787
  %1928 = vmatprep.subr.bf16.mxu0 %v1792
  %1929 = vmatpush1.bf16.msra.mxu0 %v1791
  %1930 = vmatprep.mubr.bf16.mxu0 %v1536
  %1931 = vmatmul.mubr.bf16.gmra.mrb[0].mxu0 %v1535
  %v1932 = vpop.f32.mrb[0].mxu0
  %v1933 = vadd.f32 %v917, %v1932
  %v1934 = vpop.f32.mrb[0].mxu0
  %v1935 = vadd.f32 %v921, %v1934
  %v1936 = vpop.f32.mrb[0].mxu0
  %v1937 = vpop.f32.mrb[0].mxu0
  %1938 = vdwg.mxu0
  %v1939 = vxor.u32 %v1892, 2147483648
  %v1940 = vxor.u32 %v1894, 2147483648
  %v1941 = vxor.u32 %v1933, 2147483648
  %v1942 = vmul.f32 %v1939, 1.442695
  %v1943 = vpow.pop %v1942
  %v1944 = vmul.f32 %v1940, 1.442695
  %v1945 = vpow.pop %v1944
  %v1946 = vmul.f32 %v1941, 1.442695
  %v1947 = vpow.pop %v1946
  %v1948 = vadd.f32 %v1943, 1.0
  %v1949 = vadd.f32 %v1945, 1.0
  %v1950 = vadd.f32 %v1947, 1.0
  %v1951 = vrcp.pop %v1948
  %v1952 = vmul.f32 1.0, %v1951
  %v1953 = vrcp.pop %v1949
  %v1954 = vmul.f32 1.0, %v1953
  %v1955 = vrcp.pop %v1950
  %v1956 = vmul.f32 1.0, %v1955
  %v1957 = vtanh.pop %v1935
  %v1958 = vmul.f32 %v1954, 0.0
  %v1959 = vmul.f32 %v1952, %v1957
  %v1960 = vadd.f32 %v1958, %v1959
  %v1961 = vtanh.pop %v1960
  %v1962 = vmul.f32 %v1956, %v1961
  %1963 = vmatprep.subr.bf16.mxu0 %v1362
  %1964 = vmatpush1.bf16.msra.mxu0 %v1361
  %1965 = vmatprep.subr.bf16.mxu0 %v1366
  %1966 = vmatpush1.bf16.msra.mxu0 %v1365
  %1967 = vmatprep.subr.bf16.mxu0 %v1370
  %1968 = vmatpush1.bf16.msra.mxu0 %v1369
  %1969 = vmatprep.subr.bf16.mxu0 %v1374
  %1970 = vmatpush1.bf16.msra.mxu0 %v1373
  %1971 = vmatprep.subr.bf16.mxu0 %v1378
  %1972 = vmatpush1.bf16.msra.mxu0 %v1377
  %1973 = vmatprep.subr.bf16.mxu0 %v1382
  %1974 = vmatpush1.bf16.msra.mxu0 %v1381
  %1975 = vmatprep.subr.bf16.mxu0 %v1386
  %1976 = vmatpush1.bf16.msra.mxu0 %v1385
  %1977 = vmatprep.subr.bf16.mxu0 %v1390
  %1978 = vmatpush1.bf16.msra.mxu0 %v1389
  %1979 = vmatprep.subr.bf16.mxu0 0
  %1980 = vmatpush1.bf16.msra.mxu0 0
  %1981 = vmatprep.subr.bf16.mxu0 0
  %1982 = vmatpush1.bf16.msra.mxu0 0
  %1983 = vmatprep.subr.bf16.mxu0 0
  %1984 = vmatpush1.bf16.msra.mxu0 0
  %1985 = vmatprep.subr.bf16.mxu0 0
  %1986 = vmatpush1.bf16.msra.mxu0 0
  %1987 = vmatprep.subr.bf16.mxu0 0
  %1988 = vmatpush1.bf16.msra.mxu0 0
  %1989 = vmatprep.subr.bf16.mxu0 0
  %1990 = vmatpush1.bf16.msra.mxu0 0
  %1991 = vmatprep.subr.bf16.mxu0 0
  %1992 = vmatpush1.bf16.msra.mxu0 0
  %1993 = vmatprep.subr.bf16.mxu0 0
  %1994 = vmatpush1.bf16.msra.mxu0 0
  %1995 = vmatprep.mubr.bf16.mxu0 0
  %1996 = vmatmul.mubr.bf16.gmra.mrb[0].mxu0 %v1535
  %v1997 = vpop.f32.mrb[0].mxu0
  %v1998 = vadd.f32 0.0, %v1997
  %v1999 = vpop.f32.mrb[0].mxu0
  %v2000 = vadd.f32 0.0, %v1999
  %v2001 = vpop.f32.mrb[0].mxu0
  %v2002 = vpop.f32.mrb[0].mxu0
  %2003 = vdwg.mxu0
  %2004 = vmatprep.subr.bf16.mxu0 %v1364
  %2005 = vmatpush1.bf16.msra.mxu0 %v1363
  %2006 = vmatprep.subr.bf16.mxu0 %v1368
  %2007 = vmatpush1.bf16.msra.mxu0 %v1367
  %2008 = vmatprep.subr.bf16.mxu0 %v1372
  %2009 = vmatpush1.bf16.msra.mxu0 %v1371
  %2010 = vmatprep.subr.bf16.mxu0 %v1376
  %2011 = vmatpush1.bf16.msra.mxu0 %v1375
  %2012 = vmatprep.subr.bf16.mxu0 %v1380
  %2013 = vmatpush1.bf16.msra.mxu0 %v1379
  %2014 = vmatprep.subr.bf16.mxu0 %v1384
  %2015 = vmatpush1.bf16.msra.mxu0 %v1383
  %2016 = vmatprep.subr.bf16.mxu0 %v1388
  %2017 = vmatpush1.bf16.msra.mxu0 %v1387
  %2018 = vmatprep.subr.bf16.mxu0 %v1392
  %2019 = vmatpush1.bf16.msra.mxu0 %v1391
  %2020 = vmatprep.subr.bf16.mxu0 0
  %2021 = vmatpush1.bf16.msra.mxu0 0
  %2022 = vmatprep.subr.bf16.mxu0 0
  %2023 = vmatpush1.bf16.msra.mxu0 0
  %2024 = vmatprep.subr.bf16.mxu0 0
  %2025 = vmatpush1.bf16.msra.mxu0 0
  %2026 = vmatprep.subr.bf16.mxu0 0
  %2027 = vmatpush1.bf16.msra.mxu0 0
  %2028 = vmatprep.subr.bf16.mxu0 0
  %2029 = vmatpush1.bf16.msra.mxu0 0
  %2030 = vmatprep.subr.bf16.mxu0 0
  %2031 = vmatpush1.bf16.msra.mxu0 0
  %2032 = vmatprep.subr.bf16.mxu0 0
  %2033 = vmatpush1.bf16.msra.mxu0 0
  %2034 = vmatprep.subr.bf16.mxu0 0
  %2035 = vmatpush1.bf16.msra.mxu0 0
  %2036 = vmatprep.mubr.bf16.mxu0 0
  %2037 = vmatmul.mubr.bf16.gmra.mrb[0].mxu0 %v1535
  %v2038 = vpop.f32.mrb[0].mxu0
  %v2039 = vadd.f32 0.0, %v2038
  %v2040 = vpop.f32.mrb[0].mxu0
  %v2041 = vadd.f32 0.0, %v2040
  %v2042 = vpop.f32.mrb[0].mxu0
  %v2043 = vpop.f32.mrb[0].mxu0
  %2044 = vdwg.mxu0
  %v2045 = vadd.f32 %v1158, %v1998
  %v2046 = vadd.f32 %v1160, %v2000
  %v2047 = vadd.f32 %v1231, %v2039
  %v2048 = vadd.f32 %v1233, %v2041
  %v2049 = vxor.u32 %v2045, 2147483648
  %v2050 = vxor.u32 %v2046, 2147483648
  %v2051 = vxor.u32 %v2047, 2147483648
  %v2052 = vmul.f32 %v2049, 1.442695
  %v2053 = vpow.pop %v2052
  %v2054 = vmul.f32 %v2050, 1.442695
  %v2055 = vpow.pop %v2054
  %v2056 = vmul.f32 %v2051, 1.442695
  %v2057 = vpow.pop %v2056
  %v2058 = vadd.f32 %v2053, 1.0
  %v2059 = vadd.f32 %v2055, 1.0
  %v2060 = vadd.f32 %v2057, 1.0
  %v2061 = vrcp.pop %v2058
  %v2062 = vmul.f32 1.0, %v2061
  %v2063 = vrcp.pop %v2059
  %v2064 = vmul.f32 1.0, %v2063
  %v2065 = vrcp.pop %v2060
  %v2066 = vmul.f32 1.0, %v2065
  %v2067 = vtanh.pop %v2048
  %v2068 = vmul.f32 %v2064, %v1532
  %v2069 = vmul.f32 %v2062, %v2067
  %v2070 = vadd.f32 %v2068, %v2069
  %v2071 = vtanh.pop %v2070
  %v2072 = vmul.f32 %v2066, %v2071
  %v2073 = vpack.c.bf16 %v2072, %v2072
  %v2074 = vpack.c.bf16 %v1962, %v1962
  %2075 = vmatprep.subr.bf16.mxu0 %v1730
  %2076 = vmatpush1.bf16.msra.mxu0 %v1729
  %2077 = vmatprep.subr.bf16.mxu0 %v1734
  %2078 = vmatpush1.bf16.msra.mxu0 %v1733
  %2079 = vmatprep.subr.bf16.mxu0 %v1738
  %2080 = vmatpush1.bf16.msra.mxu0 %v1737
  %2081 = vmatprep.subr.bf16.mxu0 %v1742
  %2082 = vmatpush1.bf16.msra.mxu0 %v1741
  %2083 = vmatprep.subr.bf16.mxu0 %v1746
  %2084 = vmatpush1.bf16.msra.mxu0 %v1745
  %2085 = vmatprep.subr.bf16.mxu0 %v1750
  %2086 = vmatpush1.bf16.msra.mxu0 %v1749
  %2087 = vmatprep.subr.bf16.mxu0 %v1754
  %2088 = vmatpush1.bf16.msra.mxu0 %v1753
  %2089 = vmatprep.subr.bf16.mxu0 %v1758
  %2090 = vmatpush1.bf16.msra.mxu0 %v1757
  %2091 = vmatprep.subr.bf16.mxu0 %v1762
  %2092 = vmatpush1.bf16.msra.mxu0 %v1761
  %2093 = vmatprep.subr.bf16.mxu0 %v1766
  %2094 = vmatpush1.bf16.msra.mxu0 %v1765
  %2095 = vmatprep.subr.bf16.mxu0 %v1770
  %2096 = vmatpush1.bf16.msra.mxu0 %v1769
  %2097 = vmatprep.subr.bf16.mxu0 %v1774
  %2098 = vmatpush1.bf16.msra.mxu0 %v1773
  %2099 = vmatprep.subr.bf16.mxu0 %v1778
  %2100 = vmatpush1.bf16.msra.mxu0 %v1777
  %2101 = vmatprep.subr.bf16.mxu0 %v1782
  %2102 = vmatpush1.bf16.msra.mxu0 %v1781
  %2103 = vmatprep.subr.bf16.mxu0 %v1786
  %2104 = vmatpush1.bf16.msra.mxu0 %v1785
  %2105 = vmatprep.subr.bf16.mxu0 %v1790
  %2106 = vmatpush1.bf16.msra.mxu0 %v1789
  %2107 = vmatprep.mubr.bf16.mxu0 %v2074
  %2108 = vmatmul.mubr.bf16.gmra.mrb[0].mxu0 %v2073
  %v2109 = vpop.f32.mrb[0].mxu0
  %v2110 = vadd.f32 %v909, %v2109
  %v2111 = vpop.f32.mrb[0].mxu0
  %v2112 = vadd.f32 %v913, %v2111
  %v2113 = vpop.f32.mrb[0].mxu0
  %v2114 = vpop.f32.mrb[0].mxu0
  %2115 = vdwg.mxu0
  %2116 = vmatprep.subr.bf16.mxu0 %v1732
  %2117 = vmatpush1.bf16.msra.mxu0 %v1731
  %2118 = vmatprep.subr.bf16.mxu0 %v1736
  %2119 = vmatpush1.bf16.msra.mxu0 %v1735
  %2120 = vmatprep.subr.bf16.mxu0 %v1740
  %2121 = vmatpush1.bf16.msra.mxu0 %v1739
  %2122 = vmatprep.subr.bf16.mxu0 %v1744
  %2123 = vmatpush1.bf16.msra.mxu0 %v1743
  %2124 = vmatprep.subr.bf16.mxu0 %v1748
  %2125 = vmatpush1.bf16.msra.mxu0 %v1747
  %2126 = vmatprep.subr.bf16.mxu0 %v1752
  %2127 = vmatpush1.bf16.msra.mxu0 %v1751
  %2128 = vmatprep.subr.bf16.mxu0 %v1756
  %2129 = vmatpush1.bf16.msra.mxu0 %v1755
  %2130 = vmatprep.subr.bf16.mxu0 %v1760
  %2131 = vmatpush1.bf16.msra.mxu0 %v1759
  %2132 = vmatprep.subr.bf16.mxu0 %v1764
  %2133 = vmatpush1.bf16.msra.mxu0 %v1763
  %2134 = vmatprep.subr.bf16.mxu0 %v1768
  %2135 = vmatpush1.bf16.msra.mxu0 %v1767
  %2136 = vmatprep.subr.bf16.mxu0 %v1772
  %2137 = vmatpush1.bf16.msra.mxu0 %v1771
  %2138 = vmatprep.subr.bf16.mxu0 %v1776
  %2139 = vmatpush1.bf16.msra.mxu0 %v1775
  %2140 = vmatprep.subr.bf16.mxu0 %v1780
  %2141 = vmatpush1.bf16.msra.mxu0 %v1779
  %2142 = vmatprep.subr.bf16.mxu0 %v1784
  %2143 = vmatpush1.bf16.msra.mxu0 %v1783
  %2144 = vmatprep.subr.bf16.mxu0 %v1788
  %2145 = vmatpush1.bf16.msra.mxu0 %v1787
  %2146 = vmatprep.subr.bf16.mxu0 %v1792
  %2147 = vmatpush1.bf16.msra.mxu0 %v1791
  %2148 = vmatprep.mubr.bf16.mxu0 %v2074
  %2149 = vmatmul.mubr.bf16.gmra.mrb[0].mxu0 %v2073
  %v2150 = vpop.f32.mrb[0].mxu0
  %v2151 = vadd.f32 %v917, %v2150
  %v2152 = vpop.f32.mrb[0].mxu0
  %v2153 = vadd.f32 %v921, %v2152
  %v2154 = vpop.f32.mrb[0].mxu0
  %v2155 = vpop.f32.mrb[0].mxu0
  %2156 = vdwg.mxu0
  %v2157 = vxor.u32 %v2110, 2147483648
  %v2158 = vxor.u32 %v2112, 2147483648
  %v2159 = vxor.u32 %v2151, 2147483648
  %v2160 = vmul.f32 %v2157, 1.442695
  %v2161 = vpow.pop %v2160
  %v2162 = vmul.f32 %v2158, 1.442695
  %v2163 = vpow.pop %v2162
  %v2164 = vmul.f32 %v2159, 1.442695
  %v2165 = vpow.pop %v2164
  %v2166 = vadd.f32 %v2161, 1.0
  %v2167 = vadd.f32 %v2163, 1.0
  %v2168 = vadd.f32 %v2165, 1.0
  %v2169 = vrcp.pop %v2166
  %v2170 = vmul.f32 1.0, %v2169
  %v2171 = vrcp.pop %v2167
  %v2172 = vmul.f32 1.0, %v2171
  %v2173 = vrcp.pop %v2168
  %v2174 = vmul.f32 1.0, %v2173
  %v2175 = vtanh.pop %v2153
  %v2176 = vmul.f32 %v2172, %v1960
  %v2177 = vmul.f32 %v2170, %v2175
  %v2178 = vadd.f32 %v2176, %v2177
  %v2179 = vtanh.pop %v2178
  %v2180 = vmul.f32 %v2174, %v2179
  %2181 = vmatprep.subr.bf16.mxu0 %v1362
  %2182 = vmatpush1.bf16.msra.mxu0 %v1361
  %2183 = vmatprep.subr.bf16.mxu0 %v1366
  %2184 = vmatpush1.bf16.msra.mxu0 %v1365
  %2185 = vmatprep.subr.bf16.mxu0 %v1370
  %2186 = vmatpush1.bf16.msra.mxu0 %v1369
  %2187 = vmatprep.subr.bf16.mxu0 %v1374
  %2188 = vmatpush1.bf16.msra.mxu0 %v1373
  %2189 = vmatprep.subr.bf16.mxu0 %v1378
  %2190 = vmatpush1.bf16.msra.mxu0 %v1377
  %2191 = vmatprep.subr.bf16.mxu0 %v1382
  %2192 = vmatpush1.bf16.msra.mxu0 %v1381
  %2193 = vmatprep.subr.bf16.mxu0 %v1386
  %2194 = vmatpush1.bf16.msra.mxu0 %v1385
  %2195 = vmatprep.subr.bf16.mxu0 %v1390
  %2196 = vmatpush1.bf16.msra.mxu0 %v1389
  %2197 = vmatprep.subr.bf16.mxu0 0
  %2198 = vmatpush1.bf16.msra.mxu0 0
  %2199 = vmatprep.subr.bf16.mxu0 0
  %2200 = vmatpush1.bf16.msra.mxu0 0
  %2201 = vmatprep.subr.bf16.mxu0 0
  %2202 = vmatpush1.bf16.msra.mxu0 0
  %2203 = vmatprep.subr.bf16.mxu0 0
  %2204 = vmatpush1.bf16.msra.mxu0 0
  %2205 = vmatprep.subr.bf16.mxu0 0
  %2206 = vmatpush1.bf16.msra.mxu0 0
  %2207 = vmatprep.subr.bf16.mxu0 0
  %2208 = vmatpush1.bf16.msra.mxu0 0
  %2209 = vmatprep.subr.bf16.mxu0 0
  %2210 = vmatpush1.bf16.msra.mxu0 0
  %2211 = vmatprep.subr.bf16.mxu0 0
  %2212 = vmatpush1.bf16.msra.mxu0 0
  %2213 = vmatprep.mubr.bf16.mxu0 0
  %2214 = vmatmul.mubr.bf16.gmra.mrb[0].mxu0 %v2073
  %v2215 = vpop.f32.mrb[0].mxu0
  %v2216 = vadd.f32 0.0, %v2215
  %v2217 = vpop.f32.mrb[0].mxu0
  %v2218 = vadd.f32 0.0, %v2217
  %v2219 = vpop.f32.mrb[0].mxu0
  %v2220 = vpop.f32.mrb[0].mxu0
  %2221 = vdwg.mxu0
  %2222 = vmatprep.subr.bf16.mxu0 %v1364
  %2223 = vmatpush1.bf16.msra.mxu0 %v1363
  %2224 = vmatprep.subr.bf16.mxu0 %v1368
  %2225 = vmatpush1.bf16.msra.mxu0 %v1367
  %2226 = vmatprep.subr.bf16.mxu0 %v1372
  %2227 = vmatpush1.bf16.msra.mxu0 %v1371
  %2228 = vmatprep.subr.bf16.mxu0 %v1376
  %2229 = vmatpush1.bf16.msra.mxu0 %v1375
  %2230 = vmatprep.subr.bf16.mxu0 %v1380
  %2231 = vmatpush1.bf16.msra.mxu0 %v1379
  %2232 = vmatprep.subr.bf16.mxu0 %v1384
  %2233 = vmatpush1.bf16.msra.mxu0 %v1383
  %2234 = vmatprep.subr.bf16.mxu0 %v1388
  %2235 = vmatpush1.bf16.msra.mxu0 %v1387
  %2236 = vmatprep.subr.bf16.mxu0 %v1392
  %2237 = vmatpush1.bf16.msra.mxu0 %v1391
  %2238 = vmatprep.subr.bf16.mxu0 0
  %2239 = vmatpush1.bf16.msra.mxu0 0
  %2240 = vmatprep.subr.bf16.mxu0 0
  %2241 = vmatpush1.bf16.msra.mxu0 0
  %2242 = vmatprep.subr.bf16.mxu0 0
  %2243 = vmatpush1.bf16.msra.mxu0 0
  %2244 = vmatprep.subr.bf16.mxu0 0
  %2245 = vmatpush1.bf16.msra.mxu0 0
  %2246 = vmatprep.subr.bf16.mxu0 0
  %2247 = vmatpush1.bf16.msra.mxu0 0
  %2248 = vmatprep.subr.bf16.mxu0 0
  %2249 = vmatpush1.bf16.msra.mxu0 0
  %2250 = vmatprep.subr.bf16.mxu0 0
  %2251 = vmatpush1.bf16.msra.mxu0 0
  %2252 = vmatprep.subr.bf16.mxu0 0
  %2253 = vmatpush1.bf16.msra.mxu0 0
  %2254 = vmatprep.mubr.bf16.mxu0 0
  %2255 = vmatmul.mubr.bf16.gmra.mrb[0].mxu0 %v2073
  %v2256 = vpop.f32.mrb[0].mxu0
  %v2257 = vadd.f32 0.0, %v2256
  %v2258 = vpop.f32.mrb[0].mxu0
  %v2259 = vadd.f32 0.0, %v2258
  %v2260 = vpop.f32.mrb[0].mxu0
  %v2261 = vpop.f32.mrb[0].mxu0
  %2262 = vdwg.mxu0
  %v2263 = vadd.f32 %v1164, %v2216
  %v2264 = vadd.f32 %v1166, %v2218
  %v2265 = vadd.f32 %v1237, %v2257
  %v2266 = vadd.f32 %v1239, %v2259
  %v2267 = vxor.u32 %v2263, 2147483648
  %v2268 = vxor.u32 %v2264, 2147483648
  %v2269 = vxor.u32 %v2265, 2147483648
  %v2270 = vmul.f32 %v2267, 1.442695
  %v2271 = vpow.pop %v2270
  %v2272 = vmul.f32 %v2268, 1.442695
  %v2273 = vpow.pop %v2272
  %v2274 = vmul.f32 %v2269, 1.442695
  %v2275 = vpow.pop %v2274
  %v2276 = vadd.f32 %v2271, 1.0
  %v2277 = vadd.f32 %v2273, 1.0
  %v2278 = vadd.f32 %v2275, 1.0
  %v2279 = vrcp.pop %v2276
  %v2280 = vmul.f32 1.0, %v2279
  %v2281 = vrcp.pop %v2277
  %v2282 = vmul.f32 1.0, %v2281
  %v2283 = vrcp.pop %v2278
  %v2284 = vmul.f32 1.0, %v2283
  %v2285 = vtanh.pop %v2266
  %v2286 = vmul.f32 %v2282, %v2070
  %v2287 = vmul.f32 %v2280, %v2285
  %v2288 = vadd.f32 %v2286, %v2287
  %v2289 = vtanh.pop %v2288
  %v2290 = vmul.f32 %v2284, %v2289
  %v2291 = vpack.c.bf16 %v2290, %v2290
  %v2292 = vpack.c.bf16 %v2180, %v2180
  %2293 = vmatprep.subr.bf16.mxu0 %v1730
  %2294 = vmatpush1.bf16.msra.mxu0 %v1729
  %2295 = vmatprep.subr.bf16.mxu0 %v1734
  %2296 = vmatpush1.bf16.msra.mxu0 %v1733
  %2297 = vmatprep.subr.bf16.mxu0 %v1738
  %2298 = vmatpush1.bf16.msra.mxu0 %v1737
  %2299 = vmatprep.subr.bf16.mxu0 %v1742
  %2300 = vmatpush1.bf16.msra.mxu0 %v1741
  %2301 = vmatprep.subr.bf16.mxu0 %v1746
  %2302 = vmatpush1.bf16.msra.mxu0 %v1745
  %2303 = vmatprep.subr.bf16.mxu0 %v1750
  %2304 = vmatpush1.bf16.msra.mxu0 %v1749
  %2305 = vmatprep.subr.bf16.mxu0 %v1754
  %2306 = vmatpush1.bf16.msra.mxu0 %v1753
  %2307 = vmatprep.subr.bf16.mxu0 %v1758
  %2308 = vmatpush1.bf16.msra.mxu0 %v1757
  %2309 = vmatprep.subr.bf16.mxu0 %v1762
  %2310 = vmatpush1.bf16.msra.mxu0 %v1761
  %2311 = vmatprep.subr.bf16.mxu0 %v1766
  %2312 = vmatpush1.bf16.msra.mxu0 %v1765
  %2313 = vmatprep.subr.bf16.mxu0 %v1770
  %2314 = vmatpush1.bf16.msra.mxu0 %v1769
  %2315 = vmatprep.subr.bf16.mxu0 %v1774
  %2316 = vmatpush1.bf16.msra.mxu0 %v1773
  %2317 = vmatprep.subr.bf16.mxu0 %v1778
  %2318 = vmatpush1.bf16.msra.mxu0 %v1777
  %2319 = vmatprep.subr.bf16.mxu0 %v1782
  %2320 = vmatpush1.bf16.msra.mxu0 %v1781
  %2321 = vmatprep.subr.bf16.mxu0 %v1786
  %2322 = vmatpush1.bf16.msra.mxu0 %v1785
  %2323 = vmatprep.subr.bf16.mxu0 %v1790
  %2324 = vmatpush1.bf16.msra.mxu0 %v1789
  %2325 = vmatprep.mubr.bf16.mxu0 %v2292
  %2326 = vmatmul.mubr.bf16.gmra.mrb[0].mxu0 %v2291
  %v2327 = vpop.f32.mrb[0].mxu0
  %v2328 = vadd.f32 %v909, %v2327
  %v2329 = vpop.f32.mrb[0].mxu0
  %v2330 = vadd.f32 %v913, %v2329
  %v2331 = vpop.f32.mrb[0].mxu0
  %v2332 = vpop.f32.mrb[0].mxu0
  %2333 = vdwg.mxu0
  %2334 = vmatprep.subr.bf16.mxu0 %v1732
  %2335 = vmatpush1.bf16.msra.mxu0 %v1731
  %2336 = vmatprep.subr.bf16.mxu0 %v1736
  %2337 = vmatpush1.bf16.msra.mxu0 %v1735
  %2338 = vmatprep.subr.bf16.mxu0 %v1740
  %2339 = vmatpush1.bf16.msra.mxu0 %v1739
  %2340 = vmatprep.subr.bf16.mxu0 %v1744
  %2341 = vmatpush1.bf16.msra.mxu0 %v1743
  %2342 = vmatprep.subr.bf16.mxu0 %v1748
  %2343 = vmatpush1.bf16.msra.mxu0 %v1747
  %2344 = vmatprep.subr.bf16.mxu0 %v1752
  %2345 = vmatpush1.bf16.msra.mxu0 %v1751
  %2346 = vmatprep.subr.bf16.mxu0 %v1756
  %2347 = vmatpush1.bf16.msra.mxu0 %v1755
  %2348 = vmatprep.subr.bf16.mxu0 %v1760
  %2349 = vmatpush1.bf16.msra.mxu0 %v1759
  %2350 = vmatprep.subr.bf16.mxu0 %v1764
  %2351 = vmatpush1.bf16.msra.mxu0 %v1763
  %2352 = vmatprep.subr.bf16.mxu0 %v1768
  %2353 = vmatpush1.bf16.msra.mxu0 %v1767
  %2354 = vmatprep.subr.bf16.mxu0 %v1772
  %2355 = vmatpush1.bf16.msra.mxu0 %v1771
  %2356 = vmatprep.subr.bf16.mxu0 %v1776
  %2357 = vmatpush1.bf16.msra.mxu0 %v1775
  %2358 = vmatprep.subr.bf16.mxu0 %v1780
  %2359 = vmatpush1.bf16.msra.mxu0 %v1779
  %2360 = vmatprep.subr.bf16.mxu0 %v1784
  %2361 = vmatpush1.bf16.msra.mxu0 %v1783
  %2362 = vmatprep.subr.bf16.mxu0 %v1788
  %2363 = vmatpush1.bf16.msra.mxu0 %v1787
  %2364 = vmatprep.subr.bf16.mxu0 %v1792
  %2365 = vmatpush1.bf16.msra.mxu0 %v1791
  %2366 = vmatprep.mubr.bf16.mxu0 %v2292
  %2367 = vmatmul.mubr.bf16.gmra.mrb[0].mxu0 %v2291
  %v2368 = vpop.f32.mrb[0].mxu0
  %v2369 = vadd.f32 %v917, %v2368
  %v2370 = vpop.f32.mrb[0].mxu0
  %v2371 = vadd.f32 %v921, %v2370
  %v2372 = vpop.f32.mrb[0].mxu0
  %v2373 = vpop.f32.mrb[0].mxu0
  %2374 = vdwg.mxu0
  %v2375 = vxor.u32 %v2328, 2147483648
  %v2376 = vxor.u32 %v2330, 2147483648
  %v2377 = vxor.u32 %v2369, 2147483648
  %v2378 = vmul.f32 %v2375, 1.442695
  %v2379 = vpow.pop %v2378
  %v2380 = vmul.f32 %v2376, 1.442695
  %v2381 = vpow.pop %v2380
  %v2382 = vmul.f32 %v2377, 1.442695
  %v2383 = vpow.pop %v2382
  %v2384 = vadd.f32 %v2379, 1.0
  %v2385 = vadd.f32 %v2381, 1.0
  %v2386 = vadd.f32 %v2383, 1.0
  %v2387 = vrcp.pop %v2384
  %v2388 = vmul.f32 1.0, %v2387
  %v2389 = vrcp.pop %v2385
  %v2390 = vmul.f32 1.0, %v2389
  %v2391 = vrcp.pop %v2386
  %v2392 = vmul.f32 1.0, %v2391
  %v2393 = vtanh.pop %v2371
  %v2394 = vmul.f32 %v2390, %v2178
  %v2395 = vmul.f32 %v2388, %v2393
  %v2396 = vadd.f32 %v2394, %v2395
  %v2397 = vtanh.pop %v2396
  %v2398 = vmul.f32 %v2392, %v2397
  %2399 = vmatprep.subr.bf16.mxu0 %v1362
  %2400 = vmatpush1.bf16.msra.mxu0 %v1361
  %2401 = vmatprep.subr.bf16.mxu0 %v1366
  %2402 = vmatpush1.bf16.msra.mxu0 %v1365
  %2403 = vmatprep.subr.bf16.mxu0 %v1370
  %2404 = vmatpush1.bf16.msra.mxu0 %v1369
  %2405 = vmatprep.subr.bf16.mxu0 %v1374
  %2406 = vmatpush1.bf16.msra.mxu0 %v1373
  %2407 = vmatprep.subr.bf16.mxu0 %v1378
  %2408 = vmatpush1.bf16.msra.mxu0 %v1377
  %2409 = vmatprep.subr.bf16.mxu0 %v1382
  %2410 = vmatpush1.bf16.msra.mxu0 %v1381
  %2411 = vmatprep.subr.bf16.mxu0 %v1386
  %2412 = vmatpush1.bf16.msra.mxu0 %v1385
  %2413 = vmatprep.subr.bf16.mxu0 %v1390
  %2414 = vmatpush1.bf16.msra.mxu0 %v1389
  %2415 = vmatprep.subr.bf16.mxu0 0
  %2416 = vmatpush1.bf16.msra.mxu0 0
  %2417 = vmatprep.subr.bf16.mxu0 0
  %2418 = vmatpush1.bf16.msra.mxu0 0
  %2419 = vmatprep.subr.bf16.mxu0 0
  %2420 = vmatpush1.bf16.msra.mxu0 0
  %2421 = vmatprep.subr.bf16.mxu0 0
  %2422 = vmatpush1.bf16.msra.mxu0 0
  %2423 = vmatprep.subr.bf16.mxu0 0
  %2424 = vmatpush1.bf16.msra.mxu0 0
  %2425 = vmatprep.subr.bf16.mxu0 0
  %2426 = vmatpush1.bf16.msra.mxu0 0
  %2427 = vmatprep.subr.bf16.mxu0 0
  %2428 = vmatpush1.bf16.msra.mxu0 0
  %2429 = vmatprep.subr.bf16.mxu0 0
  %2430 = vmatpush1.bf16.msra.mxu0 0
  %2431 = vmatprep.mubr.bf16.mxu0 0
  %2432 = vmatmul.mubr.bf16.gmra.mrb[0].mxu0 %v2291
  %v2433 = vpop.f32.mrb[0].mxu0
  %v2434 = vadd.f32 0.0, %v2433
  %v2435 = vpop.f32.mrb[0].mxu0
  %v2436 = vadd.f32 0.0, %v2435
  %v2437 = vpop.f32.mrb[0].mxu0
  %v2438 = vpop.f32.mrb[0].mxu0
  %2439 = vdwg.mxu0
  %2440 = vmatprep.subr.bf16.mxu0 %v1364
  %2441 = vmatpush1.bf16.msra.mxu0 %v1363
  %2442 = vmatprep.subr.bf16.mxu0 %v1368
  %2443 = vmatpush1.bf16.msra.mxu0 %v1367
  %2444 = vmatprep.subr.bf16.mxu0 %v1372
  %2445 = vmatpush1.bf16.msra.mxu0 %v1371
  %2446 = vmatprep.subr.bf16.mxu0 %v1376
  %2447 = vmatpush1.bf16.msra.mxu0 %v1375
  %2448 = vmatprep.subr.bf16.mxu0 %v1380
  %2449 = vmatpush1.bf16.msra.mxu0 %v1379
  %2450 = vmatprep.subr.bf16.mxu0 %v1384
  %2451 = vmatpush1.bf16.msra.mxu0 %v1383
  %2452 = vmatprep.subr.bf16.mxu0 %v1388
  %2453 = vmatpush1.bf16.msra.mxu0 %v1387
  %2454 = vmatprep.subr.bf16.mxu0 %v1392
  %2455 = vmatpush1.bf16.msra.mxu0 %v1391
  %2456 = vmatprep.subr.bf16.mxu0 0
  %2457 = vmatpush1.bf16.msra.mxu0 0
  %2458 = vmatprep.subr.bf16.mxu0 0
  %2459 = vmatpush1.bf16.msra.mxu0 0
  %2460 = vmatprep.subr.bf16.mxu0 0
  %2461 = vmatpush1.bf16.msra.mxu0 0
  %2462 = vmatprep.subr.bf16.mxu0 0
  %2463 = vmatpush1.bf16.msra.mxu0 0
  %2464 = vmatprep.subr.bf16.mxu0 0
  %2465 = vmatpush1.bf16.msra.mxu0 0
  %2466 = vmatprep.subr.bf16.mxu0 0
  %2467 = vmatpush1.bf16.msra.mxu0 0
  %2468 = vmatprep.subr.bf16.mxu0 0
  %2469 = vmatpush1.bf16.msra.mxu0 0
  %2470 = vmatprep.subr.bf16.mxu0 0
  %2471 = vmatpush1.bf16.msra.mxu0 0
  %2472 = vmatprep.mubr.bf16.mxu0 0
  %2473 = vmatmul.mubr.bf16.gmra.mrb[0].mxu0 %v2291
  %v2474 = vpop.f32.mrb[0].mxu0
  %v2475 = vadd.f32 0.0, %v2474
  %v2476 = vpop.f32.mrb[0].mxu0
  %v2477 = vadd.f32 0.0, %v2476
  %v2478 = vpop.f32.mrb[0].mxu0
  %v2479 = vpop.f32.mrb[0].mxu0
  %2480 = vdwg.mxu0
  %v2481 = vadd.f32 %v1168, %v2434
  %v2482 = vadd.f32 %v1170, %v2436
  %v2483 = vadd.f32 %v1241, %v2475
  %v2484 = vadd.f32 %v1243, %v2477
  %v2485 = vxor.u32 %v2481, 2147483648
  %v2486 = vxor.u32 %v2482, 2147483648
  %v2487 = vxor.u32 %v2483, 2147483648
  %v2488 = vmul.f32 %v2485, 1.442695
  %v2489 = vpow.pop %v2488
  %v2490 = vmul.f32 %v2486, 1.442695
  %v2491 = vpow.pop %v2490
  %v2492 = vmul.f32 %v2487, 1.442695
  %v2493 = vpow.pop %v2492
  %v2494 = vadd.f32 %v2489, 1.0
  %v2495 = vadd.f32 %v2491, 1.0
  %v2496 = vadd.f32 %v2493, 1.0
  %v2497 = vrcp.pop %v2494
  %v2498 = vmul.f32 1.0, %v2497
  %v2499 = vrcp.pop %v2495
  %v2500 = vmul.f32 1.0, %v2499
  %v2501 = vrcp.pop %v2496
  %v2502 = vmul.f32 1.0, %v2501
  %v2503 = vtanh.pop %v2484
  %v2504 = vmul.f32 %v2500, %v2288
  %v2505 = vmul.f32 %v2498, %v2503
  %v2506 = vadd.f32 %v2504, %v2505
  %v2507 = vtanh.pop %v2506
  %v2508 = vmul.f32 %v2502, %v2507
  %v2509 = vpack.c.bf16 %v2508, %v2508
  %v2510 = vpack.c.bf16 %v2398, %v2398
  %2511 = vmatprep.subr.bf16.mxu0 %v1730
  %2512 = vmatpush1.bf16.msra.mxu0 %v1729
  %2513 = vmatprep.subr.bf16.mxu0 %v1734
  %2514 = vmatpush1.bf16.msra.mxu0 %v1733
  %2515 = vmatprep.subr.bf16.mxu0 %v1738
  %2516 = vmatpush1.bf16.msra.mxu0 %v1737
  %2517 = vmatprep.subr.bf16.mxu0 %v1742
  %2518 = vmatpush1.bf16.msra.mxu0 %v1741
  %2519 = vmatprep.subr.bf16.mxu0 %v1746
  %2520 = vmatpush1.bf16.msra.mxu0 %v1745
  %2521 = vmatprep.subr.bf16.mxu0 %v1750
  %2522 = vmatpush1.bf16.msra.mxu0 %v1749
  %2523 = vmatprep.subr.bf16.mxu0 %v1754
  %2524 = vmatpush1.bf16.msra.mxu0 %v1753
  %2525 = vmatprep.subr.bf16.mxu0 %v1758
  %2526 = vmatpush1.bf16.msra.mxu0 %v1757
  %2527 = vmatprep.subr.bf16.mxu0 %v1762
  %2528 = vmatpush1.bf16.msra.mxu0 %v1761
  %2529 = vmatprep.subr.bf16.mxu0 %v1766
  %2530 = vmatpush1.bf16.msra.mxu0 %v1765
  %2531 = vmatprep.subr.bf16.mxu0 %v1770
  %2532 = vmatpush1.bf16.msra.mxu0 %v1769
  %2533 = vmatprep.subr.bf16.mxu0 %v1774
  %2534 = vmatpush1.bf16.msra.mxu0 %v1773
  %2535 = vmatprep.subr.bf16.mxu0 %v1778
  %2536 = vmatpush1.bf16.msra.mxu0 %v1777
  %2537 = vmatprep.subr.bf16.mxu0 %v1782
  %2538 = vmatpush1.bf16.msra.mxu0 %v1781
  %2539 = vmatprep.subr.bf16.mxu0 %v1786
  %2540 = vmatpush1.bf16.msra.mxu0 %v1785
  %2541 = vmatprep.subr.bf16.mxu0 %v1790
  %2542 = vmatpush1.bf16.msra.mxu0 %v1789
  %2543 = vmatprep.mubr.bf16.mxu0 %v2510
  %2544 = vmatmul.mubr.bf16.gmra.mrb[0].mxu0 %v2509
  %v2545 = vpop.f32.mrb[0].mxu0
  %v2546 = vadd.f32 %v909, %v2545
  %v2547 = vpop.f32.mrb[0].mxu0
  %v2548 = vadd.f32 %v913, %v2547
  %v2549 = vpop.f32.mrb[0].mxu0
  %v2550 = vpop.f32.mrb[0].mxu0
  %2551 = vdwg.mxu0
  %2552 = vmatprep.subr.bf16.mxu0 %v1732
  %2553 = vmatpush1.bf16.msra.mxu0 %v1731
  %2554 = vmatprep.subr.bf16.mxu0 %v1736
  %2555 = vmatpush1.bf16.msra.mxu0 %v1735
  %2556 = vmatprep.subr.bf16.mxu0 %v1740
  %2557 = vmatpush1.bf16.msra.mxu0 %v1739
  %2558 = vmatprep.subr.bf16.mxu0 %v1744
  %2559 = vmatpush1.bf16.msra.mxu0 %v1743
  %2560 = vmatprep.subr.bf16.mxu0 %v1748
  %2561 = vmatpush1.bf16.msra.mxu0 %v1747
  %2562 = vmatprep.subr.bf16.mxu0 %v1752
  %2563 = vmatpush1.bf16.msra.mxu0 %v1751
  %2564 = vmatprep.subr.bf16.mxu0 %v1756
  %2565 = vmatpush1.bf16.msra.mxu0 %v1755
  %2566 = vmatprep.subr.bf16.mxu0 %v1760
  %2567 = vmatpush1.bf16.msra.mxu0 %v1759
  %2568 = vmatprep.subr.bf16.mxu0 %v1764
  %2569 = vmatpush1.bf16.msra.mxu0 %v1763
  %2570 = vmatprep.subr.bf16.mxu0 %v1768
  %2571 = vmatpush1.bf16.msra.mxu0 %v1767
  %2572 = vmatprep.subr.bf16.mxu0 %v1772
  %2573 = vmatpush1.bf16.msra.mxu0 %v1771
  %2574 = vmatprep.subr.bf16.mxu0 %v1776
  %2575 = vmatpush1.bf16.msra.mxu0 %v1775
  %2576 = vmatprep.subr.bf16.mxu0 %v1780
  %2577 = vmatpush1.bf16.msra.mxu0 %v1779
  %2578 = vmatprep.subr.bf16.mxu0 %v1784
  %2579 = vmatpush1.bf16.msra.mxu0 %v1783
  %2580 = vmatprep.subr.bf16.mxu0 %v1788
  %2581 = vmatpush1.bf16.msra.mxu0 %v1787
  %2582 = vmatprep.subr.bf16.mxu0 %v1792
  %2583 = vmatpush1.bf16.msra.mxu0 %v1791
  %2584 = vmatprep.mubr.bf16.mxu0 %v2510
  %2585 = vmatmul.mubr.bf16.gmra.mrb[0].mxu0 %v2509
  %v2586 = vpop.f32.mrb[0].mxu0
  %v2587 = vadd.f32 %v917, %v2586
  %v2588 = vpop.f32.mrb[0].mxu0
  %v2589 = vadd.f32 %v921, %v2588
  %v2590 = vpop.f32.mrb[0].mxu0
  %v2591 = vpop.f32.mrb[0].mxu0
  %2592 = vdwg.mxu0
  %v2593 = vxor.u32 %v2546, 2147483648
  %v2594 = vxor.u32 %v2548, 2147483648
  %v2595 = vxor.u32 %v2587, 2147483648
  %v2596 = vmul.f32 %v2593, 1.442695
  %v2597 = vpow.pop %v2596
  %v2598 = vmul.f32 %v2594, 1.442695
  %v2599 = vpow.pop %v2598
  %v2600 = vmul.f32 %v2595, 1.442695
  %v2601 = vpow.pop %v2600
  %v2602 = vadd.f32 %v2597, 1.0
  %v2603 = vadd.f32 %v2599, 1.0
  %v2604 = vadd.f32 %v2601, 1.0
  %v2605 = vrcp.pop %v2602
  %v2606 = vmul.f32 1.0, %v2605
  %v2607 = vrcp.pop %v2603
  %v2608 = vmul.f32 1.0, %v2607
  %v2609 = vrcp.pop %v2604
  %v2610 = vmul.f32 1.0, %v2609
  %v2611 = vtanh.pop %v2589
  %v2612 = vmul.f32 %v2608, %v2396
  %v2613 = vmul.f32 %v2606, %v2611
  %v2614 = vadd.f32 %v2612, %v2613
  %v2615 = vtanh.pop %v2614
  %v2616 = vmul.f32 %v2610, %v2615
  %2617 = vmatprep.subr.bf16.mxu0 %v1362
  %2618 = vmatpush1.bf16.msra.mxu0 %v1361
  %2619 = vmatprep.subr.bf16.mxu0 %v1366
  %2620 = vmatpush1.bf16.msra.mxu0 %v1365
  %2621 = vmatprep.subr.bf16.mxu0 %v1370
  %2622 = vmatpush1.bf16.msra.mxu0 %v1369
  %2623 = vmatprep.subr.bf16.mxu0 %v1374
  %2624 = vmatpush1.bf16.msra.mxu0 %v1373
  %2625 = vmatprep.subr.bf16.mxu0 %v1378
  %2626 = vmatpush1.bf16.msra.mxu0 %v1377
  %2627 = vmatprep.subr.bf16.mxu0 %v1382
  %2628 = vmatpush1.bf16.msra.mxu0 %v1381
  %2629 = vmatprep.subr.bf16.mxu0 %v1386
  %2630 = vmatpush1.bf16.msra.mxu0 %v1385
  %2631 = vmatprep.subr.bf16.mxu0 %v1390
  %2632 = vmatpush1.bf16.msra.mxu0 %v1389
  %2633 = vmatprep.subr.bf16.mxu0 0
  %2634 = vmatpush1.bf16.msra.mxu0 0
  %2635 = vmatprep.subr.bf16.mxu0 0
  %2636 = vmatpush1.bf16.msra.mxu0 0
  %2637 = vmatprep.subr.bf16.mxu0 0
  %2638 = vmatpush1.bf16.msra.mxu0 0
  %2639 = vmatprep.subr.bf16.mxu0 0
  %2640 = vmatpush1.bf16.msra.mxu0 0
  %2641 = vmatprep.subr.bf16.mxu0 0
  %2642 = vmatpush1.bf16.msra.mxu0 0
  %2643 = vmatprep.subr.bf16.mxu0 0
  %2644 = vmatpush1.bf16.msra.mxu0 0
  %2645 = vmatprep.subr.bf16.mxu0 0
  %2646 = vmatpush1.bf16.msra.mxu0 0
  %2647 = vmatprep.subr.bf16.mxu0 0
  %2648 = vmatpush1.bf16.msra.mxu0 0
  %2649 = vmatprep.mubr.bf16.mxu0 0
  %2650 = vmatmul.mubr.bf16.gmra.mrb[0].mxu0 %v2509
  %v2651 = vpop.f32.mrb[0].mxu0
  %v2652 = vadd.f32 0.0, %v2651
  %v2653 = vpop.f32.mrb[0].mxu0
  %v2654 = vadd.f32 0.0, %v2653
  %v2655 = vpop.f32.mrb[0].mxu0
  %v2656 = vpop.f32.mrb[0].mxu0
  %2657 = vdwg.mxu0
  %2658 = vmatprep.subr.bf16.mxu0 %v1364
  %2659 = vmatpush1.bf16.msra.mxu0 %v1363
  %2660 = vmatprep.subr.bf16.mxu0 %v1368
  %2661 = vmatpush1.bf16.msra.mxu0 %v1367
  %2662 = vmatprep.subr.bf16.mxu0 %v1372
  %2663 = vmatpush1.bf16.msra.mxu0 %v1371
  %2664 = vmatprep.subr.bf16.mxu0 %v1376
  %2665 = vmatpush1.bf16.msra.mxu0 %v1375
  %2666 = vmatprep.subr.bf16.mxu0 %v1380
  %2667 = vmatpush1.bf16.msra.mxu0 %v1379
  %2668 = vmatprep.subr.bf16.mxu0 %v1384
  %2669 = vmatpush1.bf16.msra.mxu0 %v1383
  %2670 = vmatprep.subr.bf16.mxu0 %v1388
  %2671 = vmatpush1.bf16.msra.mxu0 %v1387
  %2672 = vmatprep.subr.bf16.mxu0 %v1392
  %2673 = vmatpush1.bf16.msra.mxu0 %v1391
  %2674 = vmatprep.subr.bf16.mxu0 0
  %2675 = vmatpush1.bf16.msra.mxu0 0
  %2676 = vmatprep.subr.bf16.mxu0 0
  %2677 = vmatpush1.bf16.msra.mxu0 0
  %2678 = vmatprep.subr.bf16.mxu0 0
  %2679 = vmatpush1.bf16.msra.mxu0 0
  %2680 = vmatprep.subr.bf16.mxu0 0
  %2681 = vmatpush1.bf16.msra.mxu0 0
  %2682 = vmatprep.subr.bf16.mxu0 0
  %2683 = vmatpush1.bf16.msra.mxu0 0
  %2684 = vmatprep.subr.bf16.mxu0 0
  %2685 = vmatpush1.bf16.msra.mxu0 0
  %2686 = vmatprep.subr.bf16.mxu0 0
  %2687 = vmatpush1.bf16.msra.mxu0 0
  %2688 = vmatprep.subr.bf16.mxu0 0
  %2689 = vmatpush1.bf16.msra.mxu0 0
  %2690 = vmatprep.mubr.bf16.mxu0 0
  %2691 = vmatmul.mubr.bf16.gmra.mrb[0].mxu0 %v2509
  %v2692 = vpop.f32.mrb[0].mxu0
  %v2693 = vadd.f32 0.0, %v2692
  %v2694 = vpop.f32.mrb[0].mxu0
  %v2695 = vadd.f32 0.0, %v2694
  %v2696 = vpop.f32.mrb[0].mxu0
  %v2697 = vpop.f32.mrb[0].mxu0
  %2698 = vdwg.mxu0
  %v2699 = vadd.f32 %v1174, %v2652
  %v2700 = vadd.f32 %v1176, %v2654
  %v2701 = vadd.f32 %v1247, %v2693
  %v2702 = vadd.f32 %v1249, %v2695
  %v2703 = vxor.u32 %v2699, 2147483648
  %v2704 = vxor.u32 %v2700, 2147483648
  %v2705 = vxor.u32 %v2701, 2147483648
  %v2706 = vmul.f32 %v2703, 1.442695
  %v2707 = vpow.pop %v2706
  %v2708 = vmul.f32 %v2704, 1.442695
  %v2709 = vpow.pop %v2708
  %v2710 = vmul.f32 %v2705, 1.442695
  %v2711 = vpow.pop %v2710
  %v2712 = vadd.f32 %v2707, 1.0
  %v2713 = vadd.f32 %v2709, 1.0
  %v2714 = vadd.f32 %v2711, 1.0
  %v2715 = vrcp.pop %v2712
  %v2716 = vmul.f32 1.0, %v2715
  %v2717 = vrcp.pop %v2713
  %v2718 = vmul.f32 1.0, %v2717
  %v2719 = vrcp.pop %v2714
  %v2720 = vmul.f32 1.0, %v2719
  %v2721 = vtanh.pop %v2702
  %v2722 = vmul.f32 %v2718, %v2506
  %v2723 = vmul.f32 %v2716, %v2721
  %v2724 = vadd.f32 %v2722, %v2723
  %v2725 = vtanh.pop %v2724
  %v2726 = vmul.f32 %v2720, %v2725
  %v2727 = vpack.c.bf16 %v2726, %v2726
  %v2728 = vpack.c.bf16 %v2616, %v2616
  %2729 = vmatprep.subr.bf16.mxu0 %v1730
  %2730 = vmatpush1.bf16.msra.mxu0 %v1729
  %2731 = vmatprep.subr.bf16.mxu0 %v1734
  %2732 = vmatpush1.bf16.msra.mxu0 %v1733
  %2733 = vmatprep.subr.bf16.mxu0 %v1738
  %2734 = vmatpush1.bf16.msra.mxu0 %v1737
  %2735 = vmatprep.subr.bf16.mxu0 %v1742
  %2736 = vmatpush1.bf16.msra.mxu0 %v1741
  %2737 = vmatprep.subr.bf16.mxu0 %v1746
  %2738 = vmatpush1.bf16.msra.mxu0 %v1745
  %2739 = vmatprep.subr.bf16.mxu0 %v1750
  %2740 = vmatpush1.bf16.msra.mxu0 %v1749
  %2741 = vmatprep.subr.bf16.mxu0 %v1754
  %2742 = vmatpush1.bf16.msra.mxu0 %v1753
  %2743 = vmatprep.subr.bf16.mxu0 %v1758
  %2744 = vmatpush1.bf16.msra.mxu0 %v1757
  %2745 = vmatprep.subr.bf16.mxu0 %v1762
  %2746 = vmatpush1.bf16.msra.mxu0 %v1761
  %2747 = vmatprep.subr.bf16.mxu0 %v1766
  %2748 = vmatpush1.bf16.msra.mxu0 %v1765
  %2749 = vmatprep.subr.bf16.mxu0 %v1770
  %2750 = vmatpush1.bf16.msra.mxu0 %v1769
  %2751 = vmatprep.subr.bf16.mxu0 %v1774
  %2752 = vmatpush1.bf16.msra.mxu0 %v1773
  %2753 = vmatprep.subr.bf16.mxu0 %v1778
  %2754 = vmatpush1.bf16.msra.mxu0 %v1777
  %2755 = vmatprep.subr.bf16.mxu0 %v1782
  %2756 = vmatpush1.bf16.msra.mxu0 %v1781
  %2757 = vmatprep.subr.bf16.mxu0 %v1786
  %2758 = vmatpush1.bf16.msra.mxu0 %v1785
  %2759 = vmatprep.subr.bf16.mxu0 %v1790
  %2760 = vmatpush1.bf16.msra.mxu0 %v1789
  %2761 = vmatprep.mubr.bf16.mxu0 %v2728
  %2762 = vmatmul.mubr.bf16.gmra.mrb[0].mxu0 %v2727
  %v2763 = vpop.f32.mrb[0].mxu0
  %v2764 = vadd.f32 %v909, %v2763
  %v2765 = vpop.f32.mrb[0].mxu0
  %v2766 = vadd.f32 %v913, %v2765
  %v2767 = vpop.f32.mrb[0].mxu0
  %v2768 = vpop.f32.mrb[0].mxu0
  %2769 = vdwg.mxu0
  %2770 = vmatprep.subr.bf16.mxu0 %v1732
  %2771 = vmatpush1.bf16.msra.mxu0 %v1731
  %2772 = vmatprep.subr.bf16.mxu0 %v1736
  %2773 = vmatpush1.bf16.msra.mxu0 %v1735
  %2774 = vmatprep.subr.bf16.mxu0 %v1740
  %2775 = vmatpush1.bf16.msra.mxu0 %v1739
  %2776 = vmatprep.subr.bf16.mxu0 %v1744
  %2777 = vmatpush1.bf16.msra.mxu0 %v1743
  %2778 = vmatprep.subr.bf16.mxu0 %v1748
  %2779 = vmatpush1.bf16.msra.mxu0 %v1747
  %2780 = vmatprep.subr.bf16.mxu0 %v1752
  %2781 = vmatpush1.bf16.msra.mxu0 %v1751
  %2782 = vmatprep.subr.bf16.mxu0 %v1756
  %2783 = vmatpush1.bf16.msra.mxu0 %v1755
  %2784 = vmatprep.subr.bf16.mxu0 %v1760
  %2785 = vmatpush1.bf16.msra.mxu0 %v1759
  %2786 = vmatprep.subr.bf16.mxu0 %v1764
  %2787 = vmatpush1.bf16.msra.mxu0 %v1763
  %2788 = vmatprep.subr.bf16.mxu0 %v1768
  %2789 = vmatpush1.bf16.msra.mxu0 %v1767
  %2790 = vmatprep.subr.bf16.mxu0 %v1772
  %2791 = vmatpush1.bf16.msra.mxu0 %v1771
  %2792 = vmatprep.subr.bf16.mxu0 %v1776
  %2793 = vmatpush1.bf16.msra.mxu0 %v1775
  %2794 = vmatprep.subr.bf16.mxu0 %v1780
  %2795 = vmatpush1.bf16.msra.mxu0 %v1779
  %2796 = vmatprep.subr.bf16.mxu0 %v1784
  %2797 = vmatpush1.bf16.msra.mxu0 %v1783
  %2798 = vmatprep.subr.bf16.mxu0 %v1788
  %2799 = vmatpush1.bf16.msra.mxu0 %v1787
  %2800 = vmatprep.subr.bf16.mxu0 %v1792
  %2801 = vmatpush1.bf16.msra.mxu0 %v1791
  %2802 = vmatprep.mubr.bf16.mxu0 %v2728
  %2803 = vmatmul.mubr.bf16.gmra.mrb[0].mxu0 %v2727
  %v2804 = vpop.f32.mrb[0].mxu0
  %v2805 = vadd.f32 %v917, %v2804
  %v2806 = vpop.f32.mrb[0].mxu0
  %v2807 = vadd.f32 %v921, %v2806
  %v2808 = vpop.f32.mrb[0].mxu0
  %v2809 = vpop.f32.mrb[0].mxu0
  %2810 = vdwg.mxu0
  %v2811 = vxor.u32 %v2764, 2147483648
  %v2812 = vxor.u32 %v2766, 2147483648
  %v2813 = vxor.u32 %v2805, 2147483648
  %v2814 = vmul.f32 %v2811, 1.442695
  %v2815 = vpow.pop %v2814
  %v2816 = vmul.f32 %v2812, 1.442695
  %v2817 = vpow.pop %v2816
  %v2818 = vmul.f32 %v2813, 1.442695
  %v2819 = vpow.pop %v2818
  %v2820 = vadd.f32 %v2815, 1.0
  %v2821 = vadd.f32 %v2817, 1.0
  %v2822 = vadd.f32 %v2819, 1.0
  %v2823 = vrcp.pop %v2820
  %v2824 = vmul.f32 1.0, %v2823
  %v2825 = vrcp.pop %v2821
  %v2826 = vmul.f32 1.0, %v2825
  %v2827 = vrcp.pop %v2822
  %v2828 = vmul.f32 1.0, %v2827
  %v2829 = vtanh.pop %v2807
  %v2830 = vmul.f32 %v2826, %v2614
  %v2831 = vmul.f32 %v2824, %v2829
  %v2832 = vadd.f32 %v2830, %v2831
  %v2833 = vtanh.pop %v2832
  %v2834 = vmul.f32 %v2828, %v2833
  %2835 = vmatprep.subr.bf16.mxu0 %v1362
  %2836 = vmatpush1.bf16.msra.mxu0 %v1361
  %2837 = vmatprep.subr.bf16.mxu0 %v1366
  %2838 = vmatpush1.bf16.msra.mxu0 %v1365
  %2839 = vmatprep.subr.bf16.mxu0 %v1370
  %2840 = vmatpush1.bf16.msra.mxu0 %v1369
  %2841 = vmatprep.subr.bf16.mxu0 %v1374
  %2842 = vmatpush1.bf16.msra.mxu0 %v1373
  %2843 = vmatprep.subr.bf16.mxu0 %v1378
  %2844 = vmatpush1.bf16.msra.mxu0 %v1377
  %2845 = vmatprep.subr.bf16.mxu0 %v1382
  %2846 = vmatpush1.bf16.msra.mxu0 %v1381
  %2847 = vmatprep.subr.bf16.mxu0 %v1386
  %2848 = vmatpush1.bf16.msra.mxu0 %v1385
  %2849 = vmatprep.subr.bf16.mxu0 %v1390
  %2850 = vmatpush1.bf16.msra.mxu0 %v1389
  %2851 = vmatprep.subr.bf16.mxu0 0
  %2852 = vmatpush1.bf16.msra.mxu0 0
  %2853 = vmatprep.subr.bf16.mxu0 0
  %2854 = vmatpush1.bf16.msra.mxu0 0
  %2855 = vmatprep.subr.bf16.mxu0 0
  %2856 = vmatpush1.bf16.msra.mxu0 0
  %2857 = vmatprep.subr.bf16.mxu0 0
  %2858 = vmatpush1.bf16.msra.mxu0 0
  %2859 = vmatprep.subr.bf16.mxu0 0
  %2860 = vmatpush1.bf16.msra.mxu0 0
  %2861 = vmatprep.subr.bf16.mxu0 0
  %2862 = vmatpush1.bf16.msra.mxu0 0
  %2863 = vmatprep.subr.bf16.mxu0 0
  %2864 = vmatpush1.bf16.msra.mxu0 0
  %2865 = vmatprep.subr.bf16.mxu0 0
  %2866 = vmatpush1.bf16.msra.mxu0 0
  %2867 = vmatprep.mubr.bf16.mxu0 0
  %2868 = vmatmul.mubr.bf16.gmra.mrb[0].mxu0 %v2727
  %v2869 = vpop.f32.mrb[0].mxu0
  %v2870 = vadd.f32 0.0, %v2869
  %v2871 = vpop.f32.mrb[0].mxu0
  %v2872 = vadd.f32 0.0, %v2871
  %v2873 = vpop.f32.mrb[0].mxu0
  %v2874 = vpop.f32.mrb[0].mxu0
  %2875 = vdwg.mxu0
  %2876 = vmatprep.subr.bf16.mxu0 %v1364
  %2877 = vmatpush1.bf16.msra.mxu0 %v1363
  %2878 = vmatprep.subr.bf16.mxu0 %v1368
  %2879 = vmatpush1.bf16.msra.mxu0 %v1367
  %2880 = vmatprep.subr.bf16.mxu0 %v1372
  %2881 = vmatpush1.bf16.msra.mxu0 %v1371
  %2882 = vmatprep.subr.bf16.mxu0 %v1376
  %2883 = vmatpush1.bf16.msra.mxu0 %v1375
  %2884 = vmatprep.subr.bf16.mxu0 %v1380
  %2885 = vmatpush1.bf16.msra.mxu0 %v1379
  %2886 = vmatprep.subr.bf16.mxu0 %v1384
  %2887 = vmatpush1.bf16.msra.mxu0 %v1383
  %2888 = vmatprep.subr.bf16.mxu0 %v1388
  %2889 = vmatpush1.bf16.msra.mxu0 %v1387
  %2890 = vmatprep.subr.bf16.mxu0 %v1392
  %2891 = vmatpush1.bf16.msra.mxu0 %v1391
  %2892 = vmatprep.subr.bf16.mxu0 0
  %2893 = vmatpush1.bf16.msra.mxu0 0
  %2894 = vmatprep.subr.bf16.mxu0 0
  %2895 = vmatpush1.bf16.msra.mxu0 0
  %2896 = vmatprep.subr.bf16.mxu0 0
  %2897 = vmatpush1.bf16.msra.mxu0 0
  %2898 = vmatprep.subr.bf16.mxu0 0
  %2899 = vmatpush1.bf16.msra.mxu0 0
  %2900 = vmatprep.subr.bf16.mxu0 0
  %2901 = vmatpush1.bf16.msra.mxu0 0
  %2902 = vmatprep.subr.bf16.mxu0 0
  %2903 = vmatpush1.bf16.msra.mxu0 0
  %2904 = vmatprep.subr.bf16.mxu0 0
  %2905 = vmatpush1.bf16.msra.mxu0 0
  %2906 = vmatprep.subr.bf16.mxu0 0
  %2907 = vmatpush1.bf16.msra.mxu0 0
  %2908 = vmatprep.mubr.bf16.mxu0 0
  %2909 = vmatmul.mubr.bf16.gmra.mrb[0].mxu0 %v2727
  %v2910 = vpop.f32.mrb[0].mxu0
  %v2911 = vadd.f32 0.0, %v2910
  %v2912 = vpop.f32.mrb[0].mxu0
  %v2913 = vadd.f32 0.0, %v2912
  %v2914 = vpop.f32.mrb[0].mxu0
  %v2915 = vpop.f32.mrb[0].mxu0
  %2916 = vdwg.mxu0
  %v2917 = vadd.f32 %v1178, %v2870
  %v2918 = vadd.f32 %v1180, %v2872
  %v2919 = vadd.f32 %v1251, %v2911
  %v2920 = vadd.f32 %v1253, %v2913
  %v2921 = vxor.u32 %v2917, 2147483648
  %v2922 = vxor.u32 %v2918, 2147483648
  %v2923 = vxor.u32 %v2919, 2147483648
  %v2924 = vmul.f32 %v2921, 1.442695
  %v2925 = vpow.pop %v2924
  %v2926 = vmul.f32 %v2922, 1.442695
  %v2927 = vpow.pop %v2926
  %v2928 = vmul.f32 %v2923, 1.442695
  %v2929 = vpow.pop %v2928
  %v2930 = vadd.f32 %v2925, 1.0
  %v2931 = vadd.f32 %v2927, 1.0
  %v2932 = vadd.f32 %v2929, 1.0
  %v2933 = vrcp.pop %v2930
  %v2934 = vmul.f32 1.0, %v2933
  %v2935 = vrcp.pop %v2931
  %v2936 = vmul.f32 1.0, %v2935
  %v2937 = vrcp.pop %v2932
  %v2938 = vmul.f32 1.0, %v2937
  %v2939 = vtanh.pop %v2920
  %v2940 = vmul.f32 %v2936, %v2724
  %v2941 = vmul.f32 %v2934, %v2939
  %v2942 = vadd.f32 %v2940, %v2941
  %v2943 = vtanh.pop %v2942
  %v2944 = vmul.f32 %v2938, %v2943
  %v2945 = vpack.c.bf16 %v2944, %v2944
  %v2946 = vpack.c.bf16 %v2834, %v2834
  %2947 = vmatprep.subr.bf16.mxu0 %v1730
  %2948 = vmatpush1.bf16.msra.mxu0 %v1729
  %2949 = vmatprep.subr.bf16.mxu0 %v1734
  %2950 = vmatpush1.bf16.msra.mxu0 %v1733
  %2951 = vmatprep.subr.bf16.mxu0 %v1738
  %2952 = vmatpush1.bf16.msra.mxu0 %v1737
  %2953 = vmatprep.subr.bf16.mxu0 %v1742
  %2954 = vmatpush1.bf16.msra.mxu0 %v1741
  %2955 = vmatprep.subr.bf16.mxu0 %v1746
  %2956 = vmatpush1.bf16.msra.mxu0 %v1745
  %2957 = vmatprep.subr.bf16.mxu0 %v1750
  %2958 = vmatpush1.bf16.msra.mxu0 %v1749
  %2959 = vmatprep.subr.bf16.mxu0 %v1754
  %2960 = vmatpush1.bf16.msra.mxu0 %v1753
  %2961 = vmatprep.subr.bf16.mxu0 %v1758
  %2962 = vmatpush1.bf16.msra.mxu0 %v1757
  %2963 = vmatprep.subr.bf16.mxu0 %v1762
  %2964 = vmatpush1.bf16.msra.mxu0 %v1761
  %2965 = vmatprep.subr.bf16.mxu0 %v1766
  %2966 = vmatpush1.bf16.msra.mxu0 %v1765
  %2967 = vmatprep.subr.bf16.mxu0 %v1770
  %2968 = vmatpush1.bf16.msra.mxu0 %v1769
  %2969 = vmatprep.subr.bf16.mxu0 %v1774
  %2970 = vmatpush1.bf16.msra.mxu0 %v1773
  %2971 = vmatprep.subr.bf16.mxu0 %v1778
  %2972 = vmatpush1.bf16.msra.mxu0 %v1777
  %2973 = vmatprep.subr.bf16.mxu0 %v1782
  %2974 = vmatpush1.bf16.msra.mxu0 %v1781
  %2975 = vmatprep.subr.bf16.mxu0 %v1786
  %2976 = vmatpush1.bf16.msra.mxu0 %v1785
  %2977 = vmatprep.subr.bf16.mxu0 %v1790
  %2978 = vmatpush1.bf16.msra.mxu0 %v1789
  %2979 = vmatprep.mubr.bf16.mxu0 %v2946
  %2980 = vmatmul.mubr.bf16.gmra.mrb[0].mxu0 %v2945
  %v2981 = vpop.f32.mrb[0].mxu0
  %v2982 = vadd.f32 %v909, %v2981
  %v2983 = vpop.f32.mrb[0].mxu0
  %v2984 = vadd.f32 %v913, %v2983
  %v2985 = vpop.f32.mrb[0].mxu0
  %v2986 = vpop.f32.mrb[0].mxu0
  %2987 = vdwg.mxu0
  %2988 = vmatprep.subr.bf16.mxu0 %v1732
  %2989 = vmatpush1.bf16.msra.mxu0 %v1731
  %2990 = vmatprep.subr.bf16.mxu0 %v1736
  %2991 = vmatpush1.bf16.msra.mxu0 %v1735
  %2992 = vmatprep.subr.bf16.mxu0 %v1740
  %2993 = vmatpush1.bf16.msra.mxu0 %v1739
  %2994 = vmatprep.subr.bf16.mxu0 %v1744
  %2995 = vmatpush1.bf16.msra.mxu0 %v1743
  %2996 = vmatprep.subr.bf16.mxu0 %v1748
  %2997 = vmatpush1.bf16.msra.mxu0 %v1747
  %2998 = vmatprep.subr.bf16.mxu0 %v1752
  %2999 = vmatpush1.bf16.msra.mxu0 %v1751
  %3000 = vmatprep.subr.bf16.mxu0 %v1756
  %3001 = vmatpush1.bf16.msra.mxu0 %v1755
  %3002 = vmatprep.subr.bf16.mxu0 %v1760
  %3003 = vmatpush1.bf16.msra.mxu0 %v1759
  %3004 = vmatprep.subr.bf16.mxu0 %v1764
  %3005 = vmatpush1.bf16.msra.mxu0 %v1763
  %3006 = vmatprep.subr.bf16.mxu0 %v1768
  %3007 = vmatpush1.bf16.msra.mxu0 %v1767
  %3008 = vmatprep.subr.bf16.mxu0 %v1772
  %3009 = vmatpush1.bf16.msra.mxu0 %v1771
  %3010 = vmatprep.subr.bf16.mxu0 %v1776
  %3011 = vmatpush1.bf16.msra.mxu0 %v1775
  %3012 = vmatprep.subr.bf16.mxu0 %v1780
  %3013 = vmatpush1.bf16.msra.mxu0 %v1779
  %3014 = vmatprep.subr.bf16.mxu0 %v1784
  %3015 = vmatpush1.bf16.msra.mxu0 %v1783
  %3016 = vmatprep.subr.bf16.mxu0 %v1788
  %3017 = vmatpush1.bf16.msra.mxu0 %v1787
  %3018 = vmatprep.subr.bf16.mxu0 %v1792
  %3019 = vmatpush1.bf16.msra.mxu0 %v1791
  %3020 = vmatprep.mubr.bf16.mxu0 %v2946
  %3021 = vmatmul.mubr.bf16.gmra.mrb[0].mxu0 %v2945
  %v3022 = vpop.f32.mrb[0].mxu0
  %v3023 = vadd.f32 %v917, %v3022
  %v3024 = vpop.f32.mrb[0].mxu0
  %v3025 = vadd.f32 %v921, %v3024
  %v3026 = vpop.f32.mrb[0].mxu0
  %v3027 = vpop.f32.mrb[0].mxu0
  %3028 = vdwg.mxu0
  %v3029 = vxor.u32 %v2982, 2147483648
  %v3030 = vxor.u32 %v2984, 2147483648
  %v3031 = vxor.u32 %v3023, 2147483648
  %v3032 = vmul.f32 %v3029, 1.442695
  %v3033 = vpow.pop %v3032
  %v3034 = vmul.f32 %v3030, 1.442695
  %v3035 = vpow.pop %v3034
  %v3036 = vmul.f32 %v3031, 1.442695
  %v3037 = vpow.pop %v3036
  %v3038 = vadd.f32 %v3033, 1.0
  %v3039 = vadd.f32 %v3035, 1.0
  %v3040 = vadd.f32 %v3037, 1.0
  %v3041 = vrcp.pop %v3038
  %v3042 = vmul.f32 1.0, %v3041
  %v3043 = vrcp.pop %v3039
  %v3044 = vmul.f32 1.0, %v3043
  %v3045 = vrcp.pop %v3040
  %v3046 = vmul.f32 1.0, %v3045
  %v3047 = vtanh.pop %v3025
  %v3048 = vmul.f32 %v3044, %v2832
  %v3049 = vmul.f32 %v3042, %v3047
  %v3050 = vadd.f32 %v3048, %v3049
  %v3051 = vtanh.pop %v3050
  %v3052 = vmul.f32 %v3046, %v3051
  %3053 = vmatprep.subr.bf16.mxu0 %v1362
  %3054 = vmatpush1.bf16.msra.mxu0 %v1361
  %3055 = vmatprep.subr.bf16.mxu0 %v1366
  %3056 = vmatpush1.bf16.msra.mxu0 %v1365
  %3057 = vmatprep.subr.bf16.mxu0 %v1370
  %3058 = vmatpush1.bf16.msra.mxu0 %v1369
  %3059 = vmatprep.subr.bf16.mxu0 %v1374
  %3060 = vmatpush1.bf16.msra.mxu0 %v1373
  %3061 = vmatprep.subr.bf16.mxu0 %v1378
  %3062 = vmatpush1.bf16.msra.mxu0 %v1377
  %3063 = vmatprep.subr.bf16.mxu0 %v1382
  %3064 = vmatpush1.bf16.msra.mxu0 %v1381
  %3065 = vmatprep.subr.bf16.mxu0 %v1386
  %3066 = vmatpush1.bf16.msra.mxu0 %v1385
  %3067 = vmatprep.subr.bf16.mxu0 %v1390
  %3068 = vmatpush1.bf16.msra.mxu0 %v1389
  %3069 = vmatprep.subr.bf16.mxu0 0
  %3070 = vmatpush1.bf16.msra.mxu0 0
  %3071 = vmatprep.subr.bf16.mxu0 0
  %3072 = vmatpush1.bf16.msra.mxu0 0
  %3073 = vmatprep.subr.bf16.mxu0 0
  %3074 = vmatpush1.bf16.msra.mxu0 0
  %3075 = vmatprep.subr.bf16.mxu0 0
  %3076 = vmatpush1.bf16.msra.mxu0 0
  %3077 = vmatprep.subr.bf16.mxu0 0
  %3078 = vmatpush1.bf16.msra.mxu0 0
  %3079 = vmatprep.subr.bf16.mxu0 0
  %3080 = vmatpush1.bf16.msra.mxu0 0
  %3081 = vmatprep.subr.bf16.mxu0 0
  %3082 = vmatpush1.bf16.msra.mxu0 0
  %3083 = vmatprep.subr.bf16.mxu0 0
  %3084 = vmatpush1.bf16.msra.mxu0 0
  %3085 = vmatprep.mubr.bf16.mxu0 0
  %3086 = vmatmul.mubr.bf16.gmra.mrb[0].mxu0 %v2945
  %v3087 = vpop.f32.mrb[0].mxu0
  %v3088 = vadd.f32 0.0, %v3087
  %v3089 = vpop.f32.mrb[0].mxu0
  %v3090 = vadd.f32 0.0, %v3089
  %v3091 = vpop.f32.mrb[0].mxu0
  %v3092 = vpop.f32.mrb[0].mxu0
  %3093 = vdwg.mxu0
  %3094 = vmatprep.subr.bf16.mxu0 %v1364
  %3095 = vmatpush1.bf16.msra.mxu0 %v1363
  %3096 = vmatprep.subr.bf16.mxu0 %v1368
  %3097 = vmatpush1.bf16.msra.mxu0 %v1367
  %3098 = vmatprep.subr.bf16.mxu0 %v1372
  %3099 = vmatpush1.bf16.msra.mxu0 %v1371
  %3100 = vmatprep.subr.bf16.mxu0 %v1376
  %3101 = vmatpush1.bf16.msra.mxu0 %v1375
  %3102 = vmatprep.subr.bf16.mxu0 %v1380
  %3103 = vmatpush1.bf16.msra.mxu0 %v1379
  %3104 = vmatprep.subr.bf16.mxu0 %v1384
  %3105 = vmatpush1.bf16.msra.mxu0 %v1383
  %3106 = vmatprep.subr.bf16.mxu0 %v1388
  %3107 = vmatpush1.bf16.msra.mxu0 %v1387
  %3108 = vmatprep.subr.bf16.mxu0 %v1392
  %3109 = vmatpush1.bf16.msra.mxu0 %v1391
  %3110 = vmatprep.subr.bf16.mxu0 0
  %3111 = vmatpush1.bf16.msra.mxu0 0
  %3112 = vmatprep.subr.bf16.mxu0 0
  %3113 = vmatpush1.bf16.msra.mxu0 0
  %3114 = vmatprep.subr.bf16.mxu0 0
  %3115 = vmatpush1.bf16.msra.mxu0 0
  %3116 = vmatprep.subr.bf16.mxu0 0
  %3117 = vmatpush1.bf16.msra.mxu0 0
  %3118 = vmatprep.subr.bf16.mxu0 0
  %3119 = vmatpush1.bf16.msra.mxu0 0
  %3120 = vmatprep.subr.bf16.mxu0 0
  %3121 = vmatpush1.bf16.msra.mxu0 0
  %3122 = vmatprep.subr.bf16.mxu0 0
  %3123 = vmatpush1.bf16.msra.mxu0 0
  %3124 = vmatprep.subr.bf16.mxu0 0
  %3125 = vmatpush1.bf16.msra.mxu0 0
  %3126 = vmatprep.mubr.bf16.mxu0 0
  %3127 = vmatmul.mubr.bf16.gmra.mrb[0].mxu0 %v2945
  %v3128 = vpop.f32.mrb[0].mxu0
  %v3129 = vadd.f32 0.0, %v3128
  %v3130 = vpop.f32.mrb[0].mxu0
  %v3131 = vadd.f32 0.0, %v3130
  %v3132 = vpop.f32.mrb[0].mxu0
  %v3133 = vpop.f32.mrb[0].mxu0
  %3134 = vdwg.mxu0
  %v3135 = vadd.f32 %v1184, %v3088
  %v3136 = vadd.f32 %v1186, %v3090
  %v3137 = vadd.f32 %v1257, %v3129
  %v3138 = vadd.f32 %v1259, %v3131
  %v3139 = vxor.u32 %v3135, 2147483648
  %v3140 = vxor.u32 %v3136, 2147483648
  %v3141 = vxor.u32 %v3137, 2147483648
  %v3142 = vmul.f32 %v3139, 1.442695
  %v3143 = vpow.pop %v3142
  %v3144 = vmul.f32 %v3140, 1.442695
  %v3145 = vpow.pop %v3144
  %v3146 = vmul.f32 %v3141, 1.442695
  %v3147 = vpow.pop %v3146
  %v3148 = vadd.f32 %v3143, 1.0
  %v3149 = vadd.f32 %v3145, 1.0
  %v3150 = vadd.f32 %v3147, 1.0
  %v3151 = vrcp.pop %v3148
  %v3152 = vmul.f32 1.0, %v3151
  %v3153 = vrcp.pop %v3149
  %v3154 = vmul.f32 1.0, %v3153
  %v3155 = vrcp.pop %v3150
  %v3156 = vmul.f32 1.0, %v3155
  %v3157 = vtanh.pop %v3138
  %v3158 = vmul.f32 %v3154, %v2942
  %v3159 = vmul.f32 %v3152, %v3157
  %v3160 = vadd.f32 %v3158, %v3159
  %v3161 = vtanh.pop %v3160
  %v3162 = vmul.f32 %v3156, %v3161
  %v3163 = vpack.c.bf16 %v3162, %v3162
  %v3164 = vpack.c.bf16 %v3052, %v3052
  %3165 = vmatprep.subr.bf16.mxu0 %v1730
  %3166 = vmatpush1.bf16.msra.mxu0 %v1729
  %3167 = vmatprep.subr.bf16.mxu0 %v1734
  %3168 = vmatpush1.bf16.msra.mxu0 %v1733
  %3169 = vmatprep.subr.bf16.mxu0 %v1738
  %3170 = vmatpush1.bf16.msra.mxu0 %v1737
  %3171 = vmatprep.subr.bf16.mxu0 %v1742
  %3172 = vmatpush1.bf16.msra.mxu0 %v1741
  %3173 = vmatprep.subr.bf16.mxu0 %v1746
  %3174 = vmatpush1.bf16.msra.mxu0 %v1745
  %3175 = vmatprep.subr.bf16.mxu0 %v1750
  %3176 = vmatpush1.bf16.msra.mxu0 %v1749
  %3177 = vmatprep.subr.bf16.mxu0 %v1754
  %3178 = vmatpush1.bf16.msra.mxu0 %v1753
  %3179 = vmatprep.subr.bf16.mxu0 %v1758
  %3180 = vmatpush1.bf16.msra.mxu0 %v1757
  %3181 = vmatprep.subr.bf16.mxu0 %v1762
  %3182 = vmatpush1.bf16.msra.mxu0 %v1761
  %3183 = vmatprep.subr.bf16.mxu0 %v1766
  %3184 = vmatpush1.bf16.msra.mxu0 %v1765
  %3185 = vmatprep.subr.bf16.mxu0 %v1770
  %3186 = vmatpush1.bf16.msra.mxu0 %v1769
  %3187 = vmatprep.subr.bf16.mxu0 %v1774
  %3188 = vmatpush1.bf16.msra.mxu0 %v1773
  %3189 = vmatprep.subr.bf16.mxu0 %v1778
  %3190 = vmatpush1.bf16.msra.mxu0 %v1777
  %3191 = vmatprep.subr.bf16.mxu0 %v1782
  %3192 = vmatpush1.bf16.msra.mxu0 %v1781
  %3193 = vmatprep.subr.bf16.mxu0 %v1786
  %3194 = vmatpush1.bf16.msra.mxu0 %v1785
  %3195 = vmatprep.subr.bf16.mxu0 %v1790
  %3196 = vmatpush1.bf16.msra.mxu0 %v1789
  %3197 = vmatprep.mubr.bf16.mxu0 %v3164
  %3198 = vmatmul.mubr.bf16.gmra.mrb[0].mxu0 %v3163
  %v3199 = vpop.f32.mrb[0].mxu0
  %v3200 = vadd.f32 %v909, %v3199
  %v3201 = vpop.f32.mrb[0].mxu0
  %v3202 = vadd.f32 %v913, %v3201
  %v3203 = vpop.f32.mrb[0].mxu0
  %v3204 = vpop.f32.mrb[0].mxu0
  %3205 = vdwg.mxu0
  %3206 = vmatprep.subr.bf16.mxu0 %v1732
  %3207 = vmatpush1.bf16.msra.mxu0 %v1731
  %3208 = vmatprep.subr.bf16.mxu0 %v1736
  %3209 = vmatpush1.bf16.msra.mxu0 %v1735
  %3210 = vmatprep.subr.bf16.mxu0 %v1740
  %3211 = vmatpush1.bf16.msra.mxu0 %v1739
  %3212 = vmatprep.subr.bf16.mxu0 %v1744
  %3213 = vmatpush1.bf16.msra.mxu0 %v1743
  %3214 = vmatprep.subr.bf16.mxu0 %v1748
  %3215 = vmatpush1.bf16.msra.mxu0 %v1747
  %3216 = vmatprep.subr.bf16.mxu0 %v1752
  %3217 = vmatpush1.bf16.msra.mxu0 %v1751
  %3218 = vmatprep.subr.bf16.mxu0 %v1756
  %3219 = vmatpush1.bf16.msra.mxu0 %v1755
  %3220 = vmatprep.subr.bf16.mxu0 %v1760
  %3221 = vmatpush1.bf16.msra.mxu0 %v1759
  %3222 = vmatprep.subr.bf16.mxu0 %v1764
  %3223 = vmatpush1.bf16.msra.mxu0 %v1763
  %3224 = vmatprep.subr.bf16.mxu0 %v1768
  %3225 = vmatpush1.bf16.msra.mxu0 %v1767
  %3226 = vmatprep.subr.bf16.mxu0 %v1772
  %3227 = vmatpush1.bf16.msra.mxu0 %v1771
  %3228 = vmatprep.subr.bf16.mxu0 %v1776
  %3229 = vmatpush1.bf16.msra.mxu0 %v1775
  %3230 = vmatprep.subr.bf16.mxu0 %v1780
  %3231 = vmatpush1.bf16.msra.mxu0 %v1779
  %3232 = vmatprep.subr.bf16.mxu0 %v1784
  %3233 = vmatpush1.bf16.msra.mxu0 %v1783
  %3234 = vmatprep.subr.bf16.mxu0 %v1788
  %3235 = vmatpush1.bf16.msra.mxu0 %v1787
  %3236 = vmatprep.subr.bf16.mxu0 %v1792
  %3237 = vmatpush1.bf16.msra.mxu0 %v1791
  %3238 = vmatprep.mubr.bf16.mxu0 %v3164
  %3239 = vmatmul.mubr.bf16.gmra.mrb[0].mxu0 %v3163
  %v3240 = vpop.f32.mrb[0].mxu0
  %v3241 = vadd.f32 %v917, %v3240
  %v3242 = vpop.f32.mrb[0].mxu0
  %v3243 = vadd.f32 %v921, %v3242
  %v3244 = vpop.f32.mrb[0].mxu0
  %v3245 = vpop.f32.mrb[0].mxu0
  %3246 = vdwg.mxu0
  %v3247 = vxor.u32 %v3200, 2147483648
  %v3248 = vxor.u32 %v3202, 2147483648
  %v3249 = vxor.u32 %v3241, 2147483648
  %v3250 = vmul.f32 %v3247, 1.442695
  %v3251 = vpow.pop %v3250
  %v3252 = vmul.f32 %v3248, 1.442695
  %v3253 = vpow.pop %v3252
  %v3254 = vmul.f32 %v3249, 1.442695
  %v3255 = vpow.pop %v3254
  %v3256 = vadd.f32 %v3251, 1.0
  %v3257 = vadd.f32 %v3253, 1.0
  %v3258 = vadd.f32 %v3255, 1.0
  %v3259 = vrcp.pop %v3256
  %v3260 = vmul.f32 1.0, %v3259
  %v3261 = vrcp.pop %v3257
  %v3262 = vmul.f32 1.0, %v3261
  %v3263 = vrcp.pop %v3258
  %v3264 = vmul.f32 1.0, %v3263
  %v3265 = vtanh.pop %v3243
  %v3266 = vmul.f32 %v3262, %v3050
  %v3267 = vmul.f32 %v3260, %v3265
  %v3268 = vadd.f32 %v3266, %v3267
  %v3269 = vtanh.pop %v3268
  %v3270 = vmul.f32 %v3264, %v3269
  %3271 = vmatprep.subr.bf16.mxu0 %v1362
  %3272 = vmatpush1.bf16.msra.mxu0 %v1361
  %3273 = vmatprep.subr.bf16.mxu0 %v1366
  %3274 = vmatpush1.bf16.msra.mxu0 %v1365
  %3275 = vmatprep.subr.bf16.mxu0 %v1370
  %3276 = vmatpush1.bf16.msra.mxu0 %v1369
  %3277 = vmatprep.subr.bf16.mxu0 %v1374
  %3278 = vmatpush1.bf16.msra.mxu0 %v1373
  %3279 = vmatprep.subr.bf16.mxu0 %v1378
  %3280 = vmatpush1.bf16.msra.mxu0 %v1377
  %3281 = vmatprep.subr.bf16.mxu0 %v1382
  %3282 = vmatpush1.bf16.msra.mxu0 %v1381
  %3283 = vmatprep.subr.bf16.mxu0 %v1386
  %3284 = vmatpush1.bf16.msra.mxu0 %v1385
  %3285 = vmatprep.subr.bf16.mxu0 %v1390
  %3286 = vmatpush1.bf16.msra.mxu0 %v1389
  %3287 = vmatprep.subr.bf16.mxu0 0
  %3288 = vmatpush1.bf16.msra.mxu0 0
  %3289 = vmatprep.subr.bf16.mxu0 0
  %3290 = vmatpush1.bf16.msra.mxu0 0
  %3291 = vmatprep.subr.bf16.mxu0 0
  %3292 = vmatpush1.bf16.msra.mxu0 0
  %3293 = vmatprep.subr.bf16.mxu0 0
  %3294 = vmatpush1.bf16.msra.mxu0 0
  %3295 = vmatprep.subr.bf16.mxu0 0
  %3296 = vmatpush1.bf16.msra.mxu0 0
  %3297 = vmatprep.subr.bf16.mxu0 0
  %3298 = vmatpush1.bf16.msra.mxu0 0
  %3299 = vmatprep.subr.bf16.mxu0 0
  %3300 = vmatpush1.bf16.msra.mxu0 0
  %3301 = vmatprep.subr.bf16.mxu0 0
  %3302 = vmatpush1.bf16.msra.mxu0 0
  %3303 = vmatprep.mubr.bf16.mxu0 0
  %3304 = vmatmul.mubr.bf16.gmra.mrb[0].mxu0 %v3163
  %v3305 = vpop.f32.mrb[0].mxu0
  %v3306 = vadd.f32 0.0, %v3305
  %v3307 = vpop.f32.mrb[0].mxu0
  %v3308 = vadd.f32 0.0, %v3307
  %v3309 = vpop.f32.mrb[0].mxu0
  %v3310 = vpop.f32.mrb[0].mxu0
  %3311 = vdwg.mxu0
  %3312 = vmatprep.subr.bf16.mxu0 %v1364
  %3313 = vmatpush1.bf16.msra.mxu0 %v1363
  %3314 = vmatprep.subr.bf16.mxu0 %v1368
  %3315 = vmatpush1.bf16.msra.mxu0 %v1367
  %3316 = vmatprep.subr.bf16.mxu0 %v1372
  %3317 = vmatpush1.bf16.msra.mxu0 %v1371
  %3318 = vmatprep.subr.bf16.mxu0 %v1376
  %3319 = vmatpush1.bf16.msra.mxu0 %v1375
  %3320 = vmatprep.subr.bf16.mxu0 %v1380
  %3321 = vmatpush1.bf16.msra.mxu0 %v1379
  %3322 = vmatprep.subr.bf16.mxu0 %v1384
  %3323 = vmatpush1.bf16.msra.mxu0 %v1383
  %3324 = vmatprep.subr.bf16.mxu0 %v1388
  %3325 = vmatpush1.bf16.msra.mxu0 %v1387
  %3326 = vmatprep.subr.bf16.mxu0 %v1392
  %3327 = vmatpush1.bf16.msra.mxu0 %v1391
  %3328 = vmatprep.subr.bf16.mxu0 0
  %3329 = vmatpush1.bf16.msra.mxu0 0
  %3330 = vmatprep.subr.bf16.mxu0 0
  %3331 = vmatpush1.bf16.msra.mxu0 0
  %3332 = vmatprep.subr.bf16.mxu0 0
  %3333 = vmatpush1.bf16.msra.mxu0 0
  %3334 = vmatprep.subr.bf16.mxu0 0
  %3335 = vmatpush1.bf16.msra.mxu0 0
  %3336 = vmatprep.subr.bf16.mxu0 0
  %3337 = vmatpush1.bf16.msra.mxu0 0
  %3338 = vmatprep.subr.bf16.mxu0 0
  %3339 = vmatpush1.bf16.msra.mxu0 0
  %3340 = vmatprep.subr.bf16.mxu0 0
  %3341 = vmatpush1.bf16.msra.mxu0 0
  %3342 = vmatprep.subr.bf16.mxu0 0
  %3343 = vmatpush1.bf16.msra.mxu0 0
  %3344 = vmatprep.mubr.bf16.mxu0 0
  %3345 = vmatmul.mubr.bf16.gmra.mrb[0].mxu0 %v3163
  %v3346 = vpop.f32.mrb[0].mxu0
  %v3347 = vadd.f32 0.0, %v3346
  %v3348 = vpop.f32.mrb[0].mxu0
  %v3349 = vadd.f32 0.0, %v3348
  %v3350 = vpop.f32.mrb[0].mxu0
  %v3351 = vpop.f32.mrb[0].mxu0
  %3352 = vdwg.mxu0
  %v3353 = vadd.f32 %v1188, %v3306
  %v3354 = vadd.f32 %v1190, %v3308
  %v3355 = vadd.f32 %v1261, %v3347
  %v3356 = vadd.f32 %v1263, %v3349
  %v3357 = vxor.u32 %v3353, 2147483648
  %v3358 = vxor.u32 %v3354, 2147483648
  %v3359 = vxor.u32 %v3355, 2147483648
  %v3360 = vmul.f32 %v3357, 1.442695
  %v3361 = vpow.pop %v3360
  %v3362 = vmul.f32 %v3358, 1.442695
  %v3363 = vpow.pop %v3362
  %v3364 = vmul.f32 %v3359, 1.442695
  %v3365 = vpow.pop %v3364
  %v3366 = vadd.f32 %v3361, 1.0
  %v3367 = vadd.f32 %v3363, 1.0
  %v3368 = vadd.f32 %v3365, 1.0
  %v3369 = vrcp.pop %v3366
  %v3370 = vmul.f32 1.0, %v3369
  %v3371 = vrcp.pop %v3367
  %v3372 = vmul.f32 1.0, %v3371
  %v3373 = vrcp.pop %v3368
  %v3374 = vmul.f32 1.0, %v3373
  %v3375 = vtanh.pop %v3356
  %v3376 = vmul.f32 %v3372, %v3160
  %v3377 = vmul.f32 %v3370, %v3375
  %v3378 = vadd.f32 %v3376, %v3377
  %v3379 = vtanh.pop %v3378
  %v3380 = vmul.f32 %v3374, %v3379
  %v3381 = vpack.c.bf16 %v3380, %v3380
  %v3382 = vpack.c.bf16 %v3270, %v3270
  %3383 = vmatprep.subr.bf16.mxu0 %v1730
  %3384 = vmatpush1.bf16.msra.mxu0 %v1729
  %3385 = vmatprep.subr.bf16.mxu0 %v1734
  %3386 = vmatpush1.bf16.msra.mxu0 %v1733
  %3387 = vmatprep.subr.bf16.mxu0 %v1738
  %3388 = vmatpush1.bf16.msra.mxu0 %v1737
  %3389 = vmatprep.subr.bf16.mxu0 %v1742
  %3390 = vmatpush1.bf16.msra.mxu0 %v1741
  %3391 = vmatprep.subr.bf16.mxu0 %v1746
  %3392 = vmatpush1.bf16.msra.mxu0 %v1745
  %3393 = vmatprep.subr.bf16.mxu0 %v1750
  %3394 = vmatpush1.bf16.msra.mxu0 %v1749
  %3395 = vmatprep.subr.bf16.mxu0 %v1754
  %3396 = vmatpush1.bf16.msra.mxu0 %v1753
  %3397 = vmatprep.subr.bf16.mxu0 %v1758
  %3398 = vmatpush1.bf16.msra.mxu0 %v1757
  %3399 = vmatprep.subr.bf16.mxu0 %v1762
  %3400 = vmatpush1.bf16.msra.mxu0 %v1761
  %3401 = vmatprep.subr.bf16.mxu0 %v1766
  %3402 = vmatpush1.bf16.msra.mxu0 %v1765
  %3403 = vmatprep.subr.bf16.mxu0 %v1770
  %3404 = vmatpush1.bf16.msra.mxu0 %v1769
  %3405 = vmatprep.subr.bf16.mxu0 %v1774
  %3406 = vmatpush1.bf16.msra.mxu0 %v1773
  %3407 = vmatprep.subr.bf16.mxu0 %v1778
  %3408 = vmatpush1.bf16.msra.mxu0 %v1777
  %3409 = vmatprep.subr.bf16.mxu0 %v1782
  %3410 = vmatpush1.bf16.msra.mxu0 %v1781
  %3411 = vmatprep.subr.bf16.mxu0 %v1786
  %3412 = vmatpush1.bf16.msra.mxu0 %v1785
  %3413 = vmatprep.subr.bf16.mxu0 %v1790
  %3414 = vmatpush1.bf16.msra.mxu0 %v1789
  %3415 = vmatprep.mubr.bf16.mxu0 %v3382
  %3416 = vmatmul.mubr.bf16.gmra.mrb[0].mxu0 %v3381
  %v3417 = vpop.f32.mrb[0].mxu0
  %v3418 = vadd.f32 %v909, %v3417
  %v3419 = vpop.f32.mrb[0].mxu0
  %v3420 = vadd.f32 %v913, %v3419
  %v3421 = vpop.f32.mrb[0].mxu0
  %v3422 = vpop.f32.mrb[0].mxu0
  %3423 = vdwg.mxu0
  %3424 = vmatprep.subr.bf16.mxu0 %v1732
  %3425 = vmatpush1.bf16.msra.mxu0 %v1731
  %3426 = vmatprep.subr.bf16.mxu0 %v1736
  %3427 = vmatpush1.bf16.msra.mxu0 %v1735
  %3428 = vmatprep.subr.bf16.mxu0 %v1740
  %3429 = vmatpush1.bf16.msra.mxu0 %v1739
  %3430 = vmatprep.subr.bf16.mxu0 %v1744
  %3431 = vmatpush1.bf16.msra.mxu0 %v1743
  %3432 = vmatprep.subr.bf16.mxu0 %v1748
  %3433 = vmatpush1.bf16.msra.mxu0 %v1747
  %3434 = vmatprep.subr.bf16.mxu0 %v1752
  %3435 = vmatpush1.bf16.msra.mxu0 %v1751
  %3436 = vmatprep.subr.bf16.mxu0 %v1756
  %3437 = vmatpush1.bf16.msra.mxu0 %v1755
  %3438 = vmatprep.subr.bf16.mxu0 %v1760
  %3439 = vmatpush1.bf16.msra.mxu0 %v1759
  %3440 = vmatprep.subr.bf16.mxu0 %v1764
  %3441 = vmatpush1.bf16.msra.mxu0 %v1763
  %3442 = vmatprep.subr.bf16.mxu0 %v1768
  %3443 = vmatpush1.bf16.msra.mxu0 %v1767
  %3444 = vmatprep.subr.bf16.mxu0 %v1772
  %3445 = vmatpush1.bf16.msra.mxu0 %v1771
  %3446 = vmatprep.subr.bf16.mxu0 %v1776
  %3447 = vmatpush1.bf16.msra.mxu0 %v1775
  %3448 = vmatprep.subr.bf16.mxu0 %v1780
  %3449 = vmatpush1.bf16.msra.mxu0 %v1779
  %3450 = vmatprep.subr.bf16.mxu0 %v1784
  %3451 = vmatpush1.bf16.msra.mxu0 %v1783
  %3452 = vmatprep.subr.bf16.mxu0 %v1788
  %3453 = vmatpush1.bf16.msra.mxu0 %v1787
  %3454 = vmatprep.subr.bf16.mxu0 %v1792
  %3455 = vmatpush1.bf16.msra.mxu0 %v1791
  %3456 = vmatprep.mubr.bf16.mxu0 %v3382
  %3457 = vmatmul.mubr.bf16.gmra.mrb[0].mxu0 %v3381
  %v3458 = vpop.f32.mrb[0].mxu0
  %v3459 = vadd.f32 %v917, %v3458
  %v3460 = vpop.f32.mrb[0].mxu0
  %v3461 = vadd.f32 %v921, %v3460
  %v3462 = vpop.f32.mrb[0].mxu0
  %v3463 = vpop.f32.mrb[0].mxu0
  %3464 = vdwg.mxu0
  %v3465 = vxor.u32 %v3418, 2147483648
  %v3466 = vxor.u32 %v3420, 2147483648
  %v3467 = vxor.u32 %v3459, 2147483648
  %v3468 = vmul.f32 %v3465, 1.442695
  %v3469 = vpow.pop %v3468
  %v3470 = vmul.f32 %v3466, 1.442695
  %v3471 = vpow.pop %v3470
  %v3472 = vmul.f32 %v3467, 1.442695
  %v3473 = vpow.pop %v3472
  %v3474 = vadd.f32 %v3469, 1.0
  %v3475 = vadd.f32 %v3471, 1.0
  %v3476 = vadd.f32 %v3473, 1.0
  %v3477 = vrcp.pop %v3474
  %v3478 = vmul.f32 1.0, %v3477
  %v3479 = vrcp.pop %v3475
  %v3480 = vmul.f32 1.0, %v3479
  %v3481 = vrcp.pop %v3476
  %v3482 = vmul.f32 1.0, %v3481
  %v3483 = vtanh.pop %v3461
  %v3484 = vmul.f32 %v3480, %v3268
  %v3485 = vmul.f32 %v3478, %v3483
  %v3486 = vadd.f32 %v3484, %v3485
  %v3487 = vtanh.pop %v3486
  %v3488 = vmul.f32 %v3482, %v3487
  %v3489 = vld [vmem:[%s5] sm:$0xff]
  %v3490 = vld [vmem:[%s2] sm:$0xff]
  %v3491 = vld [vmem:[%s2 + $0x8] sm:$0xff]
  %v3492 = vpack.c.bf16 %v3489, %v3489
  %v3493 = vpack.c.bf16 %v3491, %v3490
  %vm3494 = vcmask 130048
  %v3496 = vsel %vm3494, %v3492, 0
  %3498 = vmatprep.subr.bf16.mxu0 0
  %3499 = vmatpush1.bf16.msra.mxu0 %v3493
  %3500 = vmatprep.subr.bf16.mxu0 0
  %3501 = vmatpush1.bf16.msra.mxu0 0
  %3502 = vmatprep.subr.bf16.mxu0 0
  %3503 = vmatpush1.bf16.msra.mxu0 0
  %3504 = vmatprep.subr.bf16.mxu0 0
  %3505 = vmatpush1.bf16.msra.mxu0 0
  %3506 = vmatprep.subr.bf16.mxu0 0
  %3507 = vmatpush1.bf16.msra.mxu0 0
  %3508 = vmatprep.subr.bf16.mxu0 0
  %3509 = vmatpush1.bf16.msra.mxu0 0
  %3510 = vmatprep.subr.bf16.mxu0 0
  %3511 = vmatpush1.bf16.msra.mxu0 0
  %3512 = vmatprep.subr.bf16.mxu0 0
  %3513 = vmatpush1.bf16.msra.mxu0 0
  %3514 = vmatprep.subr.bf16.mxu0 0
  %3515 = vmatpush1.bf16.msra.mxu0 0
  %3516 = vmatprep.subr.bf16.mxu0 0
  %3517 = vmatpush1.bf16.msra.mxu0 0
  %3518 = vmatprep.subr.bf16.mxu0 0
  %3519 = vmatpush1.bf16.msra.mxu0 0
  %3520 = vmatprep.subr.bf16.mxu0 0
  %3521 = vmatpush1.bf16.msra.mxu0 0
  %3522 = vmatprep.subr.bf16.mxu0 0
  %3523 = vmatpush1.bf16.msra.mxu0 0
  %3524 = vmatprep.subr.bf16.mxu0 0
  %3525 = vmatpush1.bf16.msra.mxu0 0
  %3526 = vmatprep.subr.bf16.mxu0 0
  %3527 = vmatpush1.bf16.msra.mxu0 0
  %3528 = vmatprep.subr.bf16.mxu0 0
  %3529 = vmatpush1.bf16.msra.mxu0 0
  %3530 = vmatprep.mubr.bf16.mxu0 0
  %3531 = vmatmul.mubr.bf16.gmra.mrb[0].mxu0 %v3496
  %v3532 = vpop.f32.mrb[0].mxu0
  %v3533 = vadd.f32 0.0, %v3532
  %v3534 = vpop.f32.mrb[0].mxu0
  %v3535 = vpop.f32.mrb[0].mxu0
  %v3536 = vpop.f32.mrb[0].mxu0
  %3537 = vdwg.mxu0
  %s3538 = scalar_lea.vmem %s6, 128
  %v3539 = vld [vmem:[%s3538] sm:$0xf]
  %v3540 = vld [vmem:[%s3538 + $0x4] sm:$0xf]
  %v3541 = vld [vmem:[%s3538 + $0x8] sm:$0xf]
  %v3542 = vld [vmem:[%s3538 + $0xc] sm:$0xf]
  %v3543 = vld [vmem:[%s3538 + $0x10] sm:$0xf]
  %v3544 = vld [vmem:[%s3538 + $0x14] sm:$0xf]
  %v3545 = vld [vmem:[%s3538 + $0x18] sm:$0xf]
  %v3546 = vld [vmem:[%s3538 + $0x1c] sm:$0xf]
  %v3547 = vld [vmem:[%s3538 + $0x20] sm:$0xf]
  %v3548 = vld [vmem:[%s3538 + $0x24] sm:$0xf]
  %v3549 = vld [vmem:[%s3538 + $0x28] sm:$0xf]
  %v3550 = vld [vmem:[%s3538 + $0x2c] sm:$0xf]
  %v3551 = vld [vmem:[%s3538 + $0x30] sm:$0xf]
  %v3552 = vld [vmem:[%s3538 + $0x34] sm:$0xf]
  %v3553 = vld [vmem:[%s3538 + $0x38] sm:$0xf]
  %v3554 = vld [vmem:[%s3538 + $0x3c] sm:$0xf]
  %v3555 = vpack.c.bf16 %v3533, %v3533
  %v3556 = vld [vmem:[%s8 + $0x4] ss:$0 sm:$0xff]
  %v3573 = vunpack.c.l.b16 %v3539
  %v3574 = vunpack.c.l.b16 %v3540
  %v3575 = vunpack.c.l.b16 %v3541
  %v3576 = vunpack.c.l.b16 %v3542
  %v3577 = vunpack.c.l.b16 %v3543
  %v3578 = vunpack.c.l.b16 %v3544
  %v3579 = vunpack.c.l.b16 %v3545
  %v3580 = vunpack.c.l.b16 %v3546
  %v3581 = vunpack.c.l.b16 %v3547
  %v3582 = vunpack.c.l.b16 %v3548
  %v3583 = vunpack.c.l.b16 %v3549
  %v3584 = vunpack.c.l.b16 %v3550
  %v3585 = vunpack.c.l.b16 %v3551
  %v3586 = vunpack.c.l.b16 %v3552
  %v3587 = vunpack.c.l.b16 %v3553
  %v3588 = vunpack.c.l.b16 %v3554
  %v3589 = vpack.c.b16 %v3574, %v3573
  %v3590 = vpack.c.b16 %v3576, %v3575
  %v3591 = vpack.c.b16 %v3578, %v3577
  %v3592 = vpack.c.b16 %v3580, %v3579
  %v3593 = vpack.c.b16 %v3582, %v3581
  %v3594 = vpack.c.b16 %v3584, %v3583
  %v3595 = vpack.c.b16 %v3586, %v3585
  %v3596 = vpack.c.b16 %v3588, %v3587
  %3605 = vmatprep.subr.bf16.mxu0 0
  %3606 = vmatpush1.bf16.msra.mxu0 %v3589
  %3607 = vmatprep.subr.bf16.mxu0 0
  %3608 = vmatpush1.bf16.msra.mxu0 %v3590
  %3609 = vmatprep.subr.bf16.mxu0 0
  %3610 = vmatpush1.bf16.msra.mxu0 %v3591
  %3611 = vmatprep.subr.bf16.mxu0 0
  %3612 = vmatpush1.bf16.msra.mxu0 %v3592
  %3613 = vmatprep.subr.bf16.mxu0 0
  %3614 = vmatpush1.bf16.msra.mxu0 %v3593
  %3615 = vmatprep.subr.bf16.mxu0 0
  %3616 = vmatpush1.bf16.msra.mxu0 %v3594
  %3617 = vmatprep.subr.bf16.mxu0 0
  %3618 = vmatpush1.bf16.msra.mxu0 %v3595
  %3619 = vmatprep.subr.bf16.mxu0 0
  %3620 = vmatpush1.bf16.msra.mxu0 %v3596
  %3621 = vmatprep.subr.bf16.mxu0 0
  %3622 = vmatpush1.bf16.msra.mxu0 0
  %3623 = vmatprep.subr.bf16.mxu0 0
  %3624 = vmatpush1.bf16.msra.mxu0 0
  %3625 = vmatprep.subr.bf16.mxu0 0
  %3626 = vmatpush1.bf16.msra.mxu0 0
  %3627 = vmatprep.subr.bf16.mxu0 0
  %3628 = vmatpush1.bf16.msra.mxu0 0
  %3629 = vmatprep.subr.bf16.mxu0 0
  %3630 = vmatpush1.bf16.msra.mxu0 0
  %3631 = vmatprep.subr.bf16.mxu0 0
  %3632 = vmatpush1.bf16.msra.mxu0 0
  %3633 = vmatprep.subr.bf16.mxu0 0
  %3634 = vmatpush1.bf16.msra.mxu0 0
  %3635 = vmatprep.subr.bf16.mxu0 0
  %3636 = vmatpush1.bf16.msra.mxu0 0
  %3637 = vmatprep.mubr.bf16.mxu0 0
  %3638 = vmatmul.mubr.bf16.gmra.mrb[0].mxu0 %v3555
  %v3639 = vpop.f32.mrb[0].mxu0
  %v3640 = vadd.f32 %v3556, %v3639
  %v3641 = vpop.f32.mrb[0].mxu0
  %v3642 = vpop.f32.mrb[0].mxu0
  %v3643 = vpop.f32.mrb[0].mxu0
  %3644 = vdwg.mxu0
  %v3645 = vld [vmem:[%s3] sm:$0xff]
  %s3646 = scalar_lea.vmem %s6, 192
  %v3647 = vld [vmem:[%s3646] sm:$0xf]
  %v3648 = vld [vmem:[%s3646 + $0x4] sm:$0xf]
  %v3649 = vld [vmem:[%s3646 + $0x8] sm:$0xf]
  %v3650 = vld [vmem:[%s3646 + $0xc] sm:$0xf]
  %v3651 = vld [vmem:[%s3646 + $0x10] sm:$0xf]
  %v3652 = vld [vmem:[%s3646 + $0x14] sm:$0xf]
  %v3653 = vld [vmem:[%s3646 + $0x18] sm:$0xf]
  %v3654 = vld [vmem:[%s3646 + $0x1c] sm:$0xf]
  %v3655 = vld [vmem:[%s3646 + $0x20] sm:$0xf]
  %v3656 = vld [vmem:[%s3646 + $0x24] sm:$0xf]
  %v3657 = vld [vmem:[%s3646 + $0x28] sm:$0xf]
  %v3658 = vld [vmem:[%s3646 + $0x2c] sm:$0xf]
  %v3659 = vld [vmem:[%s3646 + $0x30] sm:$0xf]
  %v3660 = vld [vmem:[%s3646 + $0x34] sm:$0xf]
  %v3661 = vld [vmem:[%s3646 + $0x38] sm:$0xf]
  %v3662 = vld [vmem:[%s3646 + $0x3c] sm:$0xf]
  %v3663 = vpack.c.bf16 %v3645, %v3645
  %v3664 = vld [vmem:[%s8 + $0x5] ss:$0 sm:$0xff]
  %v3681 = vunpack.c.l.b16 %v3647
  %v3682 = vunpack.c.l.b16 %v3648
  %v3683 = vunpack.c.l.b16 %v3649
  %v3684 = vunpack.c.l.b16 %v3650
  %v3685 = vunpack.c.l.b16 %v3651
  %v3686 = vunpack.c.l.b16 %v3652
  %v3687 = vunpack.c.l.b16 %v3653
  %v3688 = vunpack.c.l.b16 %v3654
  %v3689 = vunpack.c.l.b16 %v3655
  %v3690 = vunpack.c.l.b16 %v3656
  %v3691 = vunpack.c.l.b16 %v3657
  %v3692 = vunpack.c.l.b16 %v3658
  %v3693 = vunpack.c.l.b16 %v3659
  %v3694 = vunpack.c.l.b16 %v3660
  %v3695 = vunpack.c.l.b16 %v3661
  %v3696 = vunpack.c.l.b16 %v3662
  %v3697 = vpack.c.b16 %v3682, %v3681
  %v3698 = vpack.c.b16 %v3684, %v3683
  %v3699 = vpack.c.b16 %v3686, %v3685
  %v3700 = vpack.c.b16 %v3688, %v3687
  %v3701 = vpack.c.b16 %v3690, %v3689
  %v3702 = vpack.c.b16 %v3692, %v3691
  %v3703 = vpack.c.b16 %v3694, %v3693
  %v3704 = vpack.c.b16 %v3696, %v3695
  %3713 = vmatprep.subr.bf16.mxu0 0
  %3714 = vmatpush1.bf16.msra.mxu0 %v3697
  %3715 = vmatprep.subr.bf16.mxu0 0
  %3716 = vmatpush1.bf16.msra.mxu0 %v3698
  %3717 = vmatprep.subr.bf16.mxu0 0
  %3718 = vmatpush1.bf16.msra.mxu0 %v3699
  %3719 = vmatprep.subr.bf16.mxu0 0
  %3720 = vmatpush1.bf16.msra.mxu0 %v3700
  %3721 = vmatprep.subr.bf16.mxu0 0
  %3722 = vmatpush1.bf16.msra.mxu0 %v3701
  %3723 = vmatprep.subr.bf16.mxu0 0
  %3724 = vmatpush1.bf16.msra.mxu0 %v3702
  %3725 = vmatprep.subr.bf16.mxu0 0
  %3726 = vmatpush1.bf16.msra.mxu0 %v3703
  %3727 = vmatprep.subr.bf16.mxu0 0
  %3728 = vmatpush1.bf16.msra.mxu0 %v3704
  %3729 = vmatprep.subr.bf16.mxu0 0
  %3730 = vmatpush1.bf16.msra.mxu0 0
  %3731 = vmatprep.subr.bf16.mxu0 0
  %3732 = vmatpush1.bf16.msra.mxu0 0
  %3733 = vmatprep.subr.bf16.mxu0 0
  %3734 = vmatpush1.bf16.msra.mxu0 0
  %3735 = vmatprep.subr.bf16.mxu0 0
  %3736 = vmatpush1.bf16.msra.mxu0 0
  %3737 = vmatprep.subr.bf16.mxu0 0
  %3738 = vmatpush1.bf16.msra.mxu0 0
  %3739 = vmatprep.subr.bf16.mxu0 0
  %3740 = vmatpush1.bf16.msra.mxu0 0
  %3741 = vmatprep.subr.bf16.mxu0 0
  %3742 = vmatpush1.bf16.msra.mxu0 0
  %3743 = vmatprep.subr.bf16.mxu0 0
  %3744 = vmatpush1.bf16.msra.mxu0 0
  %3745 = vmatprep.mubr.bf16.mxu0 0
  %3746 = vmatmul.mubr.bf16.gmra.mrb[0].mxu0 %v3663
  %v3747 = vpop.f32.mrb[0].mxu0
  %v3748 = vadd.f32 %v3664, %v3747
  %v3749 = vpop.f32.mrb[0].mxu0
  %v3750 = vpop.f32.mrb[0].mxu0
  %v3751 = vpop.f32.mrb[0].mxu0
  %3752 = vdwg.mxu0
  %v3753 = vtanh.pop %v3748
  %s3754 = scalar_lea.vmem %s6, 256
  %v3755 = vld [vmem:[%s3754] sm:$0xf]
  %v3756 = vld [vmem:[%s3754 + $0x4] sm:$0xf]
  %v3757 = vld [vmem:[%s3754 + $0x8] sm:$0xf]
  %v3758 = vld [vmem:[%s3754 + $0xc] sm:$0xf]
  %v3759 = vld [vmem:[%s3754 + $0x10] sm:$0xf]
  %v3760 = vld [vmem:[%s3754 + $0x14] sm:$0xf]
  %v3761 = vld [vmem:[%s3754 + $0x18] sm:$0xf]
  %v3762 = vld [vmem:[%s3754 + $0x1c] sm:$0xf]
  %v3763 = vld [vmem:[%s3754 + $0x20] sm:$0xf]
  %v3764 = vld [vmem:[%s3754 + $0x24] sm:$0xf]
  %v3765 = vld [vmem:[%s3754 + $0x28] sm:$0xf]
  %v3766 = vld [vmem:[%s3754 + $0x2c] sm:$0xf]
  %v3767 = vld [vmem:[%s3754 + $0x30] sm:$0xf]
  %v3768 = vld [vmem:[%s3754 + $0x34] sm:$0xf]
  %v3769 = vld [vmem:[%s3754 + $0x38] sm:$0xf]
  %v3770 = vld [vmem:[%s3754 + $0x3c] sm:$0xf]
  %v3771 = vpack.c.bf16 %v3640, %v3640
  %v3772 = vld [vmem:[%s8 + $0x6] ss:$0 sm:$0xff]
  %v3789 = vunpack.c.l.b16 %v3755
  %v3790 = vunpack.c.l.b16 %v3756
  %v3791 = vunpack.c.l.b16 %v3757
  %v3792 = vunpack.c.l.b16 %v3758
  %v3793 = vunpack.c.l.b16 %v3759
  %v3794 = vunpack.c.l.b16 %v3760
  %v3795 = vunpack.c.l.b16 %v3761
  %v3796 = vunpack.c.l.b16 %v3762
  %v3797 = vunpack.c.l.b16 %v3763
  %v3798 = vunpack.c.l.b16 %v3764
  %v3799 = vunpack.c.l.b16 %v3765
  %v3800 = vunpack.c.l.b16 %v3766
  %v3801 = vunpack.c.l.b16 %v3767
  %v3802 = vunpack.c.l.b16 %v3768
  %v3803 = vunpack.c.l.b16 %v3769
  %v3804 = vunpack.c.l.b16 %v3770
  %v3805 = vpack.c.b16 %v3790, %v3789
  %v3806 = vpack.c.b16 %v3792, %v3791
  %v3807 = vpack.c.b16 %v3794, %v3793
  %v3808 = vpack.c.b16 %v3796, %v3795
  %v3809 = vpack.c.b16 %v3798, %v3797
  %v3810 = vpack.c.b16 %v3800, %v3799
  %v3811 = vpack.c.b16 %v3802, %v3801
  %v3812 = vpack.c.b16 %v3804, %v3803
  %3821 = vmatprep.subr.bf16.mxu0 0
  %3822 = vmatpush1.bf16.msra.mxu0 %v3805
  %3823 = vmatprep.subr.bf16.mxu0 0
  %3824 = vmatpush1.bf16.msra.mxu0 %v3806
  %3825 = vmatprep.subr.bf16.mxu0 0
  %3826 = vmatpush1.bf16.msra.mxu0 %v3807
  %3827 = vmatprep.subr.bf16.mxu0 0
  %3828 = vmatpush1.bf16.msra.mxu0 %v3808
  %3829 = vmatprep.subr.bf16.mxu0 0
  %3830 = vmatpush1.bf16.msra.mxu0 %v3809
  %3831 = vmatprep.subr.bf16.mxu0 0
  %3832 = vmatpush1.bf16.msra.mxu0 %v3810
  %3833 = vmatprep.subr.bf16.mxu0 0
  %3834 = vmatpush1.bf16.msra.mxu0 %v3811
  %3835 = vmatprep.subr.bf16.mxu0 0
  %3836 = vmatpush1.bf16.msra.mxu0 %v3812
  %3837 = vmatprep.subr.bf16.mxu0 0
  %3838 = vmatpush1.bf16.msra.mxu0 0
  %3839 = vmatprep.subr.bf16.mxu0 0
  %3840 = vmatpush1.bf16.msra.mxu0 0
  %3841 = vmatprep.subr.bf16.mxu0 0
  %3842 = vmatpush1.bf16.msra.mxu0 0
  %3843 = vmatprep.subr.bf16.mxu0 0
  %3844 = vmatpush1.bf16.msra.mxu0 0
  %3845 = vmatprep.subr.bf16.mxu0 0
  %3846 = vmatpush1.bf16.msra.mxu0 0
  %3847 = vmatprep.subr.bf16.mxu0 0
  %3848 = vmatpush1.bf16.msra.mxu0 0
  %3849 = vmatprep.subr.bf16.mxu0 0
  %3850 = vmatpush1.bf16.msra.mxu0 0
  %3851 = vmatprep.subr.bf16.mxu0 0
  %3852 = vmatpush1.bf16.msra.mxu0 0
  %3853 = vmatprep.mubr.bf16.mxu0 0
  %3854 = vmatmul.mubr.bf16.gmra.mrb[0].mxu0 %v3771
  %v3855 = vpop.f32.mrb[0].mxu0
  %v3856 = vadd.f32 %v3772, %v3855
  %v3857 = vpop.f32.mrb[0].mxu0
  %v3858 = vpop.f32.mrb[0].mxu0
  %v3859 = vpop.f32.mrb[0].mxu0
  %3860 = vdwg.mxu0
  %s3861 = scalar_lea.vmem %s6, 320
  %v3862 = vld [vmem:[%s3861] sm:$0xf]
  %v3863 = vld [vmem:[%s3861 + $0x4] sm:$0xf]
  %v3864 = vld [vmem:[%s3861 + $0x8] sm:$0xf]
  %v3865 = vld [vmem:[%s3861 + $0xc] sm:$0xf]
  %v3866 = vld [vmem:[%s3861 + $0x10] sm:$0xf]
  %v3867 = vld [vmem:[%s3861 + $0x14] sm:$0xf]
  %v3868 = vld [vmem:[%s3861 + $0x18] sm:$0xf]
  %v3869 = vld [vmem:[%s3861 + $0x1c] sm:$0xf]
  %v3870 = vld [vmem:[%s3861 + $0x20] sm:$0xf]
  %v3871 = vld [vmem:[%s3861 + $0x24] sm:$0xf]
  %v3872 = vld [vmem:[%s3861 + $0x28] sm:$0xf]
  %v3873 = vld [vmem:[%s3861 + $0x2c] sm:$0xf]
  %v3874 = vld [vmem:[%s3861 + $0x30] sm:$0xf]
  %v3875 = vld [vmem:[%s3861 + $0x34] sm:$0xf]
  %v3876 = vld [vmem:[%s3861 + $0x38] sm:$0xf]
  %v3877 = vld [vmem:[%s3861 + $0x3c] sm:$0xf]
  %v3878 = vpack.c.bf16 %v769, %v769
  %s3879 = scalar_lea.vmem %s6, 384
  %v3880 = vld [vmem:[%s3879] sm:$0xf]
  %v3881 = vld [vmem:[%s3879 + $0x4] sm:$0xf]
  %v3882 = vld [vmem:[%s3879 + $0x8] sm:$0xf]
  %v3883 = vld [vmem:[%s3879 + $0xc] sm:$0xf]
  %v3884 = vld [vmem:[%s3879 + $0x10] sm:$0xf]
  %v3885 = vld [vmem:[%s3879 + $0x14] sm:$0xf]
  %v3886 = vld [vmem:[%s3879 + $0x18] sm:$0xf]
  %v3887 = vld [vmem:[%s3879 + $0x1c] sm:$0xf]
  %v3888 = vld [vmem:[%s3879 + $0x20] sm:$0xf]
  %v3889 = vld [vmem:[%s3879 + $0x24] sm:$0xf]
  %v3890 = vld [vmem:[%s3879 + $0x28] sm:$0xf]
  %v3891 = vld [vmem:[%s3879 + $0x2c] sm:$0xf]
  %v3892 = vld [vmem:[%s3879 + $0x30] sm:$0xf]
  %v3893 = vld [vmem:[%s3879 + $0x34] sm:$0xf]
  %v3894 = vld [vmem:[%s3879 + $0x38] sm:$0xf]
  %v3895 = vld [vmem:[%s3879 + $0x3c] sm:$0xf]
  %v3896 = vpack.c.bf16 %v3488, %v3488
  %v3913 = vunpack.c.l.b16 %v3880
  %v3914 = vunpack.c.l.b16 %v3881
  %v3915 = vunpack.c.l.b16 %v3882
  %v3916 = vunpack.c.l.b16 %v3883
  %v3917 = vunpack.c.l.b16 %v3884
  %v3918 = vunpack.c.l.b16 %v3885
  %v3919 = vunpack.c.l.b16 %v3886
  %v3920 = vunpack.c.l.b16 %v3887
  %v3921 = vunpack.c.l.b16 %v3888
  %v3922 = vunpack.c.l.b16 %v3889
  %v3923 = vunpack.c.l.b16 %v3890
  %v3924 = vunpack.c.l.b16 %v3891
  %v3925 = vunpack.c.l.b16 %v3892
  %v3926 = vunpack.c.l.b16 %v3893
  %v3927 = vunpack.c.l.b16 %v3894
  %v3928 = vunpack.c.l.b16 %v3895
  %v3929 = vpack.c.b16 %v3914, %v3913
  %v3930 = vpack.c.b16 %v3916, %v3915
  %v3931 = vpack.c.b16 %v3918, %v3917
  %v3932 = vpack.c.b16 %v3920, %v3919
  %v3933 = vpack.c.b16 %v3922, %v3921
  %v3934 = vpack.c.b16 %v3924, %v3923
  %v3935 = vpack.c.b16 %v3926, %v3925
  %v3936 = vpack.c.b16 %v3928, %v3927
  %3945 = vmatprep.subr.bf16.mxu0 0
  %3946 = vmatpush1.bf16.msra.mxu0 %v3929
  %3947 = vmatprep.subr.bf16.mxu0 0
  %3948 = vmatpush1.bf16.msra.mxu0 %v3930
  %3949 = vmatprep.subr.bf16.mxu0 0
  %3950 = vmatpush1.bf16.msra.mxu0 %v3931
  %3951 = vmatprep.subr.bf16.mxu0 0
  %3952 = vmatpush1.bf16.msra.mxu0 %v3932
  %3953 = vmatprep.subr.bf16.mxu0 0
  %3954 = vmatpush1.bf16.msra.mxu0 %v3933
  %3955 = vmatprep.subr.bf16.mxu0 0
  %3956 = vmatpush1.bf16.msra.mxu0 %v3934
  %3957 = vmatprep.subr.bf16.mxu0 0
  %3958 = vmatpush1.bf16.msra.mxu0 %v3935
  %3959 = vmatprep.subr.bf16.mxu0 0
  %3960 = vmatpush1.bf16.msra.mxu0 %v3936
  %3961 = vmatprep.subr.bf16.mxu0 0
  %3962 = vmatpush1.bf16.msra.mxu0 0
  %3963 = vmatprep.subr.bf16.mxu0 0
  %3964 = vmatpush1.bf16.msra.mxu0 0
  %3965 = vmatprep.subr.bf16.mxu0 0
  %3966 = vmatpush1.bf16.msra.mxu0 0
  %3967 = vmatprep.subr.bf16.mxu0 0
  %3968 = vmatpush1.bf16.msra.mxu0 0
  %3969 = vmatprep.subr.bf16.mxu0 0
  %3970 = vmatpush1.bf16.msra.mxu0 0
  %3971 = vmatprep.subr.bf16.mxu0 0
  %3972 = vmatpush1.bf16.msra.mxu0 0
  %3973 = vmatprep.subr.bf16.mxu0 0
  %3974 = vmatpush1.bf16.msra.mxu0 0
  %3975 = vmatprep.subr.bf16.mxu0 0
  %3976 = vmatpush1.bf16.msra.mxu0 0
  %3977 = vmatprep.mubr.bf16.mxu0 0
  %3978 = vmatmul.mubr.bf16.gmra.mrb[0].mxu0 %v3896
  %v3979 = vpop.f32.mrb[0].mxu0
  %v3980 = vadd.f32 0.0, %v3979
  %v3981 = vpop.f32.mrb[0].mxu0
  %v3982 = vpop.f32.mrb[0].mxu0
  %v3983 = vpop.f32.mrb[0].mxu0
  %3984 = vdwg.mxu0
  %v4001 = vunpack.c.l.b16 %v3862
  %v4002 = vunpack.c.l.b16 %v3863
  %v4003 = vunpack.c.l.b16 %v3864
  %v4004 = vunpack.c.l.b16 %v3865
  %v4005 = vunpack.c.l.b16 %v3866
  %v4006 = vunpack.c.l.b16 %v3867
  %v4007 = vunpack.c.l.b16 %v3868
  %v4008 = vunpack.c.l.b16 %v3869
  %v4009 = vunpack.c.l.b16 %v3870
  %v4010 = vunpack.c.l.b16 %v3871
  %v4011 = vunpack.c.l.b16 %v3872
  %v4012 = vunpack.c.l.b16 %v3873
  %v4013 = vunpack.c.l.b16 %v3874
  %v4014 = vunpack.c.l.b16 %v3875
  %v4015 = vunpack.c.l.b16 %v3876
  %v4016 = vunpack.c.l.b16 %v3877
  %v4017 = vpack.c.b16 %v4002, %v4001
  %v4018 = vpack.c.b16 %v4004, %v4003
  %v4019 = vpack.c.b16 %v4006, %v4005
  %v4020 = vpack.c.b16 %v4008, %v4007
  %v4021 = vpack.c.b16 %v4010, %v4009
  %v4022 = vpack.c.b16 %v4012, %v4011
  %v4023 = vpack.c.b16 %v4014, %v4013
  %v4024 = vpack.c.b16 %v4016, %v4015
  %4033 = vmatprep.subr.bf16.mxu0 0
  %4034 = vmatpush1.bf16.msra.mxu0 %v4017
  %4035 = vmatprep.subr.bf16.mxu0 0
  %4036 = vmatpush1.bf16.msra.mxu0 %v4018
  %4037 = vmatprep.subr.bf16.mxu0 0
  %4038 = vmatpush1.bf16.msra.mxu0 %v4019
  %4039 = vmatprep.subr.bf16.mxu0 0
  %4040 = vmatpush1.bf16.msra.mxu0 %v4020
  %4041 = vmatprep.subr.bf16.mxu0 0
  %4042 = vmatpush1.bf16.msra.mxu0 %v4021
  %4043 = vmatprep.subr.bf16.mxu0 0
  %4044 = vmatpush1.bf16.msra.mxu0 %v4022
  %4045 = vmatprep.subr.bf16.mxu0 0
  %4046 = vmatpush1.bf16.msra.mxu0 %v4023
  %4047 = vmatprep.subr.bf16.mxu0 0
  %4048 = vmatpush1.bf16.msra.mxu0 %v4024
  %4049 = vmatprep.subr.bf16.mxu0 0
  %4050 = vmatpush1.bf16.msra.mxu0 0
  %4051 = vmatprep.subr.bf16.mxu0 0
  %4052 = vmatpush1.bf16.msra.mxu0 0
  %4053 = vmatprep.subr.bf16.mxu0 0
  %4054 = vmatpush1.bf16.msra.mxu0 0
  %4055 = vmatprep.subr.bf16.mxu0 0
  %4056 = vmatpush1.bf16.msra.mxu0 0
  %4057 = vmatprep.subr.bf16.mxu0 0
  %4058 = vmatpush1.bf16.msra.mxu0 0
  %4059 = vmatprep.subr.bf16.mxu0 0
  %4060 = vmatpush1.bf16.msra.mxu0 0
  %4061 = vmatprep.subr.bf16.mxu0 0
  %4062 = vmatpush1.bf16.msra.mxu0 0
  %4063 = vmatprep.subr.bf16.mxu0 0
  %4064 = vmatpush1.bf16.msra.mxu0 0
  %4065 = vmatprep.mubr.bf16.mxu0 0
  %4066 = vmatmul.mubr.bf16.gmra.mrb[0].mxu0 %v3878
  %v4067 = vpop.f32.mrb[0].mxu0
  %v4068 = vadd.f32 %v3980, %v4067
  %v4069 = vpop.f32.mrb[0].mxu0
  %v4070 = vpop.f32.mrb[0].mxu0
  %v4071 = vpop.f32.mrb[0].mxu0
  %4072 = vdwg.mxu0
  %s4073 = scalar_lea.vmem %s6, 448
  %v4074 = vld [vmem:[%s4073] sm:$0xf]
  %v4075 = vld [vmem:[%s4073 + $0x4] sm:$0xf]
  %v4076 = vld [vmem:[%s4073 + $0x8] sm:$0xf]
  %v4077 = vld [vmem:[%s4073 + $0xc] sm:$0xf]
  %v4078 = vld [vmem:[%s4073 + $0x10] sm:$0xf]
  %v4079 = vld [vmem:[%s4073 + $0x14] sm:$0xf]
  %v4080 = vld [vmem:[%s4073 + $0x18] sm:$0xf]
  %v4081 = vld [vmem:[%s4073 + $0x1c] sm:$0xf]
  %v4082 = vld [vmem:[%s4073 + $0x20] sm:$0xf]
  %v4083 = vld [vmem:[%s4073 + $0x24] sm:$0xf]
  %v4084 = vld [vmem:[%s4073 + $0x28] sm:$0xf]
  %v4085 = vld [vmem:[%s4073 + $0x2c] sm:$0xf]
  %v4086 = vld [vmem:[%s4073 + $0x30] sm:$0xf]
  %v4087 = vld [vmem:[%s4073 + $0x34] sm:$0xf]
  %v4088 = vld [vmem:[%s4073 + $0x38] sm:$0xf]
  %v4089 = vld [vmem:[%s4073 + $0x3c] sm:$0xf]
  %v4106 = vunpack.c.l.b16 %v4074
  %v4107 = vunpack.c.l.b16 %v4075
  %v4108 = vunpack.c.l.b16 %v4076
  %v4109 = vunpack.c.l.b16 %v4077
  %v4110 = vunpack.c.l.b16 %v4078
  %v4111 = vunpack.c.l.b16 %v4079
  %v4112 = vunpack.c.l.b16 %v4080
  %v4113 = vunpack.c.l.b16 %v4081
  %v4114 = vunpack.c.l.b16 %v4082
  %v4115 = vunpack.c.l.b16 %v4083
  %v4116 = vunpack.c.l.b16 %v4084
  %v4117 = vunpack.c.l.b16 %v4085
  %v4118 = vunpack.c.l.b16 %v4086
  %v4119 = vunpack.c.l.b16 %v4087
  %v4120 = vunpack.c.l.b16 %v4088
  %v4121 = vunpack.c.l.b16 %v4089
  %v4122 = vpack.c.b16 %v4107, %v4106
  %v4123 = vpack.c.b16 %v4109, %v4108
  %v4124 = vpack.c.b16 %v4111, %v4110
  %v4125 = vpack.c.b16 %v4113, %v4112
  %v4126 = vpack.c.b16 %v4115, %v4114
  %v4127 = vpack.c.b16 %v4117, %v4116
  %v4128 = vpack.c.b16 %v4119, %v4118
  %v4129 = vpack.c.b16 %v4121, %v4120
  %4138 = vmatprep.subr.bf16.mxu0 0
  %4139 = vmatpush1.bf16.msra.mxu0 %v4122
  %4140 = vmatprep.subr.bf16.mxu0 0
  %4141 = vmatpush1.bf16.msra.mxu0 %v4123
  %4142 = vmatprep.subr.bf16.mxu0 0
  %4143 = vmatpush1.bf16.msra.mxu0 %v4124
  %4144 = vmatprep.subr.bf16.mxu0 0
  %4145 = vmatpush1.bf16.msra.mxu0 %v4125
  %4146 = vmatprep.subr.bf16.mxu0 0
  %4147 = vmatpush1.bf16.msra.mxu0 %v4126
  %4148 = vmatprep.subr.bf16.mxu0 0
  %4149 = vmatpush1.bf16.msra.mxu0 %v4127
  %4150 = vmatprep.subr.bf16.mxu0 0
  %4151 = vmatpush1.bf16.msra.mxu0 %v4128
  %4152 = vmatprep.subr.bf16.mxu0 0
  %4153 = vmatpush1.bf16.msra.mxu0 %v4129
  %4154 = vmatprep.subr.bf16.mxu0 0
  %4155 = vmatpush1.bf16.msra.mxu0 0
  %4156 = vmatprep.subr.bf16.mxu0 0
  %4157 = vmatpush1.bf16.msra.mxu0 0
  %4158 = vmatprep.subr.bf16.mxu0 0
  %4159 = vmatpush1.bf16.msra.mxu0 0
  %4160 = vmatprep.subr.bf16.mxu0 0
  %4161 = vmatpush1.bf16.msra.mxu0 0
  %4162 = vmatprep.subr.bf16.mxu0 0
  %4163 = vmatpush1.bf16.msra.mxu0 0
  %4164 = vmatprep.subr.bf16.mxu0 0
  %4165 = vmatpush1.bf16.msra.mxu0 0
  %4166 = vmatprep.subr.bf16.mxu0 0
  %4167 = vmatpush1.bf16.msra.mxu0 0
  %4168 = vmatprep.subr.bf16.mxu0 0
  %4169 = vmatpush1.bf16.msra.mxu0 0
  %4170 = vmatprep.mubr.bf16.mxu0 0
  %4171 = vmatmul.mubr.bf16.gmra.mrb[0].mxu0 %v3771
  %v4172 = vpop.f32.mrb[0].mxu0
  %v4173 = vadd.f32 0.0, %v4172
  %v4174 = vpop.f32.mrb[0].mxu0
  %v4175 = vpop.f32.mrb[0].mxu0
  %v4176 = vpop.f32.mrb[0].mxu0
  %4177 = vdwg.mxu0
  %v4178 = vadd.f32 %v4068, %v4173
  %s4179 = scalar_lea.vmem %s6, 512
  %v4180 = vld [vmem:[%s4179] sm:$0xf]
  %v4181 = vld [vmem:[%s4179 + $0x4] sm:$0xf]
  %v4182 = vld [vmem:[%s4179 + $0x8] sm:$0xf]
  %v4183 = vld [vmem:[%s4179 + $0xc] sm:$0xf]
  %v4184 = vld [vmem:[%s4179 + $0x10] sm:$0xf]
  %v4185 = vld [vmem:[%s4179 + $0x14] sm:$0xf]
  %v4186 = vld [vmem:[%s4179 + $0x18] sm:$0xf]
  %v4187 = vld [vmem:[%s4179 + $0x1c] sm:$0xf]
  %v4188 = vld [vmem:[%s4179 + $0x20] sm:$0xf]
  %v4189 = vld [vmem:[%s4179 + $0x24] sm:$0xf]
  %v4190 = vld [vmem:[%s4179 + $0x28] sm:$0xf]
  %v4191 = vld [vmem:[%s4179 + $0x2c] sm:$0xf]
  %v4192 = vld [vmem:[%s4179 + $0x30] sm:$0xf]
  %v4193 = vld [vmem:[%s4179 + $0x34] sm:$0xf]
  %v4194 = vld [vmem:[%s4179 + $0x38] sm:$0xf]
  %v4195 = vld [vmem:[%s4179 + $0x3c] sm:$0xf]
  %v4196 = vpack.c.bf16 %v3753, %v3753
  %v4213 = vunpack.c.l.b16 %v4180
  %v4214 = vunpack.c.l.b16 %v4181
  %v4215 = vunpack.c.l.b16 %v4182
  %v4216 = vunpack.c.l.b16 %v4183
  %v4217 = vunpack.c.l.b16 %v4184
  %v4218 = vunpack.c.l.b16 %v4185
  %v4219 = vunpack.c.l.b16 %v4186
  %v4220 = vunpack.c.l.b16 %v4187
  %v4221 = vunpack.c.l.b16 %v4188
  %v4222 = vunpack.c.l.b16 %v4189
  %v4223 = vunpack.c.l.b16 %v4190
  %v4224 = vunpack.c.l.b16 %v4191
  %v4225 = vunpack.c.l.b16 %v4192
  %v4226 = vunpack.c.l.b16 %v4193
  %v4227 = vunpack.c.l.b16 %v4194
  %v4228 = vunpack.c.l.b16 %v4195
  %v4229 = vpack.c.b16 %v4214, %v4213
  %v4230 = vpack.c.b16 %v4216, %v4215
  %v4231 = vpack.c.b16 %v4218, %v4217
  %v4232 = vpack.c.b16 %v4220, %v4219
  %v4233 = vpack.c.b16 %v4222, %v4221
  %v4234 = vpack.c.b16 %v4224, %v4223
  %v4235 = vpack.c.b16 %v4226, %v4225
  %v4236 = vpack.c.b16 %v4228, %v4227
  %4245 = vmatprep.subr.bf16.mxu0 0
  %4246 = vmatpush1.bf16.msra.mxu0 %v4229
  %4247 = vmatprep.subr.bf16.mxu0 0
  %4248 = vmatpush1.bf16.msra.mxu0 %v4230
  %4249 = vmatprep.subr.bf16.mxu0 0
  %4250 = vmatpush1.bf16.msra.mxu0 %v4231
  %4251 = vmatprep.subr.bf16.mxu0 0
  %4252 = vmatpush1.bf16.msra.mxu0 %v4232
  %4253 = vmatprep.subr.bf16.mxu0 0
  %4254 = vmatpush1.bf16.msra.mxu0 %v4233
  %4255 = vmatprep.subr.bf16.mxu0 0
  %4256 = vmatpush1.bf16.msra.mxu0 %v4234
  %4257 = vmatprep.subr.bf16.mxu0 0
  %4258 = vmatpush1.bf16.msra.mxu0 %v4235
  %4259 = vmatprep.subr.bf16.mxu0 0
  %4260 = vmatpush1.bf16.msra.mxu0 %v4236
  %4261 = vmatprep.subr.bf16.mxu0 0
  %4262 = vmatpush1.bf16.msra.mxu0 0
  %4263 = vmatprep.subr.bf16.mxu0 0
  %4264 = vmatpush1.bf16.msra.mxu0 0
  %4265 = vmatprep.subr.bf16.mxu0 0
  %4266 = vmatpush1.bf16.msra.mxu0 0
  %4267 = vmatprep.subr.bf16.mxu0 0
  %4268 = vmatpush1.bf16.msra.mxu0 0
  %4269 = vmatprep.subr.bf16.mxu0 0
  %4270 = vmatpush1.bf16.msra.mxu0 0
  %4271 = vmatprep.subr.bf16.mxu0 0
  %4272 = vmatpush1.bf16.msra.mxu0 0
  %4273 = vmatprep.subr.bf16.mxu0 0
  %4274 = vmatpush1.bf16.msra.mxu0 0
  %4275 = vmatprep.subr.bf16.mxu0 0
  %4276 = vmatpush1.bf16.msra.mxu0 0
  %4277 = vmatprep.mubr.bf16.mxu0 0
  %4278 = vmatmul.mubr.bf16.gmra.mrb[0].mxu0 %v4196
  %v4279 = vpop.f32.mrb[0].mxu0
  %v4280 = vadd.f32 0.0, %v4279
  %v4281 = vpop.f32.mrb[0].mxu0
  %v4282 = vpop.f32.mrb[0].mxu0
  %v4283 = vpop.f32.mrb[0].mxu0
  %4284 = vdwg.mxu0
  %v4285 = vadd.f32 %v4178, %v4280
  %s4286 = scalar_lea.vmem %s6, 576
  %v4287 = vld [vmem:[%s4286] sm:$0xf]
  %v4288 = vld [vmem:[%s4286 + $0x4] sm:$0xf]
  %v4289 = vld [vmem:[%s4286 + $0x8] sm:$0xf]
  %v4290 = vld [vmem:[%s4286 + $0xc] sm:$0xf]
  %v4291 = vld [vmem:[%s4286 + $0x10] sm:$0xf]
  %v4292 = vld [vmem:[%s4286 + $0x14] sm:$0xf]
  %v4293 = vld [vmem:[%s4286 + $0x18] sm:$0xf]
  %v4294 = vld [vmem:[%s4286 + $0x1c] sm:$0xf]
  %v4295 = vld [vmem:[%s4286 + $0x20] sm:$0xf]
  %v4296 = vld [vmem:[%s4286 + $0x24] sm:$0xf]
  %v4297 = vld [vmem:[%s4286 + $0x28] sm:$0xf]
  %v4298 = vld [vmem:[%s4286 + $0x2c] sm:$0xf]
  %v4299 = vld [vmem:[%s4286 + $0x30] sm:$0xf]
  %v4300 = vld [vmem:[%s4286 + $0x34] sm:$0xf]
  %v4301 = vld [vmem:[%s4286 + $0x38] sm:$0xf]
  %v4302 = vld [vmem:[%s4286 + $0x3c] sm:$0xf]
  %v4303 = vpack.c.bf16 %v3856, %v3856
  %v4320 = vunpack.c.l.b16 %v4287
  %v4321 = vunpack.c.l.b16 %v4288
  %v4322 = vunpack.c.l.b16 %v4289
  %v4323 = vunpack.c.l.b16 %v4290
  %v4324 = vunpack.c.l.b16 %v4291
  %v4325 = vunpack.c.l.b16 %v4292
  %v4326 = vunpack.c.l.b16 %v4293
  %v4327 = vunpack.c.l.b16 %v4294
  %v4328 = vunpack.c.l.b16 %v4295
  %v4329 = vunpack.c.l.b16 %v4296
  %v4330 = vunpack.c.l.b16 %v4297
  %v4331 = vunpack.c.l.b16 %v4298
  %v4332 = vunpack.c.l.b16 %v4299
  %v4333 = vunpack.c.l.b16 %v4300
  %v4334 = vunpack.c.l.b16 %v4301
  %v4335 = vunpack.c.l.b16 %v4302
  %v4336 = vpack.c.b16 %v4321, %v4320
  %v4337 = vpack.c.b16 %v4323, %v4322
  %v4338 = vpack.c.b16 %v4325, %v4324
  %v4339 = vpack.c.b16 %v4327, %v4326
  %v4340 = vpack.c.b16 %v4329, %v4328
  %v4341 = vpack.c.b16 %v4331, %v4330
  %v4342 = vpack.c.b16 %v4333, %v4332
  %v4343 = vpack.c.b16 %v4335, %v4334
  %4352 = vmatprep.subr.bf16.mxu0 0
  %4353 = vmatpush1.bf16.msra.mxu0 %v4336
  %4354 = vmatprep.subr.bf16.mxu0 0
  %4355 = vmatpush1.bf16.msra.mxu0 %v4337
  %4356 = vmatprep.subr.bf16.mxu0 0
  %4357 = vmatpush1.bf16.msra.mxu0 %v4338
  %4358 = vmatprep.subr.bf16.mxu0 0
  %4359 = vmatpush1.bf16.msra.mxu0 %v4339
  %4360 = vmatprep.subr.bf16.mxu0 0
  %4361 = vmatpush1.bf16.msra.mxu0 %v4340
  %4362 = vmatprep.subr.bf16.mxu0 0
  %4363 = vmatpush1.bf16.msra.mxu0 %v4341
  %4364 = vmatprep.subr.bf16.mxu0 0
  %4365 = vmatpush1.bf16.msra.mxu0 %v4342
  %4366 = vmatprep.subr.bf16.mxu0 0
  %4367 = vmatpush1.bf16.msra.mxu0 %v4343
  %4368 = vmatprep.subr.bf16.mxu0 0
  %4369 = vmatpush1.bf16.msra.mxu0 0
  %4370 = vmatprep.subr.bf16.mxu0 0
  %4371 = vmatpush1.bf16.msra.mxu0 0
  %4372 = vmatprep.subr.bf16.mxu0 0
  %4373 = vmatpush1.bf16.msra.mxu0 0
  %4374 = vmatprep.subr.bf16.mxu0 0
  %4375 = vmatpush1.bf16.msra.mxu0 0
  %4376 = vmatprep.subr.bf16.mxu0 0
  %4377 = vmatpush1.bf16.msra.mxu0 0
  %4378 = vmatprep.subr.bf16.mxu0 0
  %4379 = vmatpush1.bf16.msra.mxu0 0
  %4380 = vmatprep.subr.bf16.mxu0 0
  %4381 = vmatpush1.bf16.msra.mxu0 0
  %4382 = vmatprep.subr.bf16.mxu0 0
  %4383 = vmatpush1.bf16.msra.mxu0 0
  %4384 = vmatprep.mubr.bf16.mxu0 0
  %4385 = vmatmul.mubr.bf16.gmra.mrb[0].mxu0 %v4303
  %v4386 = vpop.f32.mrb[0].mxu0
  %v4387 = vadd.f32 0.0, %v4386
  %v4388 = vpop.f32.mrb[0].mxu0
  %v4389 = vpop.f32.mrb[0].mxu0
  %v4390 = vpop.f32.mrb[0].mxu0
  %4391 = vdwg.mxu0
  %v4392 = vadd.f32 %v4285, %v4387
  %v4393 = vld [vmem:[%s8 + $0x7] ss:$0 sm:$0xff]
  %v4394 = vadd.f32 %v4392, %v4393
  %4395 = vst [vmem:[%s9] sm:$0xff] %v4394
  // Predicated region
  $region38: #{multimodal_forward.1} parent=0 // pred_check
    _
  $region39: #{multimodal_forward.1} parent=0 // pred_check_branch
    %4397 = sbr.rel (0) target = $region41
  $region40: #{multimodal_forward.1} parent=0 // pred_region
    _
  $region41: #{multimodal_forward.1} parent=0 // pred_fallthru
    _
  // Predicated region
  $region42: #{multimodal_forward.1} parent=0 // pred_check
    _
  $region43: #{multimodal_forward.1} parent=0 // pred_check_branch
    %4399 = sbr.rel (0) target = $region45
  $region44: #{multimodal_forward.1} parent=0 // pred_region
    _
  $region45: #{multimodal_forward.1} parent=0 // pred_fallthru
    _

</llo_original>
